<compile_context>
chip_gen: v7x
topology: tpu7x:2x2x1
jax: 0.10.0
libtpu: 0.0.40
codegen_flags: <defaults>
</compile_context>

<pallas_src>
import math
from functools import partial

import numpy as np
import jax
import jax.numpy as jnp
from jax import lax
from jax.experimental import pallas as pl
from jax.experimental.pallas import tpu as pltpu


def _round_up(v, m):
    return ((v + m - 1) // m) * m


# ----------------------------- fused Pallas kernel --------------------------

def _fused_cnn_kernel(x_ref, pe_ref, *refs, cfg, S, scale):
    """Whole CNN encoder for one batch element (all S frames) per grid step.

    refs = (g0, w0, b0, g1, w1, b1, ..., out_ref)
    Feature maps are register values of shape (S, Hpad*Wpad) (S on sublanes,
    flattened padded rows on lanes).  cfg[L] =
      (cin, cout, kh, kw, Wc, Lacc, Lm, pk, ps, Kpad, last)
    """
    n_layers = len(cfg)
    o_ref = refs[3 * n_layers]

    inputs = [x_ref[0]]                       # layer 0: single input channel

    for L, (cin, cout, kh, kw, Wc, Lacc, Lm, pk, ps, Kpad, last) in enumerate(cfg):
        g_ref, w_ref, b_ref = refs[3 * L], refs[3 * L + 1], refs[3 * L + 2]

        # ---- conv: one shared shifted slab per tap, scalar MACs on the VPU -
        accs = [None] * cout
        for ci in range(cin):
            src = inputs[ci]
            for di in range(kh):
                for dj in range(kw):
                    off = di * Wc + dj
                    slab = src[:, off:off + Lacc]          # (S, Lacc), 1 rotate
                    for co in range(cout):
                        wv = w_ref[((co * cin + ci) * kh + di) * kw + dj]
                        t = wv * slab
                        accs[co] = t if accs[co] is None else accs[co] + t

        # ---- bias + ReLU + pk*pk max-pool fully in registers ---------------
        ms = []
        for co in range(cout):
            a = jnp.maximum(accs[co] + b_ref[co], 0.0)     # (S, Lacc)
            m = a[:, 0:Lm]
            for v in range(pk):
                for u in range(pk):
                    if v == 0 and u == 0:
                        continue
                    o = v * Wc + u
                    m = jnp.maximum(m, a[:, o:o + Lm])     # shifted lane slices
            ms.append(m)                                   # (S, Lm)

        # ---- pooled-position gather / repad / flatten as ONE MXU matmul ----
        if not last:
            mall = jnp.concatenate(ms, axis=0)             # (cout*S, Lm)
        else:
            mall = jnp.concatenate(ms, axis=1) if cout > 1 else ms[0]  # (S, cout*Lm)
        kcur = mall.shape[1]
        if Kpad > kcur:                                    # pad K to 128-mult
            mall = jnp.concatenate(
                [mall, jnp.zeros((mall.shape[0], Kpad - kcur), jnp.float32)],
                axis=1)
        # exact selection despite bf16 MXU inputs: split into hi + lo passes
        lo = mall - mall.astype(jnp.bfloat16).astype(jnp.float32)
        both = jnp.concatenate([mall, lo], axis=0).astype(jnp.bfloat16)
        res2 = jnp.dot(both, g_ref[...], preferred_element_type=jnp.float32)
        rows = mall.shape[0]
        sel = res2[0:rows] + res2[rows:2 * rows]

        if not last:
            # next layer's zero-padded flat inputs, one per channel (registers)
            inputs = [sel[ci * S:(ci + 1) * S, :] for ci in range(cout)]
        else:
            # torch (C,H,W) flatten order already encoded in G; scale + PE and
            # one lane-dense (S, d) store.
            o_ref[0] = sel * scale + pe_ref[...]
        # TODO(synk): nn.Dropout omitted (identity at inference / eval mode).


# ------------------------------- wrapper / model -----------------------------

def sinusoidal_pe(max_len, d_model):
    pos = jnp.arange(max_len, dtype=jnp.float32)[:, None]
    div = jnp.exp(jnp.arange(0, d_model, 2, dtype=jnp.float32)
                  * (-math.log(10000.0) / d_model))
    pe = jnp.zeros((max_len, d_model), jnp.float32)
    pe = pe.at[:, 0::2].set(jnp.sin(pos * div))
    pe = pe.at[:, 1::2].set(jnp.cos(pos * div))
    return pe


def forward_pallas(x, params, pe_table, d_output, sample=1):
    """x: (B, S, H, W).  Returns (S', B, d_output) like the torch module."""
    B, S, H, W = x.shape
    n_layers = len(params)

    # ---- static per-layer geometry -----------------------------------------
    geo = []
    Hin, Win = H, W
    for (w_oihw, bias, pad, pk, ps) in params:
        cout, cin, kh, kw = w_oihw.shape
        Hp, Wp = Hin + 2 * pad, Win + 2 * pad
        Ho, Wo = Hp - kh + 1, Wp - kw + 1
        Ph, Pw = (Ho - pk) // ps + 1, (Wo - pk) // ps + 1
        geo.append(dict(cin=cin, cout=cout, kh=kh, kw=kw, pad=pad, pk=pk,
                        ps=ps, Hp=Hp, Wp=Wp, Ho=Ho, Wo=Wo, Ph=Ph, Pw=Pw))
        Hin, Win = Ph, Pw
    assert geo[0]["cin"] == 1, "first conv must have a single input channel"
    d = geo[-1]["cout"] * geo[-1]["Ph"] * geo[-1]["Pw"]
    assert d == d_output == pe_table.shape[1]

    # ---- constant 0/1 selection matrices (gather+pad+flatten per layer) ----
    kcfg, g_mats = [], []
    Lin = geo[0]["Hp"] * geo[0]["Wp"]
    for i, c in enumerate(geo):
        last = i == n_layers - 1
        Wc = c["Wp"]                                  # flat conv row stride
        Lm = (c["Ph"] - 1) * c["ps"] * Wc + (c["Pw"] - 1) * c["ps"] + 1
        Lacc = Lm + (c["pk"] - 1) * (Wc + 1)
        assert Lacc + (c["kh"] - 1) * Wc + (c["kw"] - 1) <= Lin
        if not last:
            nxt = geo[i + 1]
            Npad = _round_up(nxt["Hp"] * nxt["Wp"], 128)
            Kpad = _round_up(Lm, 128)
            G = np.zeros((Kpad, Npad), np.float32)
            for h1 in range(c["Ph"]):
                for w1 in range(c["Pw"]):
                    G[c["ps"] * Wc * h1 + c["ps"] * w1,
                      (h1 + nxt["pad"]) * nxt["Wp"] + (w1 + nxt["pad"])] = 1.0
            Lin = Npad
        else:
            Kpad = _round_up(c["cout"] * Lm, 128)
            G = np.zeros((Kpad, d), np.float32)
            for co in range(c["cout"]):
                for ph in range(c["Ph"]):
                    for pw in range(c["Pw"]):
                        G[co * Lm + c["ps"] * Wc * ph + c["ps"] * pw,
                          co * c["Ph"] * c["Pw"] + ph * c["Pw"] + pw] = 1.0
        g_mats.append(jnp.asarray(G, jnp.bfloat16))   # exact 0/1 in bf16
        kcfg.append((c["cin"], c["cout"], c["kh"], c["kw"], Wc, Lacc, Lm,
                     c["pk"], c["ps"], Kpad, last))

    # ---- wrapper layout plumbing (cheap XLA ops on tiny tensors) -----------
    p0 = geo[0]["pad"]
    xp = jnp.pad(x.astype(jnp.float32), ((0, 0), (0, 0), (p0, p0), (p0, p0)))
    Lx0 = geo[0]["Hp"] * geo[0]["Wp"]
    x_flat = xp.reshape(B, S, Lx0)
    pe = jnp.asarray(pe_table[:S], jnp.float32)

    flat_args = []
    for i, (w_oihw, bias, pad, pk, ps) in enumerate(params):
        flat_args += [g_mats[i],
                      jnp.asarray(w_oihw, jnp.float32).reshape(-1),   # OIHW flat
                      jnp.asarray(bias, jnp.float32)]

    smem = pl.BlockSpec(memory_space=pltpu.MemorySpace.SMEM)
    in_specs = [pl.BlockSpec((1, S, Lx0), lambda b: (b, 0, 0)),   # padded image
                pl.BlockSpec((S, d), lambda b: (0, 0))]            # PE table
    for i in range(n_layers):
        in_specs += [pl.BlockSpec(g_mats[i].shape, lambda b: (0, 0)),  # G_i
                     smem, smem]                                       # w_i, b_i

    kernel = partial(_fused_cnn_kernel, cfg=tuple(kcfg), S=S,
                     scale=math.sqrt(d_output))
    out = pl.pallas_call(
        kernel,
        out_shape=jax.ShapeDtypeStruct((B, S, d), jnp.float32),
        grid=(B,),
        in_specs=in_specs,
        out_specs=pl.BlockSpec((1, S, d), lambda b: (b, 0, 0)),
        compiler_params=pltpu.CompilerParams(
            dimension_semantics=("parallel",)),
    )(x_flat, pe, *flat_args)

    y = jnp.transpose(out, (1, 0, 2))          # (S, B, d) — wrapper layout fix
    if sample > 1:
        y = y[sample - 1::sample]
    return y


def forward_reference(x, params, pe_table, d_output, sample=1):
    """Pure-JAX (XLA) reference matching the torch module semantics."""
    B, S, H, W = x.shape
    img = x.reshape(B * S, 1, H, W)
    for (w, b, pad, pk, ps) in params:
        img = lax.conv_general_dilated(
            img, w, window_strides=(1, 1), padding=[(pad, pad), (pad, pad)],
            dimension_numbers=("NCHW", "OIHW", "NCHW"),
            precision=lax.Precision.HIGHEST)
        img = jnp.maximum(img + b[None, :, None, None], 0.0)
        img = lax.reduce_window(img, -jnp.inf, lax.max,
                                (1, 1, pk, pk), (1, 1, ps, ps), "VALID")
    y = img.reshape(B, S, -1).transpose(1, 0, 2)
    y = y * math.sqrt(d_output) + pe_table[:S][:, None, :]
    if sample > 1:
        y = y[sample - 1::sample]
    return y


if __name__ == "__main__":
    # Config consistent with the module: channels=[1,4,8], k=3, pad=1, pool 2/2
    B, S, H, W = 2, 8, 16, 16
    channels = [1, 4, 8]
    kernel_size = [3, 3]
    padding = [1, 1]
    pool_kernel, pool_stride = 2, 2
    sample = 1
    d_output = channels[-1] * (H // 4) * (W // 4)   # 8*4*4 = 128

    key = jax.random.PRNGKey(0)
    keys = jax.random.split(key, 1 + 2 * (len(channels) - 1))
    x = jax.random.normal(keys[0], (B, S, H, W), dtype=jnp.float32)

    params = []
    for i in range(len(channels) - 1):
        cin, cout = channels[i], channels[i + 1]
        kh = kw = kernel_size[i]
        w = jax.random.normal(keys[1 + 2 * i], (cout, cin, kh, kw),
                              dtype=jnp.float32) / math.sqrt(cin * kh * kw)
        b = jax.random.normal(keys[2 + 2 * i], (cout,), dtype=jnp.float32) * 0.1
        params.append((w, b, padding[i], pool_kernel, pool_stride))

    pe_table = sinusoidal_pe(max_len=64, d_model=d_output)

    out = forward_pallas(x, params, pe_table, d_output, sample=sample)
    out = jax.block_until_ready(out)

    ref = forward_reference(x, params, pe_table, d_output, sample=sample)
    assert out.shape == (S, B, d_output), out.shape
    assert jnp.allclose(out, ref, atol=1e-3, rtol=1e-3), (
        float(jnp.max(jnp.abs(out - ref))))

    print("KERNEL_OK")
</pallas_src>

<mosaic_0001>
module attributes {stable_mosaic.version = 11 : i64} {
  func.func @_fused_cnn_kernel(%arg0: i32, %arg1: memref<1x8x324xf32, #tpu.memory_space<vmem>>, %arg2: memref<8x128xf32, #tpu.memory_space<vmem>>, %arg3: memref<384x128xbf16, #tpu.memory_space<vmem>>, %arg4: memref<36xf32, #tpu.memory_space<smem>>, %arg5: memref<4xf32, #tpu.memory_space<smem>>, %arg6: memref<640x128xbf16, #tpu.memory_space<vmem>>, %arg7: memref<288xf32, #tpu.memory_space<smem>>, %arg8: memref<8xf32, #tpu.memory_space<smem>>, %arg9: memref<1x8x128xf32, #tpu.memory_space<vmem>>) attributes {dimension_semantics = [#tpu.dimension_semantics<parallel>], iteration_bounds = array<i64: 2>, scalar_prefetch = 0 : i64, scratch_operands = 0 : i64, tpu.core_type = #tpu.core_type<tc>, window_params = [{transform_indices = @transform_0, window_bounds = array<i64: 1, 8, 324>}, {pipeline_mode = #tpu.pipeline_mode<synchronous>, transform_indices = @transform_1, window_bounds = array<i64: 8, 128>}, {pipeline_mode = #tpu.pipeline_mode<synchronous>, transform_indices = @transform_2, window_bounds = array<i64: 384, 128>}, {transform_indices = @transform_3, window_bounds = array<i64: 36>}, {transform_indices = @transform_4, window_bounds = array<i64: 4>}, {pipeline_mode = #tpu.pipeline_mode<synchronous>, transform_indices = @transform_5, window_bounds = array<i64: 640, 128>}, {transform_indices = @transform_6, window_bounds = array<i64: 288>}, {transform_indices = @transform_7, window_bounds = array<i64: 8>}, {transform_indices = @transform_8, window_bounds = array<i64: 1, 8, 128>}]} {
    %c0 = arith.constant 0 : index
    %c0_0 = arith.constant 0 : index
    %c0_1 = arith.constant 0 : index
    %0 = vector.load %arg1[%c0, %c0_0, %c0_1] : memref<1x8x324xf32, #tpu.memory_space<vmem>>, vector<1x8x324xf32>
    %1 = vector.shape_cast %0 : vector<1x8x324xf32> to vector<8x324xf32>
    %2 = vector.extract_strided_slice %1 {offsets = [0, 0], sizes = [8, 286], strides = [1, 1]} : vector<8x324xf32> to vector<8x286xf32>
    %c0_2 = arith.constant 0 : index
    %3 = memref.load %arg4[%c0_2] : memref<36xf32, #tpu.memory_space<smem>>
    %4 = vector.broadcast %3 : f32 to vector<8x286xf32>
    %5 = arith.mulf %4, %2 : vector<8x286xf32>
    %c9 = arith.constant 9 : index
    %6 = memref.load %arg4[%c9] : memref<36xf32, #tpu.memory_space<smem>>
    %7 = vector.broadcast %6 : f32 to vector<8x286xf32>
    %8 = arith.mulf %7, %2 : vector<8x286xf32>
    %c18 = arith.constant 18 : index
    %9 = memref.load %arg4[%c18] : memref<36xf32, #tpu.memory_space<smem>>
    %10 = vector.broadcast %9 : f32 to vector<8x286xf32>
    %11 = arith.mulf %10, %2 : vector<8x286xf32>
    %c27 = arith.constant 27 : index
    %12 = memref.load %arg4[%c27] : memref<36xf32, #tpu.memory_space<smem>>
    %13 = vector.broadcast %12 : f32 to vector<8x286xf32>
    %14 = arith.mulf %13, %2 : vector<8x286xf32>
    %15 = vector.extract_strided_slice %1 {offsets = [0, 1], sizes = [8, 286], strides = [1, 1]} : vector<8x324xf32> to vector<8x286xf32>
    %c1 = arith.constant 1 : index
    %16 = memref.load %arg4[%c1] : memref<36xf32, #tpu.memory_space<smem>>
    %17 = vector.broadcast %16 : f32 to vector<8x286xf32>
    %18 = arith.mulf %17, %15 : vector<8x286xf32>
    %19 = arith.addf %5, %18 : vector<8x286xf32>
    %c10 = arith.constant 10 : index
    %20 = memref.load %arg4[%c10] : memref<36xf32, #tpu.memory_space<smem>>
    %21 = vector.broadcast %20 : f32 to vector<8x286xf32>
    %22 = arith.mulf %21, %15 : vector<8x286xf32>
    %23 = arith.addf %8, %22 : vector<8x286xf32>
    %c19 = arith.constant 19 : index
    %24 = memref.load %arg4[%c19] : memref<36xf32, #tpu.memory_space<smem>>
    %25 = vector.broadcast %24 : f32 to vector<8x286xf32>
    %26 = arith.mulf %25, %15 : vector<8x286xf32>
    %27 = arith.addf %11, %26 : vector<8x286xf32>
    %c28 = arith.constant 28 : index
    %28 = memref.load %arg4[%c28] : memref<36xf32, #tpu.memory_space<smem>>
    %29 = vector.broadcast %28 : f32 to vector<8x286xf32>
    %30 = arith.mulf %29, %15 : vector<8x286xf32>
    %31 = arith.addf %14, %30 : vector<8x286xf32>
    %32 = vector.extract_strided_slice %1 {offsets = [0, 2], sizes = [8, 286], strides = [1, 1]} : vector<8x324xf32> to vector<8x286xf32>
    %c2 = arith.constant 2 : index
    %33 = memref.load %arg4[%c2] : memref<36xf32, #tpu.memory_space<smem>>
    %34 = vector.broadcast %33 : f32 to vector<8x286xf32>
    %35 = arith.mulf %34, %32 : vector<8x286xf32>
    %36 = arith.addf %19, %35 : vector<8x286xf32>
    %c11 = arith.constant 11 : index
    %37 = memref.load %arg4[%c11] : memref<36xf32, #tpu.memory_space<smem>>
    %38 = vector.broadcast %37 : f32 to vector<8x286xf32>
    %39 = arith.mulf %38, %32 : vector<8x286xf32>
    %40 = arith.addf %23, %39 : vector<8x286xf32>
    %c20 = arith.constant 20 : index
    %41 = memref.load %arg4[%c20] : memref<36xf32, #tpu.memory_space<smem>>
    %42 = vector.broadcast %41 : f32 to vector<8x286xf32>
    %43 = arith.mulf %42, %32 : vector<8x286xf32>
    %44 = arith.addf %27, %43 : vector<8x286xf32>
    %c29 = arith.constant 29 : index
    %45 = memref.load %arg4[%c29] : memref<36xf32, #tpu.memory_space<smem>>
    %46 = vector.broadcast %45 : f32 to vector<8x286xf32>
    %47 = arith.mulf %46, %32 : vector<8x286xf32>
    %48 = arith.addf %31, %47 : vector<8x286xf32>
    %49 = vector.extract_strided_slice %1 {offsets = [0, 18], sizes = [8, 286], strides = [1, 1]} : vector<8x324xf32> to vector<8x286xf32>
    %c3 = arith.constant 3 : index
    %50 = memref.load %arg4[%c3] : memref<36xf32, #tpu.memory_space<smem>>
    %51 = vector.broadcast %50 : f32 to vector<8x286xf32>
    %52 = arith.mulf %51, %49 : vector<8x286xf32>
    %53 = arith.addf %36, %52 : vector<8x286xf32>
    %c12 = arith.constant 12 : index
    %54 = memref.load %arg4[%c12] : memref<36xf32, #tpu.memory_space<smem>>
    %55 = vector.broadcast %54 : f32 to vector<8x286xf32>
    %56 = arith.mulf %55, %49 : vector<8x286xf32>
    %57 = arith.addf %40, %56 : vector<8x286xf32>
    %c21 = arith.constant 21 : index
    %58 = memref.load %arg4[%c21] : memref<36xf32, #tpu.memory_space<smem>>
    %59 = vector.broadcast %58 : f32 to vector<8x286xf32>
    %60 = arith.mulf %59, %49 : vector<8x286xf32>
    %61 = arith.addf %44, %60 : vector<8x286xf32>
    %c30 = arith.constant 30 : index
    %62 = memref.load %arg4[%c30] : memref<36xf32, #tpu.memory_space<smem>>
    %63 = vector.broadcast %62 : f32 to vector<8x286xf32>
    %64 = arith.mulf %63, %49 : vector<8x286xf32>
    %65 = arith.addf %48, %64 : vector<8x286xf32>
    %66 = vector.extract_strided_slice %1 {offsets = [0, 19], sizes = [8, 286], strides = [1, 1]} : vector<8x324xf32> to vector<8x286xf32>
    %c4 = arith.constant 4 : index
    %67 = memref.load %arg4[%c4] : memref<36xf32, #tpu.memory_space<smem>>
    %68 = vector.broadcast %67 : f32 to vector<8x286xf32>
    %69 = arith.mulf %68, %66 : vector<8x286xf32>
    %70 = arith.addf %53, %69 : vector<8x286xf32>
    %c13 = arith.constant 13 : index
    %71 = memref.load %arg4[%c13] : memref<36xf32, #tpu.memory_space<smem>>
    %72 = vector.broadcast %71 : f32 to vector<8x286xf32>
    %73 = arith.mulf %72, %66 : vector<8x286xf32>
    %74 = arith.addf %57, %73 : vector<8x286xf32>
    %c22 = arith.constant 22 : index
    %75 = memref.load %arg4[%c22] : memref<36xf32, #tpu.memory_space<smem>>
    %76 = vector.broadcast %75 : f32 to vector<8x286xf32>
    %77 = arith.mulf %76, %66 : vector<8x286xf32>
    %78 = arith.addf %61, %77 : vector<8x286xf32>
    %c31 = arith.constant 31 : index
    %79 = memref.load %arg4[%c31] : memref<36xf32, #tpu.memory_space<smem>>
    %80 = vector.broadcast %79 : f32 to vector<8x286xf32>
    %81 = arith.mulf %80, %66 : vector<8x286xf32>
    %82 = arith.addf %65, %81 : vector<8x286xf32>
    %83 = vector.extract_strided_slice %1 {offsets = [0, 20], sizes = [8, 286], strides = [1, 1]} : vector<8x324xf32> to vector<8x286xf32>
    %c5 = arith.constant 5 : index
    %84 = memref.load %arg4[%c5] : memref<36xf32, #tpu.memory_space<smem>>
    %85 = vector.broadcast %84 : f32 to vector<8x286xf32>
    %86 = arith.mulf %85, %83 : vector<8x286xf32>
    %87 = arith.addf %70, %86 : vector<8x286xf32>
    %c14 = arith.constant 14 : index
    %88 = memref.load %arg4[%c14] : memref<36xf32, #tpu.memory_space<smem>>
    %89 = vector.broadcast %88 : f32 to vector<8x286xf32>
    %90 = arith.mulf %89, %83 : vector<8x286xf32>
    %91 = arith.addf %74, %90 : vector<8x286xf32>
    %c23 = arith.constant 23 : index
    %92 = memref.load %arg4[%c23] : memref<36xf32, #tpu.memory_space<smem>>
    %93 = vector.broadcast %92 : f32 to vector<8x286xf32>
    %94 = arith.mulf %93, %83 : vector<8x286xf32>
    %95 = arith.addf %78, %94 : vector<8x286xf32>
    %c32 = arith.constant 32 : index
    %96 = memref.load %arg4[%c32] : memref<36xf32, #tpu.memory_space<smem>>
    %97 = vector.broadcast %96 : f32 to vector<8x286xf32>
    %98 = arith.mulf %97, %83 : vector<8x286xf32>
    %99 = arith.addf %82, %98 : vector<8x286xf32>
    %100 = vector.extract_strided_slice %1 {offsets = [0, 36], sizes = [8, 286], strides = [1, 1]} : vector<8x324xf32> to vector<8x286xf32>
    %c6 = arith.constant 6 : index
    %101 = memref.load %arg4[%c6] : memref<36xf32, #tpu.memory_space<smem>>
    %102 = vector.broadcast %101 : f32 to vector<8x286xf32>
    %103 = arith.mulf %102, %100 : vector<8x286xf32>
    %104 = arith.addf %87, %103 : vector<8x286xf32>
    %c15 = arith.constant 15 : index
    %105 = memref.load %arg4[%c15] : memref<36xf32, #tpu.memory_space<smem>>
    %106 = vector.broadcast %105 : f32 to vector<8x286xf32>
    %107 = arith.mulf %106, %100 : vector<8x286xf32>
    %108 = arith.addf %91, %107 : vector<8x286xf32>
    %c24 = arith.constant 24 : index
    %109 = memref.load %arg4[%c24] : memref<36xf32, #tpu.memory_space<smem>>
    %110 = vector.broadcast %109 : f32 to vector<8x286xf32>
    %111 = arith.mulf %110, %100 : vector<8x286xf32>
    %112 = arith.addf %95, %111 : vector<8x286xf32>
    %c33 = arith.constant 33 : index
    %113 = memref.load %arg4[%c33] : memref<36xf32, #tpu.memory_space<smem>>
    %114 = vector.broadcast %113 : f32 to vector<8x286xf32>
    %115 = arith.mulf %114, %100 : vector<8x286xf32>
    %116 = arith.addf %99, %115 : vector<8x286xf32>
    %117 = vector.extract_strided_slice %1 {offsets = [0, 37], sizes = [8, 286], strides = [1, 1]} : vector<8x324xf32> to vector<8x286xf32>
    %c7 = arith.constant 7 : index
    %118 = memref.load %arg4[%c7] : memref<36xf32, #tpu.memory_space<smem>>
    %119 = vector.broadcast %118 : f32 to vector<8x286xf32>
    %120 = arith.mulf %119, %117 : vector<8x286xf32>
    %121 = arith.addf %104, %120 : vector<8x286xf32>
    %c16 = arith.constant 16 : index
    %122 = memref.load %arg4[%c16] : memref<36xf32, #tpu.memory_space<smem>>
    %123 = vector.broadcast %122 : f32 to vector<8x286xf32>
    %124 = arith.mulf %123, %117 : vector<8x286xf32>
    %125 = arith.addf %108, %124 : vector<8x286xf32>
    %c25 = arith.constant 25 : index
    %126 = memref.load %arg4[%c25] : memref<36xf32, #tpu.memory_space<smem>>
    %127 = vector.broadcast %126 : f32 to vector<8x286xf32>
    %128 = arith.mulf %127, %117 : vector<8x286xf32>
    %129 = arith.addf %112, %128 : vector<8x286xf32>
    %c34 = arith.constant 34 : index
    %130 = memref.load %arg4[%c34] : memref<36xf32, #tpu.memory_space<smem>>
    %131 = vector.broadcast %130 : f32 to vector<8x286xf32>
    %132 = arith.mulf %131, %117 : vector<8x286xf32>
    %133 = arith.addf %116, %132 : vector<8x286xf32>
    %134 = vector.extract_strided_slice %1 {offsets = [0, 38], sizes = [8, 286], strides = [1, 1]} : vector<8x324xf32> to vector<8x286xf32>
    %c8 = arith.constant 8 : index
    %135 = memref.load %arg4[%c8] : memref<36xf32, #tpu.memory_space<smem>>
    %136 = vector.broadcast %135 : f32 to vector<8x286xf32>
    %137 = arith.mulf %136, %134 : vector<8x286xf32>
    %138 = arith.addf %121, %137 : vector<8x286xf32>
    %c17 = arith.constant 17 : index
    %139 = memref.load %arg4[%c17] : memref<36xf32, #tpu.memory_space<smem>>
    %140 = vector.broadcast %139 : f32 to vector<8x286xf32>
    %141 = arith.mulf %140, %134 : vector<8x286xf32>
    %142 = arith.addf %125, %141 : vector<8x286xf32>
    %c26 = arith.constant 26 : index
    %143 = memref.load %arg4[%c26] : memref<36xf32, #tpu.memory_space<smem>>
    %144 = vector.broadcast %143 : f32 to vector<8x286xf32>
    %145 = arith.mulf %144, %134 : vector<8x286xf32>
    %146 = arith.addf %129, %145 : vector<8x286xf32>
    %c35 = arith.constant 35 : index
    %147 = memref.load %arg4[%c35] : memref<36xf32, #tpu.memory_space<smem>>
    %148 = vector.broadcast %147 : f32 to vector<8x286xf32>
    %149 = arith.mulf %148, %134 : vector<8x286xf32>
    %150 = arith.addf %133, %149 : vector<8x286xf32>
    %c0_3 = arith.constant 0 : index
    %151 = memref.load %arg5[%c0_3] : memref<4xf32, #tpu.memory_space<smem>>
    %152 = vector.broadcast %151 : f32 to vector<8x286xf32>
    %153 = arith.addf %138, %152 : vector<8x286xf32>
    %cst = arith.constant 0.000000e+00 : f32
    %154 = vector.broadcast %cst : f32 to vector<8x286xf32>
    %155 = arith.maximumf %153, %154 : vector<8x286xf32>
    %156 = vector.extract_strided_slice %155 {offsets = [0, 0], sizes = [8, 267], strides = [1, 1]} : vector<8x286xf32> to vector<8x267xf32>
    %157 = vector.extract_strided_slice %155 {offsets = [0, 1], sizes = [8, 267], strides = [1, 1]} : vector<8x286xf32> to vector<8x267xf32>
    %158 = arith.maximumf %156, %157 : vector<8x267xf32>
    %159 = vector.extract_strided_slice %155 {offsets = [0, 18], sizes = [8, 267], strides = [1, 1]} : vector<8x286xf32> to vector<8x267xf32>
    %160 = arith.maximumf %158, %159 : vector<8x267xf32>
    %161 = vector.extract_strided_slice %155 {offsets = [0, 19], sizes = [8, 267], strides = [1, 1]} : vector<8x286xf32> to vector<8x267xf32>
    %162 = arith.maximumf %160, %161 : vector<8x267xf32>
    %c1_4 = arith.constant 1 : index
    %163 = memref.load %arg5[%c1_4] : memref<4xf32, #tpu.memory_space<smem>>
    %164 = vector.broadcast %163 : f32 to vector<8x286xf32>
    %165 = arith.addf %142, %164 : vector<8x286xf32>
    %cst_5 = arith.constant 0.000000e+00 : f32
    %166 = vector.broadcast %cst_5 : f32 to vector<8x286xf32>
    %167 = arith.maximumf %165, %166 : vector<8x286xf32>
    %168 = vector.extract_strided_slice %167 {offsets = [0, 0], sizes = [8, 267], strides = [1, 1]} : vector<8x286xf32> to vector<8x267xf32>
    %169 = vector.extract_strided_slice %167 {offsets = [0, 1], sizes = [8, 267], strides = [1, 1]} : vector<8x286xf32> to vector<8x267xf32>
    %170 = arith.maximumf %168, %169 : vector<8x267xf32>
    %171 = vector.extract_strided_slice %167 {offsets = [0, 18], sizes = [8, 267], strides = [1, 1]} : vector<8x286xf32> to vector<8x267xf32>
    %172 = arith.maximumf %170, %171 : vector<8x267xf32>
    %173 = vector.extract_strided_slice %167 {offsets = [0, 19], sizes = [8, 267], strides = [1, 1]} : vector<8x286xf32> to vector<8x267xf32>
    %174 = arith.maximumf %172, %173 : vector<8x267xf32>
    %c2_6 = arith.constant 2 : index
    %175 = memref.load %arg5[%c2_6] : memref<4xf32, #tpu.memory_space<smem>>
    %176 = vector.broadcast %175 : f32 to vector<8x286xf32>
    %177 = arith.addf %146, %176 : vector<8x286xf32>
    %cst_7 = arith.constant 0.000000e+00 : f32
    %178 = vector.broadcast %cst_7 : f32 to vector<8x286xf32>
    %179 = arith.maximumf %177, %178 : vector<8x286xf32>
    %180 = vector.extract_strided_slice %179 {offsets = [0, 0], sizes = [8, 267], strides = [1, 1]} : vector<8x286xf32> to vector<8x267xf32>
    %181 = vector.extract_strided_slice %179 {offsets = [0, 1], sizes = [8, 267], strides = [1, 1]} : vector<8x286xf32> to vector<8x267xf32>
    %182 = arith.maximumf %180, %181 : vector<8x267xf32>
    %183 = vector.extract_strided_slice %179 {offsets = [0, 18], sizes = [8, 267], strides = [1, 1]} : vector<8x286xf32> to vector<8x267xf32>
    %184 = arith.maximumf %182, %183 : vector<8x267xf32>
    %185 = vector.extract_strided_slice %179 {offsets = [0, 19], sizes = [8, 267], strides = [1, 1]} : vector<8x286xf32> to vector<8x267xf32>
    %186 = arith.maximumf %184, %185 : vector<8x267xf32>
    %c3_8 = arith.constant 3 : index
    %187 = memref.load %arg5[%c3_8] : memref<4xf32, #tpu.memory_space<smem>>
    %188 = vector.broadcast %187 : f32 to vector<8x286xf32>
    %189 = arith.addf %150, %188 : vector<8x286xf32>
    %cst_9 = arith.constant 0.000000e+00 : f32
    %190 = vector.broadcast %cst_9 : f32 to vector<8x286xf32>
    %191 = arith.maximumf %189, %190 : vector<8x286xf32>
    %192 = vector.extract_strided_slice %191 {offsets = [0, 0], sizes = [8, 267], strides = [1, 1]} : vector<8x286xf32> to vector<8x267xf32>
    %193 = vector.extract_strided_slice %191 {offsets = [0, 1], sizes = [8, 267], strides = [1, 1]} : vector<8x286xf32> to vector<8x267xf32>
    %194 = arith.maximumf %192, %193 : vector<8x267xf32>
    %195 = vector.extract_strided_slice %191 {offsets = [0, 18], sizes = [8, 267], strides = [1, 1]} : vector<8x286xf32> to vector<8x267xf32>
    %196 = arith.maximumf %194, %195 : vector<8x267xf32>
    %197 = vector.extract_strided_slice %191 {offsets = [0, 19], sizes = [8, 267], strides = [1, 1]} : vector<8x286xf32> to vector<8x267xf32>
    %198 = arith.maximumf %196, %197 : vector<8x267xf32>
    %199 = tpu.concatenate %162, %174, %186, %198 in 0 : vector<8x267xf32>, vector<8x267xf32>, vector<8x267xf32>, vector<8x267xf32> -> vector<32x267xf32>
    %cst_10 = arith.constant 0.000000e+00 : f32
    %200 = vector.broadcast %cst_10 : f32 to vector<32x117xf32>
    %201 = tpu.concatenate %199, %200 in 1 : vector<32x267xf32>, vector<32x117xf32> -> vector<32x384xf32>
    %202 = arith.truncf %201 : vector<32x384xf32> to vector<32x384xbf16>
    %203 = arith.extf %202 : vector<32x384xbf16> to vector<32x384xf32>
    %204 = arith.subf %201, %203 : vector<32x384xf32>
    %205 = tpu.concatenate %201, %204 in 0 : vector<32x384xf32>, vector<32x384xf32> -> vector<64x384xf32>
    %206 = arith.truncf %205 : vector<64x384xf32> to vector<64x384xbf16>
    %c0_11 = arith.constant 0 : index
    %c0_12 = arith.constant 0 : index
    %207 = vector.load %arg3[%c0_11, %c0_12] : memref<384x128xbf16, #tpu.memory_space<vmem>>, vector<384x128xbf16>
    %cst_13 = arith.constant dense<0.000000e+00> : vector<64x128xf32>
    %208 = tpu.matmul %206, %207, %cst_13 {dimension_numbers = #tpu.dot_dimension_numbers<[1], [0], [0], [1], [0, 0, 1, 1], [], []>} : vector<64x384xbf16>, vector<384x128xbf16>, vector<64x128xf32> -> vector<64x128xf32>
    %209 = vector.extract_strided_slice %208 {offsets = [0, 0], sizes = [32, 128], strides = [1, 1]} : vector<64x128xf32> to vector<32x128xf32>
    %210 = vector.extract_strided_slice %208 {offsets = [32, 0], sizes = [32, 128], strides = [1, 1]} : vector<64x128xf32> to vector<32x128xf32>
    %211 = arith.addf %209, %210 : vector<32x128xf32>
    %212 = vector.extract_strided_slice %211 {offsets = [0, 0], sizes = [8, 128], strides = [1, 1]} : vector<32x128xf32> to vector<8x128xf32>
    %213 = vector.extract_strided_slice %211 {offsets = [8, 0], sizes = [8, 128], strides = [1, 1]} : vector<32x128xf32> to vector<8x128xf32>
    %214 = vector.extract_strided_slice %211 {offsets = [16, 0], sizes = [8, 128], strides = [1, 1]} : vector<32x128xf32> to vector<8x128xf32>
    %215 = vector.extract_strided_slice %211 {offsets = [24, 0], sizes = [8, 128], strides = [1, 1]} : vector<32x128xf32> to vector<8x128xf32>
    %216 = vector.extract_strided_slice %212 {offsets = [0, 0], sizes = [8, 78], strides = [1, 1]} : vector<8x128xf32> to vector<8x78xf32>
    %c0_14 = arith.constant 0 : index
    %217 = memref.load %arg7[%c0_14] : memref<288xf32, #tpu.memory_space<smem>>
    %218 = vector.broadcast %217 : f32 to vector<8x78xf32>
    %219 = arith.mulf %218, %216 : vector<8x78xf32>
    %c36 = arith.constant 36 : index
    %220 = memref.load %arg7[%c36] : memref<288xf32, #tpu.memory_space<smem>>
    %221 = vector.broadcast %220 : f32 to vector<8x78xf32>
    %222 = arith.mulf %221, %216 : vector<8x78xf32>
    %c72 = arith.constant 72 : index
    %223 = memref.load %arg7[%c72] : memref<288xf32, #tpu.memory_space<smem>>
    %224 = vector.broadcast %223 : f32 to vector<8x78xf32>
    %225 = arith.mulf %224, %216 : vector<8x78xf32>
    %c108 = arith.constant 108 : index
    %226 = memref.load %arg7[%c108] : memref<288xf32, #tpu.memory_space<smem>>
    %227 = vector.broadcast %226 : f32 to vector<8x78xf32>
    %228 = arith.mulf %227, %216 : vector<8x78xf32>
    %c144 = arith.constant 144 : index
    %229 = memref.load %arg7[%c144] : memref<288xf32, #tpu.memory_space<smem>>
    %230 = vector.broadcast %229 : f32 to vector<8x78xf32>
    %231 = arith.mulf %230, %216 : vector<8x78xf32>
    %c180 = arith.constant 180 : index
    %232 = memref.load %arg7[%c180] : memref<288xf32, #tpu.memory_space<smem>>
    %233 = vector.broadcast %232 : f32 to vector<8x78xf32>
    %234 = arith.mulf %233, %216 : vector<8x78xf32>
    %c216 = arith.constant 216 : index
    %235 = memref.load %arg7[%c216] : memref<288xf32, #tpu.memory_space<smem>>
    %236 = vector.broadcast %235 : f32 to vector<8x78xf32>
    %237 = arith.mulf %236, %216 : vector<8x78xf32>
    %c252 = arith.constant 252 : index
    %238 = memref.load %arg7[%c252] : memref<288xf32, #tpu.memory_space<smem>>
    %239 = vector.broadcast %238 : f32 to vector<8x78xf32>
    %240 = arith.mulf %239, %216 : vector<8x78xf32>
    %241 = vector.extract_strided_slice %212 {offsets = [0, 1], sizes = [8, 78], strides = [1, 1]} : vector<8x128xf32> to vector<8x78xf32>
    %c1_15 = arith.constant 1 : index
    %242 = memref.load %arg7[%c1_15] : memref<288xf32, #tpu.memory_space<smem>>
    %243 = vector.broadcast %242 : f32 to vector<8x78xf32>
    %244 = arith.mulf %243, %241 : vector<8x78xf32>
    %245 = arith.addf %219, %244 : vector<8x78xf32>
    %c37 = arith.constant 37 : index
    %246 = memref.load %arg7[%c37] : memref<288xf32, #tpu.memory_space<smem>>
    %247 = vector.broadcast %246 : f32 to vector<8x78xf32>
    %248 = arith.mulf %247, %241 : vector<8x78xf32>
    %249 = arith.addf %222, %248 : vector<8x78xf32>
    %c73 = arith.constant 73 : index
    %250 = memref.load %arg7[%c73] : memref<288xf32, #tpu.memory_space<smem>>
    %251 = vector.broadcast %250 : f32 to vector<8x78xf32>
    %252 = arith.mulf %251, %241 : vector<8x78xf32>
    %253 = arith.addf %225, %252 : vector<8x78xf32>
    %c109 = arith.constant 109 : index
    %254 = memref.load %arg7[%c109] : memref<288xf32, #tpu.memory_space<smem>>
    %255 = vector.broadcast %254 : f32 to vector<8x78xf32>
    %256 = arith.mulf %255, %241 : vector<8x78xf32>
    %257 = arith.addf %228, %256 : vector<8x78xf32>
    %c145 = arith.constant 145 : index
    %258 = memref.load %arg7[%c145] : memref<288xf32, #tpu.memory_space<smem>>
    %259 = vector.broadcast %258 : f32 to vector<8x78xf32>
    %260 = arith.mulf %259, %241 : vector<8x78xf32>
    %261 = arith.addf %231, %260 : vector<8x78xf32>
    %c181 = arith.constant 181 : index
    %262 = memref.load %arg7[%c181] : memref<288xf32, #tpu.memory_space<smem>>
    %263 = vector.broadcast %262 : f32 to vector<8x78xf32>
    %264 = arith.mulf %263, %241 : vector<8x78xf32>
    %265 = arith.addf %234, %264 : vector<8x78xf32>
    %c217 = arith.constant 217 : index
    %266 = memref.load %arg7[%c217] : memref<288xf32, #tpu.memory_space<smem>>
    %267 = vector.broadcast %266 : f32 to vector<8x78xf32>
    %268 = arith.mulf %267, %241 : vector<8x78xf32>
    %269 = arith.addf %237, %268 : vector<8x78xf32>
    %c253 = arith.constant 253 : index
    %270 = memref.load %arg7[%c253] : memref<288xf32, #tpu.memory_space<smem>>
    %271 = vector.broadcast %270 : f32 to vector<8x78xf32>
    %272 = arith.mulf %271, %241 : vector<8x78xf32>
    %273 = arith.addf %240, %272 : vector<8x78xf32>
    %274 = vector.extract_strided_slice %212 {offsets = [0, 2], sizes = [8, 78], strides = [1, 1]} : vector<8x128xf32> to vector<8x78xf32>
    %c2_16 = arith.constant 2 : index
    %275 = memref.load %arg7[%c2_16] : memref<288xf32, #tpu.memory_space<smem>>
    %276 = vector.broadcast %275 : f32 to vector<8x78xf32>
    %277 = arith.mulf %276, %274 : vector<8x78xf32>
    %278 = arith.addf %245, %277 : vector<8x78xf32>
    %c38 = arith.constant 38 : index
    %279 = memref.load %arg7[%c38] : memref<288xf32, #tpu.memory_space<smem>>
    %280 = vector.broadcast %279 : f32 to vector<8x78xf32>
    %281 = arith.mulf %280, %274 : vector<8x78xf32>
    %282 = arith.addf %249, %281 : vector<8x78xf32>
    %c74 = arith.constant 74 : index
    %283 = memref.load %arg7[%c74] : memref<288xf32, #tpu.memory_space<smem>>
    %284 = vector.broadcast %283 : f32 to vector<8x78xf32>
    %285 = arith.mulf %284, %274 : vector<8x78xf32>
    %286 = arith.addf %253, %285 : vector<8x78xf32>
    %c110 = arith.constant 110 : index
    %287 = memref.load %arg7[%c110] : memref<288xf32, #tpu.memory_space<smem>>
    %288 = vector.broadcast %287 : f32 to vector<8x78xf32>
    %289 = arith.mulf %288, %274 : vector<8x78xf32>
    %290 = arith.addf %257, %289 : vector<8x78xf32>
    %c146 = arith.constant 146 : index
    %291 = memref.load %arg7[%c146] : memref<288xf32, #tpu.memory_space<smem>>
    %292 = vector.broadcast %291 : f32 to vector<8x78xf32>
    %293 = arith.mulf %292, %274 : vector<8x78xf32>
    %294 = arith.addf %261, %293 : vector<8x78xf32>
    %c182 = arith.constant 182 : index
    %295 = memref.load %arg7[%c182] : memref<288xf32, #tpu.memory_space<smem>>
    %296 = vector.broadcast %295 : f32 to vector<8x78xf32>
    %297 = arith.mulf %296, %274 : vector<8x78xf32>
    %298 = arith.addf %265, %297 : vector<8x78xf32>
    %c218 = arith.constant 218 : index
    %299 = memref.load %arg7[%c218] : memref<288xf32, #tpu.memory_space<smem>>
    %300 = vector.broadcast %299 : f32 to vector<8x78xf32>
    %301 = arith.mulf %300, %274 : vector<8x78xf32>
    %302 = arith.addf %269, %301 : vector<8x78xf32>
    %c254 = arith.constant 254 : index
    %303 = memref.load %arg7[%c254] : memref<288xf32, #tpu.memory_space<smem>>
    %304 = vector.broadcast %303 : f32 to vector<8x78xf32>
    %305 = arith.mulf %304, %274 : vector<8x78xf32>
    %306 = arith.addf %273, %305 : vector<8x78xf32>
    %307 = vector.extract_strided_slice %212 {offsets = [0, 10], sizes = [8, 78], strides = [1, 1]} : vector<8x128xf32> to vector<8x78xf32>
    %c3_17 = arith.constant 3 : index
    %308 = memref.load %arg7[%c3_17] : memref<288xf32, #tpu.memory_space<smem>>
    %309 = vector.broadcast %308 : f32 to vector<8x78xf32>
    %310 = arith.mulf %309, %307 : vector<8x78xf32>
    %311 = arith.addf %278, %310 : vector<8x78xf32>
    %c39 = arith.constant 39 : index
    %312 = memref.load %arg7[%c39] : memref<288xf32, #tpu.memory_space<smem>>
    %313 = vector.broadcast %312 : f32 to vector<8x78xf32>
    %314 = arith.mulf %313, %307 : vector<8x78xf32>
    %315 = arith.addf %282, %314 : vector<8x78xf32>
    %c75 = arith.constant 75 : index
    %316 = memref.load %arg7[%c75] : memref<288xf32, #tpu.memory_space<smem>>
    %317 = vector.broadcast %316 : f32 to vector<8x78xf32>
    %318 = arith.mulf %317, %307 : vector<8x78xf32>
    %319 = arith.addf %286, %318 : vector<8x78xf32>
    %c111 = arith.constant 111 : index
    %320 = memref.load %arg7[%c111] : memref<288xf32, #tpu.memory_space<smem>>
    %321 = vector.broadcast %320 : f32 to vector<8x78xf32>
    %322 = arith.mulf %321, %307 : vector<8x78xf32>
    %323 = arith.addf %290, %322 : vector<8x78xf32>
    %c147 = arith.constant 147 : index
    %324 = memref.load %arg7[%c147] : memref<288xf32, #tpu.memory_space<smem>>
    %325 = vector.broadcast %324 : f32 to vector<8x78xf32>
    %326 = arith.mulf %325, %307 : vector<8x78xf32>
    %327 = arith.addf %294, %326 : vector<8x78xf32>
    %c183 = arith.constant 183 : index
    %328 = memref.load %arg7[%c183] : memref<288xf32, #tpu.memory_space<smem>>
    %329 = vector.broadcast %328 : f32 to vector<8x78xf32>
    %330 = arith.mulf %329, %307 : vector<8x78xf32>
    %331 = arith.addf %298, %330 : vector<8x78xf32>
    %c219 = arith.constant 219 : index
    %332 = memref.load %arg7[%c219] : memref<288xf32, #tpu.memory_space<smem>>
    %333 = vector.broadcast %332 : f32 to vector<8x78xf32>
    %334 = arith.mulf %333, %307 : vector<8x78xf32>
    %335 = arith.addf %302, %334 : vector<8x78xf32>
    %c255 = arith.constant 255 : index
    %336 = memref.load %arg7[%c255] : memref<288xf32, #tpu.memory_space<smem>>
    %337 = vector.broadcast %336 : f32 to vector<8x78xf32>
    %338 = arith.mulf %337, %307 : vector<8x78xf32>
    %339 = arith.addf %306, %338 : vector<8x78xf32>
    %340 = vector.extract_strided_slice %212 {offsets = [0, 11], sizes = [8, 78], strides = [1, 1]} : vector<8x128xf32> to vector<8x78xf32>
    %c4_18 = arith.constant 4 : index
    %341 = memref.load %arg7[%c4_18] : memref<288xf32, #tpu.memory_space<smem>>
    %342 = vector.broadcast %341 : f32 to vector<8x78xf32>
    %343 = arith.mulf %342, %340 : vector<8x78xf32>
    %344 = arith.addf %311, %343 : vector<8x78xf32>
    %c40 = arith.constant 40 : index
    %345 = memref.load %arg7[%c40] : memref<288xf32, #tpu.memory_space<smem>>
    %346 = vector.broadcast %345 : f32 to vector<8x78xf32>
    %347 = arith.mulf %346, %340 : vector<8x78xf32>
    %348 = arith.addf %315, %347 : vector<8x78xf32>
    %c76 = arith.constant 76 : index
    %349 = memref.load %arg7[%c76] : memref<288xf32, #tpu.memory_space<smem>>
    %350 = vector.broadcast %349 : f32 to vector<8x78xf32>
    %351 = arith.mulf %350, %340 : vector<8x78xf32>
    %352 = arith.addf %319, %351 : vector<8x78xf32>
    %c112 = arith.constant 112 : index
    %353 = memref.load %arg7[%c112] : memref<288xf32, #tpu.memory_space<smem>>
    %354 = vector.broadcast %353 : f32 to vector<8x78xf32>
    %355 = arith.mulf %354, %340 : vector<8x78xf32>
    %356 = arith.addf %323, %355 : vector<8x78xf32>
    %c148 = arith.constant 148 : index
    %357 = memref.load %arg7[%c148] : memref<288xf32, #tpu.memory_space<smem>>
    %358 = vector.broadcast %357 : f32 to vector<8x78xf32>
    %359 = arith.mulf %358, %340 : vector<8x78xf32>
    %360 = arith.addf %327, %359 : vector<8x78xf32>
    %c184 = arith.constant 184 : index
    %361 = memref.load %arg7[%c184] : memref<288xf32, #tpu.memory_space<smem>>
    %362 = vector.broadcast %361 : f32 to vector<8x78xf32>
    %363 = arith.mulf %362, %340 : vector<8x78xf32>
    %364 = arith.addf %331, %363 : vector<8x78xf32>
    %c220 = arith.constant 220 : index
    %365 = memref.load %arg7[%c220] : memref<288xf32, #tpu.memory_space<smem>>
    %366 = vector.broadcast %365 : f32 to vector<8x78xf32>
    %367 = arith.mulf %366, %340 : vector<8x78xf32>
    %368 = arith.addf %335, %367 : vector<8x78xf32>
    %c256 = arith.constant 256 : index
    %369 = memref.load %arg7[%c256] : memref<288xf32, #tpu.memory_space<smem>>
    %370 = vector.broadcast %369 : f32 to vector<8x78xf32>
    %371 = arith.mulf %370, %340 : vector<8x78xf32>
    %372 = arith.addf %339, %371 : vector<8x78xf32>
    %373 = vector.extract_strided_slice %212 {offsets = [0, 12], sizes = [8, 78], strides = [1, 1]} : vector<8x128xf32> to vector<8x78xf32>
    %c5_19 = arith.constant 5 : index
    %374 = memref.load %arg7[%c5_19] : memref<288xf32, #tpu.memory_space<smem>>
    %375 = vector.broadcast %374 : f32 to vector<8x78xf32>
    %376 = arith.mulf %375, %373 : vector<8x78xf32>
    %377 = arith.addf %344, %376 : vector<8x78xf32>
    %c41 = arith.constant 41 : index
    %378 = memref.load %arg7[%c41] : memref<288xf32, #tpu.memory_space<smem>>
    %379 = vector.broadcast %378 : f32 to vector<8x78xf32>
    %380 = arith.mulf %379, %373 : vector<8x78xf32>
    %381 = arith.addf %348, %380 : vector<8x78xf32>
    %c77 = arith.constant 77 : index
    %382 = memref.load %arg7[%c77] : memref<288xf32, #tpu.memory_space<smem>>
    %383 = vector.broadcast %382 : f32 to vector<8x78xf32>
    %384 = arith.mulf %383, %373 : vector<8x78xf32>
    %385 = arith.addf %352, %384 : vector<8x78xf32>
    %c113 = arith.constant 113 : index
    %386 = memref.load %arg7[%c113] : memref<288xf32, #tpu.memory_space<smem>>
    %387 = vector.broadcast %386 : f32 to vector<8x78xf32>
    %388 = arith.mulf %387, %373 : vector<8x78xf32>
    %389 = arith.addf %356, %388 : vector<8x78xf32>
    %c149 = arith.constant 149 : index
    %390 = memref.load %arg7[%c149] : memref<288xf32, #tpu.memory_space<smem>>
    %391 = vector.broadcast %390 : f32 to vector<8x78xf32>
    %392 = arith.mulf %391, %373 : vector<8x78xf32>
    %393 = arith.addf %360, %392 : vector<8x78xf32>
    %c185 = arith.constant 185 : index
    %394 = memref.load %arg7[%c185] : memref<288xf32, #tpu.memory_space<smem>>
    %395 = vector.broadcast %394 : f32 to vector<8x78xf32>
    %396 = arith.mulf %395, %373 : vector<8x78xf32>
    %397 = arith.addf %364, %396 : vector<8x78xf32>
    %c221 = arith.constant 221 : index
    %398 = memref.load %arg7[%c221] : memref<288xf32, #tpu.memory_space<smem>>
    %399 = vector.broadcast %398 : f32 to vector<8x78xf32>
    %400 = arith.mulf %399, %373 : vector<8x78xf32>
    %401 = arith.addf %368, %400 : vector<8x78xf32>
    %c257 = arith.constant 257 : index
    %402 = memref.load %arg7[%c257] : memref<288xf32, #tpu.memory_space<smem>>
    %403 = vector.broadcast %402 : f32 to vector<8x78xf32>
    %404 = arith.mulf %403, %373 : vector<8x78xf32>
    %405 = arith.addf %372, %404 : vector<8x78xf32>
    %406 = vector.extract_strided_slice %212 {offsets = [0, 20], sizes = [8, 78], strides = [1, 1]} : vector<8x128xf32> to vector<8x78xf32>
    %c6_20 = arith.constant 6 : index
    %407 = memref.load %arg7[%c6_20] : memref<288xf32, #tpu.memory_space<smem>>
    %408 = vector.broadcast %407 : f32 to vector<8x78xf32>
    %409 = arith.mulf %408, %406 : vector<8x78xf32>
    %410 = arith.addf %377, %409 : vector<8x78xf32>
    %c42 = arith.constant 42 : index
    %411 = memref.load %arg7[%c42] : memref<288xf32, #tpu.memory_space<smem>>
    %412 = vector.broadcast %411 : f32 to vector<8x78xf32>
    %413 = arith.mulf %412, %406 : vector<8x78xf32>
    %414 = arith.addf %381, %413 : vector<8x78xf32>
    %c78 = arith.constant 78 : index
    %415 = memref.load %arg7[%c78] : memref<288xf32, #tpu.memory_space<smem>>
    %416 = vector.broadcast %415 : f32 to vector<8x78xf32>
    %417 = arith.mulf %416, %406 : vector<8x78xf32>
    %418 = arith.addf %385, %417 : vector<8x78xf32>
    %c114 = arith.constant 114 : index
    %419 = memref.load %arg7[%c114] : memref<288xf32, #tpu.memory_space<smem>>
    %420 = vector.broadcast %419 : f32 to vector<8x78xf32>
    %421 = arith.mulf %420, %406 : vector<8x78xf32>
    %422 = arith.addf %389, %421 : vector<8x78xf32>
    %c150 = arith.constant 150 : index
    %423 = memref.load %arg7[%c150] : memref<288xf32, #tpu.memory_space<smem>>
    %424 = vector.broadcast %423 : f32 to vector<8x78xf32>
    %425 = arith.mulf %424, %406 : vector<8x78xf32>
    %426 = arith.addf %393, %425 : vector<8x78xf32>
    %c186 = arith.constant 186 : index
    %427 = memref.load %arg7[%c186] : memref<288xf32, #tpu.memory_space<smem>>
    %428 = vector.broadcast %427 : f32 to vector<8x78xf32>
    %429 = arith.mulf %428, %406 : vector<8x78xf32>
    %430 = arith.addf %397, %429 : vector<8x78xf32>
    %c222 = arith.constant 222 : index
    %431 = memref.load %arg7[%c222] : memref<288xf32, #tpu.memory_space<smem>>
    %432 = vector.broadcast %431 : f32 to vector<8x78xf32>
    %433 = arith.mulf %432, %406 : vector<8x78xf32>
    %434 = arith.addf %401, %433 : vector<8x78xf32>
    %c258 = arith.constant 258 : index
    %435 = memref.load %arg7[%c258] : memref<288xf32, #tpu.memory_space<smem>>
    %436 = vector.broadcast %435 : f32 to vector<8x78xf32>
    %437 = arith.mulf %436, %406 : vector<8x78xf32>
    %438 = arith.addf %405, %437 : vector<8x78xf32>
    %439 = vector.extract_strided_slice %212 {offsets = [0, 21], sizes = [8, 78], strides = [1, 1]} : vector<8x128xf32> to vector<8x78xf32>
    %c7_21 = arith.constant 7 : index
    %440 = memref.load %arg7[%c7_21] : memref<288xf32, #tpu.memory_space<smem>>
    %441 = vector.broadcast %440 : f32 to vector<8x78xf32>
    %442 = arith.mulf %441, %439 : vector<8x78xf32>
    %443 = arith.addf %410, %442 : vector<8x78xf32>
    %c43 = arith.constant 43 : index
    %444 = memref.load %arg7[%c43] : memref<288xf32, #tpu.memory_space<smem>>
    %445 = vector.broadcast %444 : f32 to vector<8x78xf32>
    %446 = arith.mulf %445, %439 : vector<8x78xf32>
    %447 = arith.addf %414, %446 : vector<8x78xf32>
    %c79 = arith.constant 79 : index
    %448 = memref.load %arg7[%c79] : memref<288xf32, #tpu.memory_space<smem>>
    %449 = vector.broadcast %448 : f32 to vector<8x78xf32>
    %450 = arith.mulf %449, %439 : vector<8x78xf32>
    %451 = arith.addf %418, %450 : vector<8x78xf32>
    %c115 = arith.constant 115 : index
    %452 = memref.load %arg7[%c115] : memref<288xf32, #tpu.memory_space<smem>>
    %453 = vector.broadcast %452 : f32 to vector<8x78xf32>
    %454 = arith.mulf %453, %439 : vector<8x78xf32>
    %455 = arith.addf %422, %454 : vector<8x78xf32>
    %c151 = arith.constant 151 : index
    %456 = memref.load %arg7[%c151] : memref<288xf32, #tpu.memory_space<smem>>
    %457 = vector.broadcast %456 : f32 to vector<8x78xf32>
    %458 = arith.mulf %457, %439 : vector<8x78xf32>
    %459 = arith.addf %426, %458 : vector<8x78xf32>
    %c187 = arith.constant 187 : index
    %460 = memref.load %arg7[%c187] : memref<288xf32, #tpu.memory_space<smem>>
    %461 = vector.broadcast %460 : f32 to vector<8x78xf32>
    %462 = arith.mulf %461, %439 : vector<8x78xf32>
    %463 = arith.addf %430, %462 : vector<8x78xf32>
    %c223 = arith.constant 223 : index
    %464 = memref.load %arg7[%c223] : memref<288xf32, #tpu.memory_space<smem>>
    %465 = vector.broadcast %464 : f32 to vector<8x78xf32>
    %466 = arith.mulf %465, %439 : vector<8x78xf32>
    %467 = arith.addf %434, %466 : vector<8x78xf32>
    %c259 = arith.constant 259 : index
    %468 = memref.load %arg7[%c259] : memref<288xf32, #tpu.memory_space<smem>>
    %469 = vector.broadcast %468 : f32 to vector<8x78xf32>
    %470 = arith.mulf %469, %439 : vector<8x78xf32>
    %471 = arith.addf %438, %470 : vector<8x78xf32>
    %472 = vector.extract_strided_slice %212 {offsets = [0, 22], sizes = [8, 78], strides = [1, 1]} : vector<8x128xf32> to vector<8x78xf32>
    %c8_22 = arith.constant 8 : index
    %473 = memref.load %arg7[%c8_22] : memref<288xf32, #tpu.memory_space<smem>>
    %474 = vector.broadcast %473 : f32 to vector<8x78xf32>
    %475 = arith.mulf %474, %472 : vector<8x78xf32>
    %476 = arith.addf %443, %475 : vector<8x78xf32>
    %c44 = arith.constant 44 : index
    %477 = memref.load %arg7[%c44] : memref<288xf32, #tpu.memory_space<smem>>
    %478 = vector.broadcast %477 : f32 to vector<8x78xf32>
    %479 = arith.mulf %478, %472 : vector<8x78xf32>
    %480 = arith.addf %447, %479 : vector<8x78xf32>
    %c80 = arith.constant 80 : index
    %481 = memref.load %arg7[%c80] : memref<288xf32, #tpu.memory_space<smem>>
    %482 = vector.broadcast %481 : f32 to vector<8x78xf32>
    %483 = arith.mulf %482, %472 : vector<8x78xf32>
    %484 = arith.addf %451, %483 : vector<8x78xf32>
    %c116 = arith.constant 116 : index
    %485 = memref.load %arg7[%c116] : memref<288xf32, #tpu.memory_space<smem>>
    %486 = vector.broadcast %485 : f32 to vector<8x78xf32>
    %487 = arith.mulf %486, %472 : vector<8x78xf32>
    %488 = arith.addf %455, %487 : vector<8x78xf32>
    %c152 = arith.constant 152 : index
    %489 = memref.load %arg7[%c152] : memref<288xf32, #tpu.memory_space<smem>>
    %490 = vector.broadcast %489 : f32 to vector<8x78xf32>
    %491 = arith.mulf %490, %472 : vector<8x78xf32>
    %492 = arith.addf %459, %491 : vector<8x78xf32>
    %c188 = arith.constant 188 : index
    %493 = memref.load %arg7[%c188] : memref<288xf32, #tpu.memory_space<smem>>
    %494 = vector.broadcast %493 : f32 to vector<8x78xf32>
    %495 = arith.mulf %494, %472 : vector<8x78xf32>
    %496 = arith.addf %463, %495 : vector<8x78xf32>
    %c224 = arith.constant 224 : index
    %497 = memref.load %arg7[%c224] : memref<288xf32, #tpu.memory_space<smem>>
    %498 = vector.broadcast %497 : f32 to vector<8x78xf32>
    %499 = arith.mulf %498, %472 : vector<8x78xf32>
    %500 = arith.addf %467, %499 : vector<8x78xf32>
    %c260 = arith.constant 260 : index
    %501 = memref.load %arg7[%c260] : memref<288xf32, #tpu.memory_space<smem>>
    %502 = vector.broadcast %501 : f32 to vector<8x78xf32>
    %503 = arith.mulf %502, %472 : vector<8x78xf32>
    %504 = arith.addf %471, %503 : vector<8x78xf32>
    %505 = vector.extract_strided_slice %213 {offsets = [0, 0], sizes = [8, 78], strides = [1, 1]} : vector<8x128xf32> to vector<8x78xf32>
    %c9_23 = arith.constant 9 : index
    %506 = memref.load %arg7[%c9_23] : memref<288xf32, #tpu.memory_space<smem>>
    %507 = vector.broadcast %506 : f32 to vector<8x78xf32>
    %508 = arith.mulf %507, %505 : vector<8x78xf32>
    %509 = arith.addf %476, %508 : vector<8x78xf32>
    %c45 = arith.constant 45 : index
    %510 = memref.load %arg7[%c45] : memref<288xf32, #tpu.memory_space<smem>>
    %511 = vector.broadcast %510 : f32 to vector<8x78xf32>
    %512 = arith.mulf %511, %505 : vector<8x78xf32>
    %513 = arith.addf %480, %512 : vector<8x78xf32>
    %c81 = arith.constant 81 : index
    %514 = memref.load %arg7[%c81] : memref<288xf32, #tpu.memory_space<smem>>
    %515 = vector.broadcast %514 : f32 to vector<8x78xf32>
    %516 = arith.mulf %515, %505 : vector<8x78xf32>
    %517 = arith.addf %484, %516 : vector<8x78xf32>
    %c117 = arith.constant 117 : index
    %518 = memref.load %arg7[%c117] : memref<288xf32, #tpu.memory_space<smem>>
    %519 = vector.broadcast %518 : f32 to vector<8x78xf32>
    %520 = arith.mulf %519, %505 : vector<8x78xf32>
    %521 = arith.addf %488, %520 : vector<8x78xf32>
    %c153 = arith.constant 153 : index
    %522 = memref.load %arg7[%c153] : memref<288xf32, #tpu.memory_space<smem>>
    %523 = vector.broadcast %522 : f32 to vector<8x78xf32>
    %524 = arith.mulf %523, %505 : vector<8x78xf32>
    %525 = arith.addf %492, %524 : vector<8x78xf32>
    %c189 = arith.constant 189 : index
    %526 = memref.load %arg7[%c189] : memref<288xf32, #tpu.memory_space<smem>>
    %527 = vector.broadcast %526 : f32 to vector<8x78xf32>
    %528 = arith.mulf %527, %505 : vector<8x78xf32>
    %529 = arith.addf %496, %528 : vector<8x78xf32>
    %c225 = arith.constant 225 : index
    %530 = memref.load %arg7[%c225] : memref<288xf32, #tpu.memory_space<smem>>
    %531 = vector.broadcast %530 : f32 to vector<8x78xf32>
    %532 = arith.mulf %531, %505 : vector<8x78xf32>
    %533 = arith.addf %500, %532 : vector<8x78xf32>
    %c261 = arith.constant 261 : index
    %534 = memref.load %arg7[%c261] : memref<288xf32, #tpu.memory_space<smem>>
    %535 = vector.broadcast %534 : f32 to vector<8x78xf32>
    %536 = arith.mulf %535, %505 : vector<8x78xf32>
    %537 = arith.addf %504, %536 : vector<8x78xf32>
    %538 = vector.extract_strided_slice %213 {offsets = [0, 1], sizes = [8, 78], strides = [1, 1]} : vector<8x128xf32> to vector<8x78xf32>
    %c10_24 = arith.constant 10 : index
    %539 = memref.load %arg7[%c10_24] : memref<288xf32, #tpu.memory_space<smem>>
    %540 = vector.broadcast %539 : f32 to vector<8x78xf32>
    %541 = arith.mulf %540, %538 : vector<8x78xf32>
    %542 = arith.addf %509, %541 : vector<8x78xf32>
    %c46 = arith.constant 46 : index
    %543 = memref.load %arg7[%c46] : memref<288xf32, #tpu.memory_space<smem>>
    %544 = vector.broadcast %543 : f32 to vector<8x78xf32>
    %545 = arith.mulf %544, %538 : vector<8x78xf32>
    %546 = arith.addf %513, %545 : vector<8x78xf32>
    %c82 = arith.constant 82 : index
    %547 = memref.load %arg7[%c82] : memref<288xf32, #tpu.memory_space<smem>>
    %548 = vector.broadcast %547 : f32 to vector<8x78xf32>
    %549 = arith.mulf %548, %538 : vector<8x78xf32>
    %550 = arith.addf %517, %549 : vector<8x78xf32>
    %c118 = arith.constant 118 : index
    %551 = memref.load %arg7[%c118] : memref<288xf32, #tpu.memory_space<smem>>
    %552 = vector.broadcast %551 : f32 to vector<8x78xf32>
    %553 = arith.mulf %552, %538 : vector<8x78xf32>
    %554 = arith.addf %521, %553 : vector<8x78xf32>
    %c154 = arith.constant 154 : index
    %555 = memref.load %arg7[%c154] : memref<288xf32, #tpu.memory_space<smem>>
    %556 = vector.broadcast %555 : f32 to vector<8x78xf32>
    %557 = arith.mulf %556, %538 : vector<8x78xf32>
    %558 = arith.addf %525, %557 : vector<8x78xf32>
    %c190 = arith.constant 190 : index
    %559 = memref.load %arg7[%c190] : memref<288xf32, #tpu.memory_space<smem>>
    %560 = vector.broadcast %559 : f32 to vector<8x78xf32>
    %561 = arith.mulf %560, %538 : vector<8x78xf32>
    %562 = arith.addf %529, %561 : vector<8x78xf32>
    %c226 = arith.constant 226 : index
    %563 = memref.load %arg7[%c226] : memref<288xf32, #tpu.memory_space<smem>>
    %564 = vector.broadcast %563 : f32 to vector<8x78xf32>
    %565 = arith.mulf %564, %538 : vector<8x78xf32>
    %566 = arith.addf %533, %565 : vector<8x78xf32>
    %c262 = arith.constant 262 : index
    %567 = memref.load %arg7[%c262] : memref<288xf32, #tpu.memory_space<smem>>
    %568 = vector.broadcast %567 : f32 to vector<8x78xf32>
    %569 = arith.mulf %568, %538 : vector<8x78xf32>
    %570 = arith.addf %537, %569 : vector<8x78xf32>
    %571 = vector.extract_strided_slice %213 {offsets = [0, 2], sizes = [8, 78], strides = [1, 1]} : vector<8x128xf32> to vector<8x78xf32>
    %c11_25 = arith.constant 11 : index
    %572 = memref.load %arg7[%c11_25] : memref<288xf32, #tpu.memory_space<smem>>
    %573 = vector.broadcast %572 : f32 to vector<8x78xf32>
    %574 = arith.mulf %573, %571 : vector<8x78xf32>
    %575 = arith.addf %542, %574 : vector<8x78xf32>
    %c47 = arith.constant 47 : index
    %576 = memref.load %arg7[%c47] : memref<288xf32, #tpu.memory_space<smem>>
    %577 = vector.broadcast %576 : f32 to vector<8x78xf32>
    %578 = arith.mulf %577, %571 : vector<8x78xf32>
    %579 = arith.addf %546, %578 : vector<8x78xf32>
    %c83 = arith.constant 83 : index
    %580 = memref.load %arg7[%c83] : memref<288xf32, #tpu.memory_space<smem>>
    %581 = vector.broadcast %580 : f32 to vector<8x78xf32>
    %582 = arith.mulf %581, %571 : vector<8x78xf32>
    %583 = arith.addf %550, %582 : vector<8x78xf32>
    %c119 = arith.constant 119 : index
    %584 = memref.load %arg7[%c119] : memref<288xf32, #tpu.memory_space<smem>>
    %585 = vector.broadcast %584 : f32 to vector<8x78xf32>
    %586 = arith.mulf %585, %571 : vector<8x78xf32>
    %587 = arith.addf %554, %586 : vector<8x78xf32>
    %c155 = arith.constant 155 : index
    %588 = memref.load %arg7[%c155] : memref<288xf32, #tpu.memory_space<smem>>
    %589 = vector.broadcast %588 : f32 to vector<8x78xf32>
    %590 = arith.mulf %589, %571 : vector<8x78xf32>
    %591 = arith.addf %558, %590 : vector<8x78xf32>
    %c191 = arith.constant 191 : index
    %592 = memref.load %arg7[%c191] : memref<288xf32, #tpu.memory_space<smem>>
    %593 = vector.broadcast %592 : f32 to vector<8x78xf32>
    %594 = arith.mulf %593, %571 : vector<8x78xf32>
    %595 = arith.addf %562, %594 : vector<8x78xf32>
    %c227 = arith.constant 227 : index
    %596 = memref.load %arg7[%c227] : memref<288xf32, #tpu.memory_space<smem>>
    %597 = vector.broadcast %596 : f32 to vector<8x78xf32>
    %598 = arith.mulf %597, %571 : vector<8x78xf32>
    %599 = arith.addf %566, %598 : vector<8x78xf32>
    %c263 = arith.constant 263 : index
    %600 = memref.load %arg7[%c263] : memref<288xf32, #tpu.memory_space<smem>>
    %601 = vector.broadcast %600 : f32 to vector<8x78xf32>
    %602 = arith.mulf %601, %571 : vector<8x78xf32>
    %603 = arith.addf %570, %602 : vector<8x78xf32>
    %604 = vector.extract_strided_slice %213 {offsets = [0, 10], sizes = [8, 78], strides = [1, 1]} : vector<8x128xf32> to vector<8x78xf32>
    %c12_26 = arith.constant 12 : index
    %605 = memref.load %arg7[%c12_26] : memref<288xf32, #tpu.memory_space<smem>>
    %606 = vector.broadcast %605 : f32 to vector<8x78xf32>
    %607 = arith.mulf %606, %604 : vector<8x78xf32>
    %608 = arith.addf %575, %607 : vector<8x78xf32>
    %c48 = arith.constant 48 : index
    %609 = memref.load %arg7[%c48] : memref<288xf32, #tpu.memory_space<smem>>
    %610 = vector.broadcast %609 : f32 to vector<8x78xf32>
    %611 = arith.mulf %610, %604 : vector<8x78xf32>
    %612 = arith.addf %579, %611 : vector<8x78xf32>
    %c84 = arith.constant 84 : index
    %613 = memref.load %arg7[%c84] : memref<288xf32, #tpu.memory_space<smem>>
    %614 = vector.broadcast %613 : f32 to vector<8x78xf32>
    %615 = arith.mulf %614, %604 : vector<8x78xf32>
    %616 = arith.addf %583, %615 : vector<8x78xf32>
    %c120 = arith.constant 120 : index
    %617 = memref.load %arg7[%c120] : memref<288xf32, #tpu.memory_space<smem>>
    %618 = vector.broadcast %617 : f32 to vector<8x78xf32>
    %619 = arith.mulf %618, %604 : vector<8x78xf32>
    %620 = arith.addf %587, %619 : vector<8x78xf32>
    %c156 = arith.constant 156 : index
    %621 = memref.load %arg7[%c156] : memref<288xf32, #tpu.memory_space<smem>>
    %622 = vector.broadcast %621 : f32 to vector<8x78xf32>
    %623 = arith.mulf %622, %604 : vector<8x78xf32>
    %624 = arith.addf %591, %623 : vector<8x78xf32>
    %c192 = arith.constant 192 : index
    %625 = memref.load %arg7[%c192] : memref<288xf32, #tpu.memory_space<smem>>
    %626 = vector.broadcast %625 : f32 to vector<8x78xf32>
    %627 = arith.mulf %626, %604 : vector<8x78xf32>
    %628 = arith.addf %595, %627 : vector<8x78xf32>
    %c228 = arith.constant 228 : index
    %629 = memref.load %arg7[%c228] : memref<288xf32, #tpu.memory_space<smem>>
    %630 = vector.broadcast %629 : f32 to vector<8x78xf32>
    %631 = arith.mulf %630, %604 : vector<8x78xf32>
    %632 = arith.addf %599, %631 : vector<8x78xf32>
    %c264 = arith.constant 264 : index
    %633 = memref.load %arg7[%c264] : memref<288xf32, #tpu.memory_space<smem>>
    %634 = vector.broadcast %633 : f32 to vector<8x78xf32>
    %635 = arith.mulf %634, %604 : vector<8x78xf32>
    %636 = arith.addf %603, %635 : vector<8x78xf32>
    %637 = vector.extract_strided_slice %213 {offsets = [0, 11], sizes = [8, 78], strides = [1, 1]} : vector<8x128xf32> to vector<8x78xf32>
    %c13_27 = arith.constant 13 : index
    %638 = memref.load %arg7[%c13_27] : memref<288xf32, #tpu.memory_space<smem>>
    %639 = vector.broadcast %638 : f32 to vector<8x78xf32>
    %640 = arith.mulf %639, %637 : vector<8x78xf32>
    %641 = arith.addf %608, %640 : vector<8x78xf32>
    %c49 = arith.constant 49 : index
    %642 = memref.load %arg7[%c49] : memref<288xf32, #tpu.memory_space<smem>>
    %643 = vector.broadcast %642 : f32 to vector<8x78xf32>
    %644 = arith.mulf %643, %637 : vector<8x78xf32>
    %645 = arith.addf %612, %644 : vector<8x78xf32>
    %c85 = arith.constant 85 : index
    %646 = memref.load %arg7[%c85] : memref<288xf32, #tpu.memory_space<smem>>
    %647 = vector.broadcast %646 : f32 to vector<8x78xf32>
    %648 = arith.mulf %647, %637 : vector<8x78xf32>
    %649 = arith.addf %616, %648 : vector<8x78xf32>
    %c121 = arith.constant 121 : index
    %650 = memref.load %arg7[%c121] : memref<288xf32, #tpu.memory_space<smem>>
    %651 = vector.broadcast %650 : f32 to vector<8x78xf32>
    %652 = arith.mulf %651, %637 : vector<8x78xf32>
    %653 = arith.addf %620, %652 : vector<8x78xf32>
    %c157 = arith.constant 157 : index
    %654 = memref.load %arg7[%c157] : memref<288xf32, #tpu.memory_space<smem>>
    %655 = vector.broadcast %654 : f32 to vector<8x78xf32>
    %656 = arith.mulf %655, %637 : vector<8x78xf32>
    %657 = arith.addf %624, %656 : vector<8x78xf32>
    %c193 = arith.constant 193 : index
    %658 = memref.load %arg7[%c193] : memref<288xf32, #tpu.memory_space<smem>>
    %659 = vector.broadcast %658 : f32 to vector<8x78xf32>
    %660 = arith.mulf %659, %637 : vector<8x78xf32>
    %661 = arith.addf %628, %660 : vector<8x78xf32>
    %c229 = arith.constant 229 : index
    %662 = memref.load %arg7[%c229] : memref<288xf32, #tpu.memory_space<smem>>
    %663 = vector.broadcast %662 : f32 to vector<8x78xf32>
    %664 = arith.mulf %663, %637 : vector<8x78xf32>
    %665 = arith.addf %632, %664 : vector<8x78xf32>
    %c265 = arith.constant 265 : index
    %666 = memref.load %arg7[%c265] : memref<288xf32, #tpu.memory_space<smem>>
    %667 = vector.broadcast %666 : f32 to vector<8x78xf32>
    %668 = arith.mulf %667, %637 : vector<8x78xf32>
    %669 = arith.addf %636, %668 : vector<8x78xf32>
    %670 = vector.extract_strided_slice %213 {offsets = [0, 12], sizes = [8, 78], strides = [1, 1]} : vector<8x128xf32> to vector<8x78xf32>
    %c14_28 = arith.constant 14 : index
    %671 = memref.load %arg7[%c14_28] : memref<288xf32, #tpu.memory_space<smem>>
    %672 = vector.broadcast %671 : f32 to vector<8x78xf32>
    %673 = arith.mulf %672, %670 : vector<8x78xf32>
    %674 = arith.addf %641, %673 : vector<8x78xf32>
    %c50 = arith.constant 50 : index
    %675 = memref.load %arg7[%c50] : memref<288xf32, #tpu.memory_space<smem>>
    %676 = vector.broadcast %675 : f32 to vector<8x78xf32>
    %677 = arith.mulf %676, %670 : vector<8x78xf32>
    %678 = arith.addf %645, %677 : vector<8x78xf32>
    %c86 = arith.constant 86 : index
    %679 = memref.load %arg7[%c86] : memref<288xf32, #tpu.memory_space<smem>>
    %680 = vector.broadcast %679 : f32 to vector<8x78xf32>
    %681 = arith.mulf %680, %670 : vector<8x78xf32>
    %682 = arith.addf %649, %681 : vector<8x78xf32>
    %c122 = arith.constant 122 : index
    %683 = memref.load %arg7[%c122] : memref<288xf32, #tpu.memory_space<smem>>
    %684 = vector.broadcast %683 : f32 to vector<8x78xf32>
    %685 = arith.mulf %684, %670 : vector<8x78xf32>
    %686 = arith.addf %653, %685 : vector<8x78xf32>
    %c158 = arith.constant 158 : index
    %687 = memref.load %arg7[%c158] : memref<288xf32, #tpu.memory_space<smem>>
    %688 = vector.broadcast %687 : f32 to vector<8x78xf32>
    %689 = arith.mulf %688, %670 : vector<8x78xf32>
    %690 = arith.addf %657, %689 : vector<8x78xf32>
    %c194 = arith.constant 194 : index
    %691 = memref.load %arg7[%c194] : memref<288xf32, #tpu.memory_space<smem>>
    %692 = vector.broadcast %691 : f32 to vector<8x78xf32>
    %693 = arith.mulf %692, %670 : vector<8x78xf32>
    %694 = arith.addf %661, %693 : vector<8x78xf32>
    %c230 = arith.constant 230 : index
    %695 = memref.load %arg7[%c230] : memref<288xf32, #tpu.memory_space<smem>>
    %696 = vector.broadcast %695 : f32 to vector<8x78xf32>
    %697 = arith.mulf %696, %670 : vector<8x78xf32>
    %698 = arith.addf %665, %697 : vector<8x78xf32>
    %c266 = arith.constant 266 : index
    %699 = memref.load %arg7[%c266] : memref<288xf32, #tpu.memory_space<smem>>
    %700 = vector.broadcast %699 : f32 to vector<8x78xf32>
    %701 = arith.mulf %700, %670 : vector<8x78xf32>
    %702 = arith.addf %669, %701 : vector<8x78xf32>
    %703 = vector.extract_strided_slice %213 {offsets = [0, 20], sizes = [8, 78], strides = [1, 1]} : vector<8x128xf32> to vector<8x78xf32>
    %c15_29 = arith.constant 15 : index
    %704 = memref.load %arg7[%c15_29] : memref<288xf32, #tpu.memory_space<smem>>
    %705 = vector.broadcast %704 : f32 to vector<8x78xf32>
    %706 = arith.mulf %705, %703 : vector<8x78xf32>
    %707 = arith.addf %674, %706 : vector<8x78xf32>
    %c51 = arith.constant 51 : index
    %708 = memref.load %arg7[%c51] : memref<288xf32, #tpu.memory_space<smem>>
    %709 = vector.broadcast %708 : f32 to vector<8x78xf32>
    %710 = arith.mulf %709, %703 : vector<8x78xf32>
    %711 = arith.addf %678, %710 : vector<8x78xf32>
    %c87 = arith.constant 87 : index
    %712 = memref.load %arg7[%c87] : memref<288xf32, #tpu.memory_space<smem>>
    %713 = vector.broadcast %712 : f32 to vector<8x78xf32>
    %714 = arith.mulf %713, %703 : vector<8x78xf32>
    %715 = arith.addf %682, %714 : vector<8x78xf32>
    %c123 = arith.constant 123 : index
    %716 = memref.load %arg7[%c123] : memref<288xf32, #tpu.memory_space<smem>>
    %717 = vector.broadcast %716 : f32 to vector<8x78xf32>
    %718 = arith.mulf %717, %703 : vector<8x78xf32>
    %719 = arith.addf %686, %718 : vector<8x78xf32>
    %c159 = arith.constant 159 : index
    %720 = memref.load %arg7[%c159] : memref<288xf32, #tpu.memory_space<smem>>
    %721 = vector.broadcast %720 : f32 to vector<8x78xf32>
    %722 = arith.mulf %721, %703 : vector<8x78xf32>
    %723 = arith.addf %690, %722 : vector<8x78xf32>
    %c195 = arith.constant 195 : index
    %724 = memref.load %arg7[%c195] : memref<288xf32, #tpu.memory_space<smem>>
    %725 = vector.broadcast %724 : f32 to vector<8x78xf32>
    %726 = arith.mulf %725, %703 : vector<8x78xf32>
    %727 = arith.addf %694, %726 : vector<8x78xf32>
    %c231 = arith.constant 231 : index
    %728 = memref.load %arg7[%c231] : memref<288xf32, #tpu.memory_space<smem>>
    %729 = vector.broadcast %728 : f32 to vector<8x78xf32>
    %730 = arith.mulf %729, %703 : vector<8x78xf32>
    %731 = arith.addf %698, %730 : vector<8x78xf32>
    %c267 = arith.constant 267 : index
    %732 = memref.load %arg7[%c267] : memref<288xf32, #tpu.memory_space<smem>>
    %733 = vector.broadcast %732 : f32 to vector<8x78xf32>
    %734 = arith.mulf %733, %703 : vector<8x78xf32>
    %735 = arith.addf %702, %734 : vector<8x78xf32>
    %736 = vector.extract_strided_slice %213 {offsets = [0, 21], sizes = [8, 78], strides = [1, 1]} : vector<8x128xf32> to vector<8x78xf32>
    %c16_30 = arith.constant 16 : index
    %737 = memref.load %arg7[%c16_30] : memref<288xf32, #tpu.memory_space<smem>>
    %738 = vector.broadcast %737 : f32 to vector<8x78xf32>
    %739 = arith.mulf %738, %736 : vector<8x78xf32>
    %740 = arith.addf %707, %739 : vector<8x78xf32>
    %c52 = arith.constant 52 : index
    %741 = memref.load %arg7[%c52] : memref<288xf32, #tpu.memory_space<smem>>
    %742 = vector.broadcast %741 : f32 to vector<8x78xf32>
    %743 = arith.mulf %742, %736 : vector<8x78xf32>
    %744 = arith.addf %711, %743 : vector<8x78xf32>
    %c88 = arith.constant 88 : index
    %745 = memref.load %arg7[%c88] : memref<288xf32, #tpu.memory_space<smem>>
    %746 = vector.broadcast %745 : f32 to vector<8x78xf32>
    %747 = arith.mulf %746, %736 : vector<8x78xf32>
    %748 = arith.addf %715, %747 : vector<8x78xf32>
    %c124 = arith.constant 124 : index
    %749 = memref.load %arg7[%c124] : memref<288xf32, #tpu.memory_space<smem>>
    %750 = vector.broadcast %749 : f32 to vector<8x78xf32>
    %751 = arith.mulf %750, %736 : vector<8x78xf32>
    %752 = arith.addf %719, %751 : vector<8x78xf32>
    %c160 = arith.constant 160 : index
    %753 = memref.load %arg7[%c160] : memref<288xf32, #tpu.memory_space<smem>>
    %754 = vector.broadcast %753 : f32 to vector<8x78xf32>
    %755 = arith.mulf %754, %736 : vector<8x78xf32>
    %756 = arith.addf %723, %755 : vector<8x78xf32>
    %c196 = arith.constant 196 : index
    %757 = memref.load %arg7[%c196] : memref<288xf32, #tpu.memory_space<smem>>
    %758 = vector.broadcast %757 : f32 to vector<8x78xf32>
    %759 = arith.mulf %758, %736 : vector<8x78xf32>
    %760 = arith.addf %727, %759 : vector<8x78xf32>
    %c232 = arith.constant 232 : index
    %761 = memref.load %arg7[%c232] : memref<288xf32, #tpu.memory_space<smem>>
    %762 = vector.broadcast %761 : f32 to vector<8x78xf32>
    %763 = arith.mulf %762, %736 : vector<8x78xf32>
    %764 = arith.addf %731, %763 : vector<8x78xf32>
    %c268 = arith.constant 268 : index
    %765 = memref.load %arg7[%c268] : memref<288xf32, #tpu.memory_space<smem>>
    %766 = vector.broadcast %765 : f32 to vector<8x78xf32>
    %767 = arith.mulf %766, %736 : vector<8x78xf32>
    %768 = arith.addf %735, %767 : vector<8x78xf32>
    %769 = vector.extract_strided_slice %213 {offsets = [0, 22], sizes = [8, 78], strides = [1, 1]} : vector<8x128xf32> to vector<8x78xf32>
    %c17_31 = arith.constant 17 : index
    %770 = memref.load %arg7[%c17_31] : memref<288xf32, #tpu.memory_space<smem>>
    %771 = vector.broadcast %770 : f32 to vector<8x78xf32>
    %772 = arith.mulf %771, %769 : vector<8x78xf32>
    %773 = arith.addf %740, %772 : vector<8x78xf32>
    %c53 = arith.constant 53 : index
    %774 = memref.load %arg7[%c53] : memref<288xf32, #tpu.memory_space<smem>>
    %775 = vector.broadcast %774 : f32 to vector<8x78xf32>
    %776 = arith.mulf %775, %769 : vector<8x78xf32>
    %777 = arith.addf %744, %776 : vector<8x78xf32>
    %c89 = arith.constant 89 : index
    %778 = memref.load %arg7[%c89] : memref<288xf32, #tpu.memory_space<smem>>
    %779 = vector.broadcast %778 : f32 to vector<8x78xf32>
    %780 = arith.mulf %779, %769 : vector<8x78xf32>
    %781 = arith.addf %748, %780 : vector<8x78xf32>
    %c125 = arith.constant 125 : index
    %782 = memref.load %arg7[%c125] : memref<288xf32, #tpu.memory_space<smem>>
    %783 = vector.broadcast %782 : f32 to vector<8x78xf32>
    %784 = arith.mulf %783, %769 : vector<8x78xf32>
    %785 = arith.addf %752, %784 : vector<8x78xf32>
    %c161 = arith.constant 161 : index
    %786 = memref.load %arg7[%c161] : memref<288xf32, #tpu.memory_space<smem>>
    %787 = vector.broadcast %786 : f32 to vector<8x78xf32>
    %788 = arith.mulf %787, %769 : vector<8x78xf32>
    %789 = arith.addf %756, %788 : vector<8x78xf32>
    %c197 = arith.constant 197 : index
    %790 = memref.load %arg7[%c197] : memref<288xf32, #tpu.memory_space<smem>>
    %791 = vector.broadcast %790 : f32 to vector<8x78xf32>
    %792 = arith.mulf %791, %769 : vector<8x78xf32>
    %793 = arith.addf %760, %792 : vector<8x78xf32>
    %c233 = arith.constant 233 : index
    %794 = memref.load %arg7[%c233] : memref<288xf32, #tpu.memory_space<smem>>
    %795 = vector.broadcast %794 : f32 to vector<8x78xf32>
    %796 = arith.mulf %795, %769 : vector<8x78xf32>
    %797 = arith.addf %764, %796 : vector<8x78xf32>
    %c269 = arith.constant 269 : index
    %798 = memref.load %arg7[%c269] : memref<288xf32, #tpu.memory_space<smem>>
    %799 = vector.broadcast %798 : f32 to vector<8x78xf32>
    %800 = arith.mulf %799, %769 : vector<8x78xf32>
    %801 = arith.addf %768, %800 : vector<8x78xf32>
    %802 = vector.extract_strided_slice %214 {offsets = [0, 0], sizes = [8, 78], strides = [1, 1]} : vector<8x128xf32> to vector<8x78xf32>
    %c18_32 = arith.constant 18 : index
    %803 = memref.load %arg7[%c18_32] : memref<288xf32, #tpu.memory_space<smem>>
    %804 = vector.broadcast %803 : f32 to vector<8x78xf32>
    %805 = arith.mulf %804, %802 : vector<8x78xf32>
    %806 = arith.addf %773, %805 : vector<8x78xf32>
    %c54 = arith.constant 54 : index
    %807 = memref.load %arg7[%c54] : memref<288xf32, #tpu.memory_space<smem>>
    %808 = vector.broadcast %807 : f32 to vector<8x78xf32>
    %809 = arith.mulf %808, %802 : vector<8x78xf32>
    %810 = arith.addf %777, %809 : vector<8x78xf32>
    %c90 = arith.constant 90 : index
    %811 = memref.load %arg7[%c90] : memref<288xf32, #tpu.memory_space<smem>>
    %812 = vector.broadcast %811 : f32 to vector<8x78xf32>
    %813 = arith.mulf %812, %802 : vector<8x78xf32>
    %814 = arith.addf %781, %813 : vector<8x78xf32>
    %c126 = arith.constant 126 : index
    %815 = memref.load %arg7[%c126] : memref<288xf32, #tpu.memory_space<smem>>
    %816 = vector.broadcast %815 : f32 to vector<8x78xf32>
    %817 = arith.mulf %816, %802 : vector<8x78xf32>
    %818 = arith.addf %785, %817 : vector<8x78xf32>
    %c162 = arith.constant 162 : index
    %819 = memref.load %arg7[%c162] : memref<288xf32, #tpu.memory_space<smem>>
    %820 = vector.broadcast %819 : f32 to vector<8x78xf32>
    %821 = arith.mulf %820, %802 : vector<8x78xf32>
    %822 = arith.addf %789, %821 : vector<8x78xf32>
    %c198 = arith.constant 198 : index
    %823 = memref.load %arg7[%c198] : memref<288xf32, #tpu.memory_space<smem>>
    %824 = vector.broadcast %823 : f32 to vector<8x78xf32>
    %825 = arith.mulf %824, %802 : vector<8x78xf32>
    %826 = arith.addf %793, %825 : vector<8x78xf32>
    %c234 = arith.constant 234 : index
    %827 = memref.load %arg7[%c234] : memref<288xf32, #tpu.memory_space<smem>>
    %828 = vector.broadcast %827 : f32 to vector<8x78xf32>
    %829 = arith.mulf %828, %802 : vector<8x78xf32>
    %830 = arith.addf %797, %829 : vector<8x78xf32>
    %c270 = arith.constant 270 : index
    %831 = memref.load %arg7[%c270] : memref<288xf32, #tpu.memory_space<smem>>
    %832 = vector.broadcast %831 : f32 to vector<8x78xf32>
    %833 = arith.mulf %832, %802 : vector<8x78xf32>
    %834 = arith.addf %801, %833 : vector<8x78xf32>
    %835 = vector.extract_strided_slice %214 {offsets = [0, 1], sizes = [8, 78], strides = [1, 1]} : vector<8x128xf32> to vector<8x78xf32>
    %c19_33 = arith.constant 19 : index
    %836 = memref.load %arg7[%c19_33] : memref<288xf32, #tpu.memory_space<smem>>
    %837 = vector.broadcast %836 : f32 to vector<8x78xf32>
    %838 = arith.mulf %837, %835 : vector<8x78xf32>
    %839 = arith.addf %806, %838 : vector<8x78xf32>
    %c55 = arith.constant 55 : index
    %840 = memref.load %arg7[%c55] : memref<288xf32, #tpu.memory_space<smem>>
    %841 = vector.broadcast %840 : f32 to vector<8x78xf32>
    %842 = arith.mulf %841, %835 : vector<8x78xf32>
    %843 = arith.addf %810, %842 : vector<8x78xf32>
    %c91 = arith.constant 91 : index
    %844 = memref.load %arg7[%c91] : memref<288xf32, #tpu.memory_space<smem>>
    %845 = vector.broadcast %844 : f32 to vector<8x78xf32>
    %846 = arith.mulf %845, %835 : vector<8x78xf32>
    %847 = arith.addf %814, %846 : vector<8x78xf32>
    %c127 = arith.constant 127 : index
    %848 = memref.load %arg7[%c127] : memref<288xf32, #tpu.memory_space<smem>>
    %849 = vector.broadcast %848 : f32 to vector<8x78xf32>
    %850 = arith.mulf %849, %835 : vector<8x78xf32>
    %851 = arith.addf %818, %850 : vector<8x78xf32>
    %c163 = arith.constant 163 : index
    %852 = memref.load %arg7[%c163] : memref<288xf32, #tpu.memory_space<smem>>
    %853 = vector.broadcast %852 : f32 to vector<8x78xf32>
    %854 = arith.mulf %853, %835 : vector<8x78xf32>
    %855 = arith.addf %822, %854 : vector<8x78xf32>
    %c199 = arith.constant 199 : index
    %856 = memref.load %arg7[%c199] : memref<288xf32, #tpu.memory_space<smem>>
    %857 = vector.broadcast %856 : f32 to vector<8x78xf32>
    %858 = arith.mulf %857, %835 : vector<8x78xf32>
    %859 = arith.addf %826, %858 : vector<8x78xf32>
    %c235 = arith.constant 235 : index
    %860 = memref.load %arg7[%c235] : memref<288xf32, #tpu.memory_space<smem>>
    %861 = vector.broadcast %860 : f32 to vector<8x78xf32>
    %862 = arith.mulf %861, %835 : vector<8x78xf32>
    %863 = arith.addf %830, %862 : vector<8x78xf32>
    %c271 = arith.constant 271 : index
    %864 = memref.load %arg7[%c271] : memref<288xf32, #tpu.memory_space<smem>>
    %865 = vector.broadcast %864 : f32 to vector<8x78xf32>
    %866 = arith.mulf %865, %835 : vector<8x78xf32>
    %867 = arith.addf %834, %866 : vector<8x78xf32>
    %868 = vector.extract_strided_slice %214 {offsets = [0, 2], sizes = [8, 78], strides = [1, 1]} : vector<8x128xf32> to vector<8x78xf32>
    %c20_34 = arith.constant 20 : index
    %869 = memref.load %arg7[%c20_34] : memref<288xf32, #tpu.memory_space<smem>>
    %870 = vector.broadcast %869 : f32 to vector<8x78xf32>
    %871 = arith.mulf %870, %868 : vector<8x78xf32>
    %872 = arith.addf %839, %871 : vector<8x78xf32>
    %c56 = arith.constant 56 : index
    %873 = memref.load %arg7[%c56] : memref<288xf32, #tpu.memory_space<smem>>
    %874 = vector.broadcast %873 : f32 to vector<8x78xf32>
    %875 = arith.mulf %874, %868 : vector<8x78xf32>
    %876 = arith.addf %843, %875 : vector<8x78xf32>
    %c92 = arith.constant 92 : index
    %877 = memref.load %arg7[%c92] : memref<288xf32, #tpu.memory_space<smem>>
    %878 = vector.broadcast %877 : f32 to vector<8x78xf32>
    %879 = arith.mulf %878, %868 : vector<8x78xf32>
    %880 = arith.addf %847, %879 : vector<8x78xf32>
    %c128 = arith.constant 128 : index
    %881 = memref.load %arg7[%c128] : memref<288xf32, #tpu.memory_space<smem>>
    %882 = vector.broadcast %881 : f32 to vector<8x78xf32>
    %883 = arith.mulf %882, %868 : vector<8x78xf32>
    %884 = arith.addf %851, %883 : vector<8x78xf32>
    %c164 = arith.constant 164 : index
    %885 = memref.load %arg7[%c164] : memref<288xf32, #tpu.memory_space<smem>>
    %886 = vector.broadcast %885 : f32 to vector<8x78xf32>
    %887 = arith.mulf %886, %868 : vector<8x78xf32>
    %888 = arith.addf %855, %887 : vector<8x78xf32>
    %c200 = arith.constant 200 : index
    %889 = memref.load %arg7[%c200] : memref<288xf32, #tpu.memory_space<smem>>
    %890 = vector.broadcast %889 : f32 to vector<8x78xf32>
    %891 = arith.mulf %890, %868 : vector<8x78xf32>
    %892 = arith.addf %859, %891 : vector<8x78xf32>
    %c236 = arith.constant 236 : index
    %893 = memref.load %arg7[%c236] : memref<288xf32, #tpu.memory_space<smem>>
    %894 = vector.broadcast %893 : f32 to vector<8x78xf32>
    %895 = arith.mulf %894, %868 : vector<8x78xf32>
    %896 = arith.addf %863, %895 : vector<8x78xf32>
    %c272 = arith.constant 272 : index
    %897 = memref.load %arg7[%c272] : memref<288xf32, #tpu.memory_space<smem>>
    %898 = vector.broadcast %897 : f32 to vector<8x78xf32>
    %899 = arith.mulf %898, %868 : vector<8x78xf32>
    %900 = arith.addf %867, %899 : vector<8x78xf32>
    %901 = vector.extract_strided_slice %214 {offsets = [0, 10], sizes = [8, 78], strides = [1, 1]} : vector<8x128xf32> to vector<8x78xf32>
    %c21_35 = arith.constant 21 : index
    %902 = memref.load %arg7[%c21_35] : memref<288xf32, #tpu.memory_space<smem>>
    %903 = vector.broadcast %902 : f32 to vector<8x78xf32>
    %904 = arith.mulf %903, %901 : vector<8x78xf32>
    %905 = arith.addf %872, %904 : vector<8x78xf32>
    %c57 = arith.constant 57 : index
    %906 = memref.load %arg7[%c57] : memref<288xf32, #tpu.memory_space<smem>>
    %907 = vector.broadcast %906 : f32 to vector<8x78xf32>
    %908 = arith.mulf %907, %901 : vector<8x78xf32>
    %909 = arith.addf %876, %908 : vector<8x78xf32>
    %c93 = arith.constant 93 : index
    %910 = memref.load %arg7[%c93] : memref<288xf32, #tpu.memory_space<smem>>
    %911 = vector.broadcast %910 : f32 to vector<8x78xf32>
    %912 = arith.mulf %911, %901 : vector<8x78xf32>
    %913 = arith.addf %880, %912 : vector<8x78xf32>
    %c129 = arith.constant 129 : index
    %914 = memref.load %arg7[%c129] : memref<288xf32, #tpu.memory_space<smem>>
    %915 = vector.broadcast %914 : f32 to vector<8x78xf32>
    %916 = arith.mulf %915, %901 : vector<8x78xf32>
    %917 = arith.addf %884, %916 : vector<8x78xf32>
    %c165 = arith.constant 165 : index
    %918 = memref.load %arg7[%c165] : memref<288xf32, #tpu.memory_space<smem>>
    %919 = vector.broadcast %918 : f32 to vector<8x78xf32>
    %920 = arith.mulf %919, %901 : vector<8x78xf32>
    %921 = arith.addf %888, %920 : vector<8x78xf32>
    %c201 = arith.constant 201 : index
    %922 = memref.load %arg7[%c201] : memref<288xf32, #tpu.memory_space<smem>>
    %923 = vector.broadcast %922 : f32 to vector<8x78xf32>
    %924 = arith.mulf %923, %901 : vector<8x78xf32>
    %925 = arith.addf %892, %924 : vector<8x78xf32>
    %c237 = arith.constant 237 : index
    %926 = memref.load %arg7[%c237] : memref<288xf32, #tpu.memory_space<smem>>
    %927 = vector.broadcast %926 : f32 to vector<8x78xf32>
    %928 = arith.mulf %927, %901 : vector<8x78xf32>
    %929 = arith.addf %896, %928 : vector<8x78xf32>
    %c273 = arith.constant 273 : index
    %930 = memref.load %arg7[%c273] : memref<288xf32, #tpu.memory_space<smem>>
    %931 = vector.broadcast %930 : f32 to vector<8x78xf32>
    %932 = arith.mulf %931, %901 : vector<8x78xf32>
    %933 = arith.addf %900, %932 : vector<8x78xf32>
    %934 = vector.extract_strided_slice %214 {offsets = [0, 11], sizes = [8, 78], strides = [1, 1]} : vector<8x128xf32> to vector<8x78xf32>
    %c22_36 = arith.constant 22 : index
    %935 = memref.load %arg7[%c22_36] : memref<288xf32, #tpu.memory_space<smem>>
    %936 = vector.broadcast %935 : f32 to vector<8x78xf32>
    %937 = arith.mulf %936, %934 : vector<8x78xf32>
    %938 = arith.addf %905, %937 : vector<8x78xf32>
    %c58 = arith.constant 58 : index
    %939 = memref.load %arg7[%c58] : memref<288xf32, #tpu.memory_space<smem>>
    %940 = vector.broadcast %939 : f32 to vector<8x78xf32>
    %941 = arith.mulf %940, %934 : vector<8x78xf32>
    %942 = arith.addf %909, %941 : vector<8x78xf32>
    %c94 = arith.constant 94 : index
    %943 = memref.load %arg7[%c94] : memref<288xf32, #tpu.memory_space<smem>>
    %944 = vector.broadcast %943 : f32 to vector<8x78xf32>
    %945 = arith.mulf %944, %934 : vector<8x78xf32>
    %946 = arith.addf %913, %945 : vector<8x78xf32>
    %c130 = arith.constant 130 : index
    %947 = memref.load %arg7[%c130] : memref<288xf32, #tpu.memory_space<smem>>
    %948 = vector.broadcast %947 : f32 to vector<8x78xf32>
    %949 = arith.mulf %948, %934 : vector<8x78xf32>
    %950 = arith.addf %917, %949 : vector<8x78xf32>
    %c166 = arith.constant 166 : index
    %951 = memref.load %arg7[%c166] : memref<288xf32, #tpu.memory_space<smem>>
    %952 = vector.broadcast %951 : f32 to vector<8x78xf32>
    %953 = arith.mulf %952, %934 : vector<8x78xf32>
    %954 = arith.addf %921, %953 : vector<8x78xf32>
    %c202 = arith.constant 202 : index
    %955 = memref.load %arg7[%c202] : memref<288xf32, #tpu.memory_space<smem>>
    %956 = vector.broadcast %955 : f32 to vector<8x78xf32>
    %957 = arith.mulf %956, %934 : vector<8x78xf32>
    %958 = arith.addf %925, %957 : vector<8x78xf32>
    %c238 = arith.constant 238 : index
    %959 = memref.load %arg7[%c238] : memref<288xf32, #tpu.memory_space<smem>>
    %960 = vector.broadcast %959 : f32 to vector<8x78xf32>
    %961 = arith.mulf %960, %934 : vector<8x78xf32>
    %962 = arith.addf %929, %961 : vector<8x78xf32>
    %c274 = arith.constant 274 : index
    %963 = memref.load %arg7[%c274] : memref<288xf32, #tpu.memory_space<smem>>
    %964 = vector.broadcast %963 : f32 to vector<8x78xf32>
    %965 = arith.mulf %964, %934 : vector<8x78xf32>
    %966 = arith.addf %933, %965 : vector<8x78xf32>
    %967 = vector.extract_strided_slice %214 {offsets = [0, 12], sizes = [8, 78], strides = [1, 1]} : vector<8x128xf32> to vector<8x78xf32>
    %c23_37 = arith.constant 23 : index
    %968 = memref.load %arg7[%c23_37] : memref<288xf32, #tpu.memory_space<smem>>
    %969 = vector.broadcast %968 : f32 to vector<8x78xf32>
    %970 = arith.mulf %969, %967 : vector<8x78xf32>
    %971 = arith.addf %938, %970 : vector<8x78xf32>
    %c59 = arith.constant 59 : index
    %972 = memref.load %arg7[%c59] : memref<288xf32, #tpu.memory_space<smem>>
    %973 = vector.broadcast %972 : f32 to vector<8x78xf32>
    %974 = arith.mulf %973, %967 : vector<8x78xf32>
    %975 = arith.addf %942, %974 : vector<8x78xf32>
    %c95 = arith.constant 95 : index
    %976 = memref.load %arg7[%c95] : memref<288xf32, #tpu.memory_space<smem>>
    %977 = vector.broadcast %976 : f32 to vector<8x78xf32>
    %978 = arith.mulf %977, %967 : vector<8x78xf32>
    %979 = arith.addf %946, %978 : vector<8x78xf32>
    %c131 = arith.constant 131 : index
    %980 = memref.load %arg7[%c131] : memref<288xf32, #tpu.memory_space<smem>>
    %981 = vector.broadcast %980 : f32 to vector<8x78xf32>
    %982 = arith.mulf %981, %967 : vector<8x78xf32>
    %983 = arith.addf %950, %982 : vector<8x78xf32>
    %c167 = arith.constant 167 : index
    %984 = memref.load %arg7[%c167] : memref<288xf32, #tpu.memory_space<smem>>
    %985 = vector.broadcast %984 : f32 to vector<8x78xf32>
    %986 = arith.mulf %985, %967 : vector<8x78xf32>
    %987 = arith.addf %954, %986 : vector<8x78xf32>
    %c203 = arith.constant 203 : index
    %988 = memref.load %arg7[%c203] : memref<288xf32, #tpu.memory_space<smem>>
    %989 = vector.broadcast %988 : f32 to vector<8x78xf32>
    %990 = arith.mulf %989, %967 : vector<8x78xf32>
    %991 = arith.addf %958, %990 : vector<8x78xf32>
    %c239 = arith.constant 239 : index
    %992 = memref.load %arg7[%c239] : memref<288xf32, #tpu.memory_space<smem>>
    %993 = vector.broadcast %992 : f32 to vector<8x78xf32>
    %994 = arith.mulf %993, %967 : vector<8x78xf32>
    %995 = arith.addf %962, %994 : vector<8x78xf32>
    %c275 = arith.constant 275 : index
    %996 = memref.load %arg7[%c275] : memref<288xf32, #tpu.memory_space<smem>>
    %997 = vector.broadcast %996 : f32 to vector<8x78xf32>
    %998 = arith.mulf %997, %967 : vector<8x78xf32>
    %999 = arith.addf %966, %998 : vector<8x78xf32>
    %1000 = vector.extract_strided_slice %214 {offsets = [0, 20], sizes = [8, 78], strides = [1, 1]} : vector<8x128xf32> to vector<8x78xf32>
    %c24_38 = arith.constant 24 : index
    %1001 = memref.load %arg7[%c24_38] : memref<288xf32, #tpu.memory_space<smem>>
    %1002 = vector.broadcast %1001 : f32 to vector<8x78xf32>
    %1003 = arith.mulf %1002, %1000 : vector<8x78xf32>
    %1004 = arith.addf %971, %1003 : vector<8x78xf32>
    %c60 = arith.constant 60 : index
    %1005 = memref.load %arg7[%c60] : memref<288xf32, #tpu.memory_space<smem>>
    %1006 = vector.broadcast %1005 : f32 to vector<8x78xf32>
    %1007 = arith.mulf %1006, %1000 : vector<8x78xf32>
    %1008 = arith.addf %975, %1007 : vector<8x78xf32>
    %c96 = arith.constant 96 : index
    %1009 = memref.load %arg7[%c96] : memref<288xf32, #tpu.memory_space<smem>>
    %1010 = vector.broadcast %1009 : f32 to vector<8x78xf32>
    %1011 = arith.mulf %1010, %1000 : vector<8x78xf32>
    %1012 = arith.addf %979, %1011 : vector<8x78xf32>
    %c132 = arith.constant 132 : index
    %1013 = memref.load %arg7[%c132] : memref<288xf32, #tpu.memory_space<smem>>
    %1014 = vector.broadcast %1013 : f32 to vector<8x78xf32>
    %1015 = arith.mulf %1014, %1000 : vector<8x78xf32>
    %1016 = arith.addf %983, %1015 : vector<8x78xf32>
    %c168 = arith.constant 168 : index
    %1017 = memref.load %arg7[%c168] : memref<288xf32, #tpu.memory_space<smem>>
    %1018 = vector.broadcast %1017 : f32 to vector<8x78xf32>
    %1019 = arith.mulf %1018, %1000 : vector<8x78xf32>
    %1020 = arith.addf %987, %1019 : vector<8x78xf32>
    %c204 = arith.constant 204 : index
    %1021 = memref.load %arg7[%c204] : memref<288xf32, #tpu.memory_space<smem>>
    %1022 = vector.broadcast %1021 : f32 to vector<8x78xf32>
    %1023 = arith.mulf %1022, %1000 : vector<8x78xf32>
    %1024 = arith.addf %991, %1023 : vector<8x78xf32>
    %c240 = arith.constant 240 : index
    %1025 = memref.load %arg7[%c240] : memref<288xf32, #tpu.memory_space<smem>>
    %1026 = vector.broadcast %1025 : f32 to vector<8x78xf32>
    %1027 = arith.mulf %1026, %1000 : vector<8x78xf32>
    %1028 = arith.addf %995, %1027 : vector<8x78xf32>
    %c276 = arith.constant 276 : index
    %1029 = memref.load %arg7[%c276] : memref<288xf32, #tpu.memory_space<smem>>
    %1030 = vector.broadcast %1029 : f32 to vector<8x78xf32>
    %1031 = arith.mulf %1030, %1000 : vector<8x78xf32>
    %1032 = arith.addf %999, %1031 : vector<8x78xf32>
    %1033 = vector.extract_strided_slice %214 {offsets = [0, 21], sizes = [8, 78], strides = [1, 1]} : vector<8x128xf32> to vector<8x78xf32>
    %c25_39 = arith.constant 25 : index
    %1034 = memref.load %arg7[%c25_39] : memref<288xf32, #tpu.memory_space<smem>>
    %1035 = vector.broadcast %1034 : f32 to vector<8x78xf32>
    %1036 = arith.mulf %1035, %1033 : vector<8x78xf32>
    %1037 = arith.addf %1004, %1036 : vector<8x78xf32>
    %c61 = arith.constant 61 : index
    %1038 = memref.load %arg7[%c61] : memref<288xf32, #tpu.memory_space<smem>>
    %1039 = vector.broadcast %1038 : f32 to vector<8x78xf32>
    %1040 = arith.mulf %1039, %1033 : vector<8x78xf32>
    %1041 = arith.addf %1008, %1040 : vector<8x78xf32>
    %c97 = arith.constant 97 : index
    %1042 = memref.load %arg7[%c97] : memref<288xf32, #tpu.memory_space<smem>>
    %1043 = vector.broadcast %1042 : f32 to vector<8x78xf32>
    %1044 = arith.mulf %1043, %1033 : vector<8x78xf32>
    %1045 = arith.addf %1012, %1044 : vector<8x78xf32>
    %c133 = arith.constant 133 : index
    %1046 = memref.load %arg7[%c133] : memref<288xf32, #tpu.memory_space<smem>>
    %1047 = vector.broadcast %1046 : f32 to vector<8x78xf32>
    %1048 = arith.mulf %1047, %1033 : vector<8x78xf32>
    %1049 = arith.addf %1016, %1048 : vector<8x78xf32>
    %c169 = arith.constant 169 : index
    %1050 = memref.load %arg7[%c169] : memref<288xf32, #tpu.memory_space<smem>>
    %1051 = vector.broadcast %1050 : f32 to vector<8x78xf32>
    %1052 = arith.mulf %1051, %1033 : vector<8x78xf32>
    %1053 = arith.addf %1020, %1052 : vector<8x78xf32>
    %c205 = arith.constant 205 : index
    %1054 = memref.load %arg7[%c205] : memref<288xf32, #tpu.memory_space<smem>>
    %1055 = vector.broadcast %1054 : f32 to vector<8x78xf32>
    %1056 = arith.mulf %1055, %1033 : vector<8x78xf32>
    %1057 = arith.addf %1024, %1056 : vector<8x78xf32>
    %c241 = arith.constant 241 : index
    %1058 = memref.load %arg7[%c241] : memref<288xf32, #tpu.memory_space<smem>>
    %1059 = vector.broadcast %1058 : f32 to vector<8x78xf32>
    %1060 = arith.mulf %1059, %1033 : vector<8x78xf32>
    %1061 = arith.addf %1028, %1060 : vector<8x78xf32>
    %c277 = arith.constant 277 : index
    %1062 = memref.load %arg7[%c277] : memref<288xf32, #tpu.memory_space<smem>>
    %1063 = vector.broadcast %1062 : f32 to vector<8x78xf32>
    %1064 = arith.mulf %1063, %1033 : vector<8x78xf32>
    %1065 = arith.addf %1032, %1064 : vector<8x78xf32>
    %1066 = vector.extract_strided_slice %214 {offsets = [0, 22], sizes = [8, 78], strides = [1, 1]} : vector<8x128xf32> to vector<8x78xf32>
    %c26_40 = arith.constant 26 : index
    %1067 = memref.load %arg7[%c26_40] : memref<288xf32, #tpu.memory_space<smem>>
    %1068 = vector.broadcast %1067 : f32 to vector<8x78xf32>
    %1069 = arith.mulf %1068, %1066 : vector<8x78xf32>
    %1070 = arith.addf %1037, %1069 : vector<8x78xf32>
    %c62 = arith.constant 62 : index
    %1071 = memref.load %arg7[%c62] : memref<288xf32, #tpu.memory_space<smem>>
    %1072 = vector.broadcast %1071 : f32 to vector<8x78xf32>
    %1073 = arith.mulf %1072, %1066 : vector<8x78xf32>
    %1074 = arith.addf %1041, %1073 : vector<8x78xf32>
    %c98 = arith.constant 98 : index
    %1075 = memref.load %arg7[%c98] : memref<288xf32, #tpu.memory_space<smem>>
    %1076 = vector.broadcast %1075 : f32 to vector<8x78xf32>
    %1077 = arith.mulf %1076, %1066 : vector<8x78xf32>
    %1078 = arith.addf %1045, %1077 : vector<8x78xf32>
    %c134 = arith.constant 134 : index
    %1079 = memref.load %arg7[%c134] : memref<288xf32, #tpu.memory_space<smem>>
    %1080 = vector.broadcast %1079 : f32 to vector<8x78xf32>
    %1081 = arith.mulf %1080, %1066 : vector<8x78xf32>
    %1082 = arith.addf %1049, %1081 : vector<8x78xf32>
    %c170 = arith.constant 170 : index
    %1083 = memref.load %arg7[%c170] : memref<288xf32, #tpu.memory_space<smem>>
    %1084 = vector.broadcast %1083 : f32 to vector<8x78xf32>
    %1085 = arith.mulf %1084, %1066 : vector<8x78xf32>
    %1086 = arith.addf %1053, %1085 : vector<8x78xf32>
    %c206 = arith.constant 206 : index
    %1087 = memref.load %arg7[%c206] : memref<288xf32, #tpu.memory_space<smem>>
    %1088 = vector.broadcast %1087 : f32 to vector<8x78xf32>
    %1089 = arith.mulf %1088, %1066 : vector<8x78xf32>
    %1090 = arith.addf %1057, %1089 : vector<8x78xf32>
    %c242 = arith.constant 242 : index
    %1091 = memref.load %arg7[%c242] : memref<288xf32, #tpu.memory_space<smem>>
    %1092 = vector.broadcast %1091 : f32 to vector<8x78xf32>
    %1093 = arith.mulf %1092, %1066 : vector<8x78xf32>
    %1094 = arith.addf %1061, %1093 : vector<8x78xf32>
    %c278 = arith.constant 278 : index
    %1095 = memref.load %arg7[%c278] : memref<288xf32, #tpu.memory_space<smem>>
    %1096 = vector.broadcast %1095 : f32 to vector<8x78xf32>
    %1097 = arith.mulf %1096, %1066 : vector<8x78xf32>
    %1098 = arith.addf %1065, %1097 : vector<8x78xf32>
    %1099 = vector.extract_strided_slice %215 {offsets = [0, 0], sizes = [8, 78], strides = [1, 1]} : vector<8x128xf32> to vector<8x78xf32>
    %c27_41 = arith.constant 27 : index
    %1100 = memref.load %arg7[%c27_41] : memref<288xf32, #tpu.memory_space<smem>>
    %1101 = vector.broadcast %1100 : f32 to vector<8x78xf32>
    %1102 = arith.mulf %1101, %1099 : vector<8x78xf32>
    %1103 = arith.addf %1070, %1102 : vector<8x78xf32>
    %c63 = arith.constant 63 : index
    %1104 = memref.load %arg7[%c63] : memref<288xf32, #tpu.memory_space<smem>>
    %1105 = vector.broadcast %1104 : f32 to vector<8x78xf32>
    %1106 = arith.mulf %1105, %1099 : vector<8x78xf32>
    %1107 = arith.addf %1074, %1106 : vector<8x78xf32>
    %c99 = arith.constant 99 : index
    %1108 = memref.load %arg7[%c99] : memref<288xf32, #tpu.memory_space<smem>>
    %1109 = vector.broadcast %1108 : f32 to vector<8x78xf32>
    %1110 = arith.mulf %1109, %1099 : vector<8x78xf32>
    %1111 = arith.addf %1078, %1110 : vector<8x78xf32>
    %c135 = arith.constant 135 : index
    %1112 = memref.load %arg7[%c135] : memref<288xf32, #tpu.memory_space<smem>>
    %1113 = vector.broadcast %1112 : f32 to vector<8x78xf32>
    %1114 = arith.mulf %1113, %1099 : vector<8x78xf32>
    %1115 = arith.addf %1082, %1114 : vector<8x78xf32>
    %c171 = arith.constant 171 : index
    %1116 = memref.load %arg7[%c171] : memref<288xf32, #tpu.memory_space<smem>>
    %1117 = vector.broadcast %1116 : f32 to vector<8x78xf32>
    %1118 = arith.mulf %1117, %1099 : vector<8x78xf32>
    %1119 = arith.addf %1086, %1118 : vector<8x78xf32>
    %c207 = arith.constant 207 : index
    %1120 = memref.load %arg7[%c207] : memref<288xf32, #tpu.memory_space<smem>>
    %1121 = vector.broadcast %1120 : f32 to vector<8x78xf32>
    %1122 = arith.mulf %1121, %1099 : vector<8x78xf32>
    %1123 = arith.addf %1090, %1122 : vector<8x78xf32>
    %c243 = arith.constant 243 : index
    %1124 = memref.load %arg7[%c243] : memref<288xf32, #tpu.memory_space<smem>>
    %1125 = vector.broadcast %1124 : f32 to vector<8x78xf32>
    %1126 = arith.mulf %1125, %1099 : vector<8x78xf32>
    %1127 = arith.addf %1094, %1126 : vector<8x78xf32>
    %c279 = arith.constant 279 : index
    %1128 = memref.load %arg7[%c279] : memref<288xf32, #tpu.memory_space<smem>>
    %1129 = vector.broadcast %1128 : f32 to vector<8x78xf32>
    %1130 = arith.mulf %1129, %1099 : vector<8x78xf32>
    %1131 = arith.addf %1098, %1130 : vector<8x78xf32>
    %1132 = vector.extract_strided_slice %215 {offsets = [0, 1], sizes = [8, 78], strides = [1, 1]} : vector<8x128xf32> to vector<8x78xf32>
    %c28_42 = arith.constant 28 : index
    %1133 = memref.load %arg7[%c28_42] : memref<288xf32, #tpu.memory_space<smem>>
    %1134 = vector.broadcast %1133 : f32 to vector<8x78xf32>
    %1135 = arith.mulf %1134, %1132 : vector<8x78xf32>
    %1136 = arith.addf %1103, %1135 : vector<8x78xf32>
    %c64 = arith.constant 64 : index
    %1137 = memref.load %arg7[%c64] : memref<288xf32, #tpu.memory_space<smem>>
    %1138 = vector.broadcast %1137 : f32 to vector<8x78xf32>
    %1139 = arith.mulf %1138, %1132 : vector<8x78xf32>
    %1140 = arith.addf %1107, %1139 : vector<8x78xf32>
    %c100 = arith.constant 100 : index
    %1141 = memref.load %arg7[%c100] : memref<288xf32, #tpu.memory_space<smem>>
    %1142 = vector.broadcast %1141 : f32 to vector<8x78xf32>
    %1143 = arith.mulf %1142, %1132 : vector<8x78xf32>
    %1144 = arith.addf %1111, %1143 : vector<8x78xf32>
    %c136 = arith.constant 136 : index
    %1145 = memref.load %arg7[%c136] : memref<288xf32, #tpu.memory_space<smem>>
    %1146 = vector.broadcast %1145 : f32 to vector<8x78xf32>
    %1147 = arith.mulf %1146, %1132 : vector<8x78xf32>
    %1148 = arith.addf %1115, %1147 : vector<8x78xf32>
    %c172 = arith.constant 172 : index
    %1149 = memref.load %arg7[%c172] : memref<288xf32, #tpu.memory_space<smem>>
    %1150 = vector.broadcast %1149 : f32 to vector<8x78xf32>
    %1151 = arith.mulf %1150, %1132 : vector<8x78xf32>
    %1152 = arith.addf %1119, %1151 : vector<8x78xf32>
    %c208 = arith.constant 208 : index
    %1153 = memref.load %arg7[%c208] : memref<288xf32, #tpu.memory_space<smem>>
    %1154 = vector.broadcast %1153 : f32 to vector<8x78xf32>
    %1155 = arith.mulf %1154, %1132 : vector<8x78xf32>
    %1156 = arith.addf %1123, %1155 : vector<8x78xf32>
    %c244 = arith.constant 244 : index
    %1157 = memref.load %arg7[%c244] : memref<288xf32, #tpu.memory_space<smem>>
    %1158 = vector.broadcast %1157 : f32 to vector<8x78xf32>
    %1159 = arith.mulf %1158, %1132 : vector<8x78xf32>
    %1160 = arith.addf %1127, %1159 : vector<8x78xf32>
    %c280 = arith.constant 280 : index
    %1161 = memref.load %arg7[%c280] : memref<288xf32, #tpu.memory_space<smem>>
    %1162 = vector.broadcast %1161 : f32 to vector<8x78xf32>
    %1163 = arith.mulf %1162, %1132 : vector<8x78xf32>
    %1164 = arith.addf %1131, %1163 : vector<8x78xf32>
    %1165 = vector.extract_strided_slice %215 {offsets = [0, 2], sizes = [8, 78], strides = [1, 1]} : vector<8x128xf32> to vector<8x78xf32>
    %c29_43 = arith.constant 29 : index
    %1166 = memref.load %arg7[%c29_43] : memref<288xf32, #tpu.memory_space<smem>>
    %1167 = vector.broadcast %1166 : f32 to vector<8x78xf32>
    %1168 = arith.mulf %1167, %1165 : vector<8x78xf32>
    %1169 = arith.addf %1136, %1168 : vector<8x78xf32>
    %c65 = arith.constant 65 : index
    %1170 = memref.load %arg7[%c65] : memref<288xf32, #tpu.memory_space<smem>>
    %1171 = vector.broadcast %1170 : f32 to vector<8x78xf32>
    %1172 = arith.mulf %1171, %1165 : vector<8x78xf32>
    %1173 = arith.addf %1140, %1172 : vector<8x78xf32>
    %c101 = arith.constant 101 : index
    %1174 = memref.load %arg7[%c101] : memref<288xf32, #tpu.memory_space<smem>>
    %1175 = vector.broadcast %1174 : f32 to vector<8x78xf32>
    %1176 = arith.mulf %1175, %1165 : vector<8x78xf32>
    %1177 = arith.addf %1144, %1176 : vector<8x78xf32>
    %c137 = arith.constant 137 : index
    %1178 = memref.load %arg7[%c137] : memref<288xf32, #tpu.memory_space<smem>>
    %1179 = vector.broadcast %1178 : f32 to vector<8x78xf32>
    %1180 = arith.mulf %1179, %1165 : vector<8x78xf32>
    %1181 = arith.addf %1148, %1180 : vector<8x78xf32>
    %c173 = arith.constant 173 : index
    %1182 = memref.load %arg7[%c173] : memref<288xf32, #tpu.memory_space<smem>>
    %1183 = vector.broadcast %1182 : f32 to vector<8x78xf32>
    %1184 = arith.mulf %1183, %1165 : vector<8x78xf32>
    %1185 = arith.addf %1152, %1184 : vector<8x78xf32>
    %c209 = arith.constant 209 : index
    %1186 = memref.load %arg7[%c209] : memref<288xf32, #tpu.memory_space<smem>>
    %1187 = vector.broadcast %1186 : f32 to vector<8x78xf32>
    %1188 = arith.mulf %1187, %1165 : vector<8x78xf32>
    %1189 = arith.addf %1156, %1188 : vector<8x78xf32>
    %c245 = arith.constant 245 : index
    %1190 = memref.load %arg7[%c245] : memref<288xf32, #tpu.memory_space<smem>>
    %1191 = vector.broadcast %1190 : f32 to vector<8x78xf32>
    %1192 = arith.mulf %1191, %1165 : vector<8x78xf32>
    %1193 = arith.addf %1160, %1192 : vector<8x78xf32>
    %c281 = arith.constant 281 : index
    %1194 = memref.load %arg7[%c281] : memref<288xf32, #tpu.memory_space<smem>>
    %1195 = vector.broadcast %1194 : f32 to vector<8x78xf32>
    %1196 = arith.mulf %1195, %1165 : vector<8x78xf32>
    %1197 = arith.addf %1164, %1196 : vector<8x78xf32>
    %1198 = vector.extract_strided_slice %215 {offsets = [0, 10], sizes = [8, 78], strides = [1, 1]} : vector<8x128xf32> to vector<8x78xf32>
    %c30_44 = arith.constant 30 : index
    %1199 = memref.load %arg7[%c30_44] : memref<288xf32, #tpu.memory_space<smem>>
    %1200 = vector.broadcast %1199 : f32 to vector<8x78xf32>
    %1201 = arith.mulf %1200, %1198 : vector<8x78xf32>
    %1202 = arith.addf %1169, %1201 : vector<8x78xf32>
    %c66 = arith.constant 66 : index
    %1203 = memref.load %arg7[%c66] : memref<288xf32, #tpu.memory_space<smem>>
    %1204 = vector.broadcast %1203 : f32 to vector<8x78xf32>
    %1205 = arith.mulf %1204, %1198 : vector<8x78xf32>
    %1206 = arith.addf %1173, %1205 : vector<8x78xf32>
    %c102 = arith.constant 102 : index
    %1207 = memref.load %arg7[%c102] : memref<288xf32, #tpu.memory_space<smem>>
    %1208 = vector.broadcast %1207 : f32 to vector<8x78xf32>
    %1209 = arith.mulf %1208, %1198 : vector<8x78xf32>
    %1210 = arith.addf %1177, %1209 : vector<8x78xf32>
    %c138 = arith.constant 138 : index
    %1211 = memref.load %arg7[%c138] : memref<288xf32, #tpu.memory_space<smem>>
    %1212 = vector.broadcast %1211 : f32 to vector<8x78xf32>
    %1213 = arith.mulf %1212, %1198 : vector<8x78xf32>
    %1214 = arith.addf %1181, %1213 : vector<8x78xf32>
    %c174 = arith.constant 174 : index
    %1215 = memref.load %arg7[%c174] : memref<288xf32, #tpu.memory_space<smem>>
    %1216 = vector.broadcast %1215 : f32 to vector<8x78xf32>
    %1217 = arith.mulf %1216, %1198 : vector<8x78xf32>
    %1218 = arith.addf %1185, %1217 : vector<8x78xf32>
    %c210 = arith.constant 210 : index
    %1219 = memref.load %arg7[%c210] : memref<288xf32, #tpu.memory_space<smem>>
    %1220 = vector.broadcast %1219 : f32 to vector<8x78xf32>
    %1221 = arith.mulf %1220, %1198 : vector<8x78xf32>
    %1222 = arith.addf %1189, %1221 : vector<8x78xf32>
    %c246 = arith.constant 246 : index
    %1223 = memref.load %arg7[%c246] : memref<288xf32, #tpu.memory_space<smem>>
    %1224 = vector.broadcast %1223 : f32 to vector<8x78xf32>
    %1225 = arith.mulf %1224, %1198 : vector<8x78xf32>
    %1226 = arith.addf %1193, %1225 : vector<8x78xf32>
    %c282 = arith.constant 282 : index
    %1227 = memref.load %arg7[%c282] : memref<288xf32, #tpu.memory_space<smem>>
    %1228 = vector.broadcast %1227 : f32 to vector<8x78xf32>
    %1229 = arith.mulf %1228, %1198 : vector<8x78xf32>
    %1230 = arith.addf %1197, %1229 : vector<8x78xf32>
    %1231 = vector.extract_strided_slice %215 {offsets = [0, 11], sizes = [8, 78], strides = [1, 1]} : vector<8x128xf32> to vector<8x78xf32>
    %c31_45 = arith.constant 31 : index
    %1232 = memref.load %arg7[%c31_45] : memref<288xf32, #tpu.memory_space<smem>>
    %1233 = vector.broadcast %1232 : f32 to vector<8x78xf32>
    %1234 = arith.mulf %1233, %1231 : vector<8x78xf32>
    %1235 = arith.addf %1202, %1234 : vector<8x78xf32>
    %c67 = arith.constant 67 : index
    %1236 = memref.load %arg7[%c67] : memref<288xf32, #tpu.memory_space<smem>>
    %1237 = vector.broadcast %1236 : f32 to vector<8x78xf32>
    %1238 = arith.mulf %1237, %1231 : vector<8x78xf32>
    %1239 = arith.addf %1206, %1238 : vector<8x78xf32>
    %c103 = arith.constant 103 : index
    %1240 = memref.load %arg7[%c103] : memref<288xf32, #tpu.memory_space<smem>>
    %1241 = vector.broadcast %1240 : f32 to vector<8x78xf32>
    %1242 = arith.mulf %1241, %1231 : vector<8x78xf32>
    %1243 = arith.addf %1210, %1242 : vector<8x78xf32>
    %c139 = arith.constant 139 : index
    %1244 = memref.load %arg7[%c139] : memref<288xf32, #tpu.memory_space<smem>>
    %1245 = vector.broadcast %1244 : f32 to vector<8x78xf32>
    %1246 = arith.mulf %1245, %1231 : vector<8x78xf32>
    %1247 = arith.addf %1214, %1246 : vector<8x78xf32>
    %c175 = arith.constant 175 : index
    %1248 = memref.load %arg7[%c175] : memref<288xf32, #tpu.memory_space<smem>>
    %1249 = vector.broadcast %1248 : f32 to vector<8x78xf32>
    %1250 = arith.mulf %1249, %1231 : vector<8x78xf32>
    %1251 = arith.addf %1218, %1250 : vector<8x78xf32>
    %c211 = arith.constant 211 : index
    %1252 = memref.load %arg7[%c211] : memref<288xf32, #tpu.memory_space<smem>>
    %1253 = vector.broadcast %1252 : f32 to vector<8x78xf32>
    %1254 = arith.mulf %1253, %1231 : vector<8x78xf32>
    %1255 = arith.addf %1222, %1254 : vector<8x78xf32>
    %c247 = arith.constant 247 : index
    %1256 = memref.load %arg7[%c247] : memref<288xf32, #tpu.memory_space<smem>>
    %1257 = vector.broadcast %1256 : f32 to vector<8x78xf32>
    %1258 = arith.mulf %1257, %1231 : vector<8x78xf32>
    %1259 = arith.addf %1226, %1258 : vector<8x78xf32>
    %c283 = arith.constant 283 : index
    %1260 = memref.load %arg7[%c283] : memref<288xf32, #tpu.memory_space<smem>>
    %1261 = vector.broadcast %1260 : f32 to vector<8x78xf32>
    %1262 = arith.mulf %1261, %1231 : vector<8x78xf32>
    %1263 = arith.addf %1230, %1262 : vector<8x78xf32>
    %1264 = vector.extract_strided_slice %215 {offsets = [0, 12], sizes = [8, 78], strides = [1, 1]} : vector<8x128xf32> to vector<8x78xf32>
    %c32_46 = arith.constant 32 : index
    %1265 = memref.load %arg7[%c32_46] : memref<288xf32, #tpu.memory_space<smem>>
    %1266 = vector.broadcast %1265 : f32 to vector<8x78xf32>
    %1267 = arith.mulf %1266, %1264 : vector<8x78xf32>
    %1268 = arith.addf %1235, %1267 : vector<8x78xf32>
    %c68 = arith.constant 68 : index
    %1269 = memref.load %arg7[%c68] : memref<288xf32, #tpu.memory_space<smem>>
    %1270 = vector.broadcast %1269 : f32 to vector<8x78xf32>
    %1271 = arith.mulf %1270, %1264 : vector<8x78xf32>
    %1272 = arith.addf %1239, %1271 : vector<8x78xf32>
    %c104 = arith.constant 104 : index
    %1273 = memref.load %arg7[%c104] : memref<288xf32, #tpu.memory_space<smem>>
    %1274 = vector.broadcast %1273 : f32 to vector<8x78xf32>
    %1275 = arith.mulf %1274, %1264 : vector<8x78xf32>
    %1276 = arith.addf %1243, %1275 : vector<8x78xf32>
    %c140 = arith.constant 140 : index
    %1277 = memref.load %arg7[%c140] : memref<288xf32, #tpu.memory_space<smem>>
    %1278 = vector.broadcast %1277 : f32 to vector<8x78xf32>
    %1279 = arith.mulf %1278, %1264 : vector<8x78xf32>
    %1280 = arith.addf %1247, %1279 : vector<8x78xf32>
    %c176 = arith.constant 176 : index
    %1281 = memref.load %arg7[%c176] : memref<288xf32, #tpu.memory_space<smem>>
    %1282 = vector.broadcast %1281 : f32 to vector<8x78xf32>
    %1283 = arith.mulf %1282, %1264 : vector<8x78xf32>
    %1284 = arith.addf %1251, %1283 : vector<8x78xf32>
    %c212 = arith.constant 212 : index
    %1285 = memref.load %arg7[%c212] : memref<288xf32, #tpu.memory_space<smem>>
    %1286 = vector.broadcast %1285 : f32 to vector<8x78xf32>
    %1287 = arith.mulf %1286, %1264 : vector<8x78xf32>
    %1288 = arith.addf %1255, %1287 : vector<8x78xf32>
    %c248 = arith.constant 248 : index
    %1289 = memref.load %arg7[%c248] : memref<288xf32, #tpu.memory_space<smem>>
    %1290 = vector.broadcast %1289 : f32 to vector<8x78xf32>
    %1291 = arith.mulf %1290, %1264 : vector<8x78xf32>
    %1292 = arith.addf %1259, %1291 : vector<8x78xf32>
    %c284 = arith.constant 284 : index
    %1293 = memref.load %arg7[%c284] : memref<288xf32, #tpu.memory_space<smem>>
    %1294 = vector.broadcast %1293 : f32 to vector<8x78xf32>
    %1295 = arith.mulf %1294, %1264 : vector<8x78xf32>
    %1296 = arith.addf %1263, %1295 : vector<8x78xf32>
    %1297 = vector.extract_strided_slice %215 {offsets = [0, 20], sizes = [8, 78], strides = [1, 1]} : vector<8x128xf32> to vector<8x78xf32>
    %c33_47 = arith.constant 33 : index
    %1298 = memref.load %arg7[%c33_47] : memref<288xf32, #tpu.memory_space<smem>>
    %1299 = vector.broadcast %1298 : f32 to vector<8x78xf32>
    %1300 = arith.mulf %1299, %1297 : vector<8x78xf32>
    %1301 = arith.addf %1268, %1300 : vector<8x78xf32>
    %c69 = arith.constant 69 : index
    %1302 = memref.load %arg7[%c69] : memref<288xf32, #tpu.memory_space<smem>>
    %1303 = vector.broadcast %1302 : f32 to vector<8x78xf32>
    %1304 = arith.mulf %1303, %1297 : vector<8x78xf32>
    %1305 = arith.addf %1272, %1304 : vector<8x78xf32>
    %c105 = arith.constant 105 : index
    %1306 = memref.load %arg7[%c105] : memref<288xf32, #tpu.memory_space<smem>>
    %1307 = vector.broadcast %1306 : f32 to vector<8x78xf32>
    %1308 = arith.mulf %1307, %1297 : vector<8x78xf32>
    %1309 = arith.addf %1276, %1308 : vector<8x78xf32>
    %c141 = arith.constant 141 : index
    %1310 = memref.load %arg7[%c141] : memref<288xf32, #tpu.memory_space<smem>>
    %1311 = vector.broadcast %1310 : f32 to vector<8x78xf32>
    %1312 = arith.mulf %1311, %1297 : vector<8x78xf32>
    %1313 = arith.addf %1280, %1312 : vector<8x78xf32>
    %c177 = arith.constant 177 : index
    %1314 = memref.load %arg7[%c177] : memref<288xf32, #tpu.memory_space<smem>>
    %1315 = vector.broadcast %1314 : f32 to vector<8x78xf32>
    %1316 = arith.mulf %1315, %1297 : vector<8x78xf32>
    %1317 = arith.addf %1284, %1316 : vector<8x78xf32>
    %c213 = arith.constant 213 : index
    %1318 = memref.load %arg7[%c213] : memref<288xf32, #tpu.memory_space<smem>>
    %1319 = vector.broadcast %1318 : f32 to vector<8x78xf32>
    %1320 = arith.mulf %1319, %1297 : vector<8x78xf32>
    %1321 = arith.addf %1288, %1320 : vector<8x78xf32>
    %c249 = arith.constant 249 : index
    %1322 = memref.load %arg7[%c249] : memref<288xf32, #tpu.memory_space<smem>>
    %1323 = vector.broadcast %1322 : f32 to vector<8x78xf32>
    %1324 = arith.mulf %1323, %1297 : vector<8x78xf32>
    %1325 = arith.addf %1292, %1324 : vector<8x78xf32>
    %c285 = arith.constant 285 : index
    %1326 = memref.load %arg7[%c285] : memref<288xf32, #tpu.memory_space<smem>>
    %1327 = vector.broadcast %1326 : f32 to vector<8x78xf32>
    %1328 = arith.mulf %1327, %1297 : vector<8x78xf32>
    %1329 = arith.addf %1296, %1328 : vector<8x78xf32>
    %1330 = vector.extract_strided_slice %215 {offsets = [0, 21], sizes = [8, 78], strides = [1, 1]} : vector<8x128xf32> to vector<8x78xf32>
    %c34_48 = arith.constant 34 : index
    %1331 = memref.load %arg7[%c34_48] : memref<288xf32, #tpu.memory_space<smem>>
    %1332 = vector.broadcast %1331 : f32 to vector<8x78xf32>
    %1333 = arith.mulf %1332, %1330 : vector<8x78xf32>
    %1334 = arith.addf %1301, %1333 : vector<8x78xf32>
    %c70 = arith.constant 70 : index
    %1335 = memref.load %arg7[%c70] : memref<288xf32, #tpu.memory_space<smem>>
    %1336 = vector.broadcast %1335 : f32 to vector<8x78xf32>
    %1337 = arith.mulf %1336, %1330 : vector<8x78xf32>
    %1338 = arith.addf %1305, %1337 : vector<8x78xf32>
    %c106 = arith.constant 106 : index
    %1339 = memref.load %arg7[%c106] : memref<288xf32, #tpu.memory_space<smem>>
    %1340 = vector.broadcast %1339 : f32 to vector<8x78xf32>
    %1341 = arith.mulf %1340, %1330 : vector<8x78xf32>
    %1342 = arith.addf %1309, %1341 : vector<8x78xf32>
    %c142 = arith.constant 142 : index
    %1343 = memref.load %arg7[%c142] : memref<288xf32, #tpu.memory_space<smem>>
    %1344 = vector.broadcast %1343 : f32 to vector<8x78xf32>
    %1345 = arith.mulf %1344, %1330 : vector<8x78xf32>
    %1346 = arith.addf %1313, %1345 : vector<8x78xf32>
    %c178 = arith.constant 178 : index
    %1347 = memref.load %arg7[%c178] : memref<288xf32, #tpu.memory_space<smem>>
    %1348 = vector.broadcast %1347 : f32 to vector<8x78xf32>
    %1349 = arith.mulf %1348, %1330 : vector<8x78xf32>
    %1350 = arith.addf %1317, %1349 : vector<8x78xf32>
    %c214 = arith.constant 214 : index
    %1351 = memref.load %arg7[%c214] : memref<288xf32, #tpu.memory_space<smem>>
    %1352 = vector.broadcast %1351 : f32 to vector<8x78xf32>
    %1353 = arith.mulf %1352, %1330 : vector<8x78xf32>
    %1354 = arith.addf %1321, %1353 : vector<8x78xf32>
    %c250 = arith.constant 250 : index
    %1355 = memref.load %arg7[%c250] : memref<288xf32, #tpu.memory_space<smem>>
    %1356 = vector.broadcast %1355 : f32 to vector<8x78xf32>
    %1357 = arith.mulf %1356, %1330 : vector<8x78xf32>
    %1358 = arith.addf %1325, %1357 : vector<8x78xf32>
    %c286 = arith.constant 286 : index
    %1359 = memref.load %arg7[%c286] : memref<288xf32, #tpu.memory_space<smem>>
    %1360 = vector.broadcast %1359 : f32 to vector<8x78xf32>
    %1361 = arith.mulf %1360, %1330 : vector<8x78xf32>
    %1362 = arith.addf %1329, %1361 : vector<8x78xf32>
    %1363 = vector.extract_strided_slice %215 {offsets = [0, 22], sizes = [8, 78], strides = [1, 1]} : vector<8x128xf32> to vector<8x78xf32>
    %c35_49 = arith.constant 35 : index
    %1364 = memref.load %arg7[%c35_49] : memref<288xf32, #tpu.memory_space<smem>>
    %1365 = vector.broadcast %1364 : f32 to vector<8x78xf32>
    %1366 = arith.mulf %1365, %1363 : vector<8x78xf32>
    %1367 = arith.addf %1334, %1366 : vector<8x78xf32>
    %c71 = arith.constant 71 : index
    %1368 = memref.load %arg7[%c71] : memref<288xf32, #tpu.memory_space<smem>>
    %1369 = vector.broadcast %1368 : f32 to vector<8x78xf32>
    %1370 = arith.mulf %1369, %1363 : vector<8x78xf32>
    %1371 = arith.addf %1338, %1370 : vector<8x78xf32>
    %c107 = arith.constant 107 : index
    %1372 = memref.load %arg7[%c107] : memref<288xf32, #tpu.memory_space<smem>>
    %1373 = vector.broadcast %1372 : f32 to vector<8x78xf32>
    %1374 = arith.mulf %1373, %1363 : vector<8x78xf32>
    %1375 = arith.addf %1342, %1374 : vector<8x78xf32>
    %c143 = arith.constant 143 : index
    %1376 = memref.load %arg7[%c143] : memref<288xf32, #tpu.memory_space<smem>>
    %1377 = vector.broadcast %1376 : f32 to vector<8x78xf32>
    %1378 = arith.mulf %1377, %1363 : vector<8x78xf32>
    %1379 = arith.addf %1346, %1378 : vector<8x78xf32>
    %c179 = arith.constant 179 : index
    %1380 = memref.load %arg7[%c179] : memref<288xf32, #tpu.memory_space<smem>>
    %1381 = vector.broadcast %1380 : f32 to vector<8x78xf32>
    %1382 = arith.mulf %1381, %1363 : vector<8x78xf32>
    %1383 = arith.addf %1350, %1382 : vector<8x78xf32>
    %c215 = arith.constant 215 : index
    %1384 = memref.load %arg7[%c215] : memref<288xf32, #tpu.memory_space<smem>>
    %1385 = vector.broadcast %1384 : f32 to vector<8x78xf32>
    %1386 = arith.mulf %1385, %1363 : vector<8x78xf32>
    %1387 = arith.addf %1354, %1386 : vector<8x78xf32>
    %c251 = arith.constant 251 : index
    %1388 = memref.load %arg7[%c251] : memref<288xf32, #tpu.memory_space<smem>>
    %1389 = vector.broadcast %1388 : f32 to vector<8x78xf32>
    %1390 = arith.mulf %1389, %1363 : vector<8x78xf32>
    %1391 = arith.addf %1358, %1390 : vector<8x78xf32>
    %c287 = arith.constant 287 : index
    %1392 = memref.load %arg7[%c287] : memref<288xf32, #tpu.memory_space<smem>>
    %1393 = vector.broadcast %1392 : f32 to vector<8x78xf32>
    %1394 = arith.mulf %1393, %1363 : vector<8x78xf32>
    %1395 = arith.addf %1362, %1394 : vector<8x78xf32>
    %c0_50 = arith.constant 0 : index
    %1396 = memref.load %arg8[%c0_50] : memref<8xf32, #tpu.memory_space<smem>>
    %1397 = vector.broadcast %1396 : f32 to vector<8x78xf32>
    %1398 = arith.addf %1367, %1397 : vector<8x78xf32>
    %cst_51 = arith.constant 0.000000e+00 : f32
    %1399 = vector.broadcast %cst_51 : f32 to vector<8x78xf32>
    %1400 = arith.maximumf %1398, %1399 : vector<8x78xf32>
    %1401 = vector.extract_strided_slice %1400 {offsets = [0, 0], sizes = [8, 67], strides = [1, 1]} : vector<8x78xf32> to vector<8x67xf32>
    %1402 = vector.extract_strided_slice %1400 {offsets = [0, 1], sizes = [8, 67], strides = [1, 1]} : vector<8x78xf32> to vector<8x67xf32>
    %1403 = arith.maximumf %1401, %1402 : vector<8x67xf32>
    %1404 = vector.extract_strided_slice %1400 {offsets = [0, 10], sizes = [8, 67], strides = [1, 1]} : vector<8x78xf32> to vector<8x67xf32>
    %1405 = arith.maximumf %1403, %1404 : vector<8x67xf32>
    %1406 = vector.extract_strided_slice %1400 {offsets = [0, 11], sizes = [8, 67], strides = [1, 1]} : vector<8x78xf32> to vector<8x67xf32>
    %1407 = arith.maximumf %1405, %1406 : vector<8x67xf32>
    %c1_52 = arith.constant 1 : index
    %1408 = memref.load %arg8[%c1_52] : memref<8xf32, #tpu.memory_space<smem>>
    %1409 = vector.broadcast %1408 : f32 to vector<8x78xf32>
    %1410 = arith.addf %1371, %1409 : vector<8x78xf32>
    %cst_53 = arith.constant 0.000000e+00 : f32
    %1411 = vector.broadcast %cst_53 : f32 to vector<8x78xf32>
    %1412 = arith.maximumf %1410, %1411 : vector<8x78xf32>
    %1413 = vector.extract_strided_slice %1412 {offsets = [0, 0], sizes = [8, 67], strides = [1, 1]} : vector<8x78xf32> to vector<8x67xf32>
    %1414 = vector.extract_strided_slice %1412 {offsets = [0, 1], sizes = [8, 67], strides = [1, 1]} : vector<8x78xf32> to vector<8x67xf32>
    %1415 = arith.maximumf %1413, %1414 : vector<8x67xf32>
    %1416 = vector.extract_strided_slice %1412 {offsets = [0, 10], sizes = [8, 67], strides = [1, 1]} : vector<8x78xf32> to vector<8x67xf32>
    %1417 = arith.maximumf %1415, %1416 : vector<8x67xf32>
    %1418 = vector.extract_strided_slice %1412 {offsets = [0, 11], sizes = [8, 67], strides = [1, 1]} : vector<8x78xf32> to vector<8x67xf32>
    %1419 = arith.maximumf %1417, %1418 : vector<8x67xf32>
    %c2_54 = arith.constant 2 : index
    %1420 = memref.load %arg8[%c2_54] : memref<8xf32, #tpu.memory_space<smem>>
    %1421 = vector.broadcast %1420 : f32 to vector<8x78xf32>
    %1422 = arith.addf %1375, %1421 : vector<8x78xf32>
    %cst_55 = arith.constant 0.000000e+00 : f32
    %1423 = vector.broadcast %cst_55 : f32 to vector<8x78xf32>
    %1424 = arith.maximumf %1422, %1423 : vector<8x78xf32>
    %1425 = vector.extract_strided_slice %1424 {offsets = [0, 0], sizes = [8, 67], strides = [1, 1]} : vector<8x78xf32> to vector<8x67xf32>
    %1426 = vector.extract_strided_slice %1424 {offsets = [0, 1], sizes = [8, 67], strides = [1, 1]} : vector<8x78xf32> to vector<8x67xf32>
    %1427 = arith.maximumf %1425, %1426 : vector<8x67xf32>
    %1428 = vector.extract_strided_slice %1424 {offsets = [0, 10], sizes = [8, 67], strides = [1, 1]} : vector<8x78xf32> to vector<8x67xf32>
    %1429 = arith.maximumf %1427, %1428 : vector<8x67xf32>
    %1430 = vector.extract_strided_slice %1424 {offsets = [0, 11], sizes = [8, 67], strides = [1, 1]} : vector<8x78xf32> to vector<8x67xf32>
    %1431 = arith.maximumf %1429, %1430 : vector<8x67xf32>
    %c3_56 = arith.constant 3 : index
    %1432 = memref.load %arg8[%c3_56] : memref<8xf32, #tpu.memory_space<smem>>
    %1433 = vector.broadcast %1432 : f32 to vector<8x78xf32>
    %1434 = arith.addf %1379, %1433 : vector<8x78xf32>
    %cst_57 = arith.constant 0.000000e+00 : f32
    %1435 = vector.broadcast %cst_57 : f32 to vector<8x78xf32>
    %1436 = arith.maximumf %1434, %1435 : vector<8x78xf32>
    %1437 = vector.extract_strided_slice %1436 {offsets = [0, 0], sizes = [8, 67], strides = [1, 1]} : vector<8x78xf32> to vector<8x67xf32>
    %1438 = vector.extract_strided_slice %1436 {offsets = [0, 1], sizes = [8, 67], strides = [1, 1]} : vector<8x78xf32> to vector<8x67xf32>
    %1439 = arith.maximumf %1437, %1438 : vector<8x67xf32>
    %1440 = vector.extract_strided_slice %1436 {offsets = [0, 10], sizes = [8, 67], strides = [1, 1]} : vector<8x78xf32> to vector<8x67xf32>
    %1441 = arith.maximumf %1439, %1440 : vector<8x67xf32>
    %1442 = vector.extract_strided_slice %1436 {offsets = [0, 11], sizes = [8, 67], strides = [1, 1]} : vector<8x78xf32> to vector<8x67xf32>
    %1443 = arith.maximumf %1441, %1442 : vector<8x67xf32>
    %c4_58 = arith.constant 4 : index
    %1444 = memref.load %arg8[%c4_58] : memref<8xf32, #tpu.memory_space<smem>>
    %1445 = vector.broadcast %1444 : f32 to vector<8x78xf32>
    %1446 = arith.addf %1383, %1445 : vector<8x78xf32>
    %cst_59 = arith.constant 0.000000e+00 : f32
    %1447 = vector.broadcast %cst_59 : f32 to vector<8x78xf32>
    %1448 = arith.maximumf %1446, %1447 : vector<8x78xf32>
    %1449 = vector.extract_strided_slice %1448 {offsets = [0, 0], sizes = [8, 67], strides = [1, 1]} : vector<8x78xf32> to vector<8x67xf32>
    %1450 = vector.extract_strided_slice %1448 {offsets = [0, 1], sizes = [8, 67], strides = [1, 1]} : vector<8x78xf32> to vector<8x67xf32>
    %1451 = arith.maximumf %1449, %1450 : vector<8x67xf32>
    %1452 = vector.extract_strided_slice %1448 {offsets = [0, 10], sizes = [8, 67], strides = [1, 1]} : vector<8x78xf32> to vector<8x67xf32>
    %1453 = arith.maximumf %1451, %1452 : vector<8x67xf32>
    %1454 = vector.extract_strided_slice %1448 {offsets = [0, 11], sizes = [8, 67], strides = [1, 1]} : vector<8x78xf32> to vector<8x67xf32>
    %1455 = arith.maximumf %1453, %1454 : vector<8x67xf32>
    %c5_60 = arith.constant 5 : index
    %1456 = memref.load %arg8[%c5_60] : memref<8xf32, #tpu.memory_space<smem>>
    %1457 = vector.broadcast %1456 : f32 to vector<8x78xf32>
    %1458 = arith.addf %1387, %1457 : vector<8x78xf32>
    %cst_61 = arith.constant 0.000000e+00 : f32
    %1459 = vector.broadcast %cst_61 : f32 to vector<8x78xf32>
    %1460 = arith.maximumf %1458, %1459 : vector<8x78xf32>
    %1461 = vector.extract_strided_slice %1460 {offsets = [0, 0], sizes = [8, 67], strides = [1, 1]} : vector<8x78xf32> to vector<8x67xf32>
    %1462 = vector.extract_strided_slice %1460 {offsets = [0, 1], sizes = [8, 67], strides = [1, 1]} : vector<8x78xf32> to vector<8x67xf32>
    %1463 = arith.maximumf %1461, %1462 : vector<8x67xf32>
    %1464 = vector.extract_strided_slice %1460 {offsets = [0, 10], sizes = [8, 67], strides = [1, 1]} : vector<8x78xf32> to vector<8x67xf32>
    %1465 = arith.maximumf %1463, %1464 : vector<8x67xf32>
    %1466 = vector.extract_strided_slice %1460 {offsets = [0, 11], sizes = [8, 67], strides = [1, 1]} : vector<8x78xf32> to vector<8x67xf32>
    %1467 = arith.maximumf %1465, %1466 : vector<8x67xf32>
    %c6_62 = arith.constant 6 : index
    %1468 = memref.load %arg8[%c6_62] : memref<8xf32, #tpu.memory_space<smem>>
    %1469 = vector.broadcast %1468 : f32 to vector<8x78xf32>
    %1470 = arith.addf %1391, %1469 : vector<8x78xf32>
    %cst_63 = arith.constant 0.000000e+00 : f32
    %1471 = vector.broadcast %cst_63 : f32 to vector<8x78xf32>
    %1472 = arith.maximumf %1470, %1471 : vector<8x78xf32>
    %1473 = vector.extract_strided_slice %1472 {offsets = [0, 0], sizes = [8, 67], strides = [1, 1]} : vector<8x78xf32> to vector<8x67xf32>
    %1474 = vector.extract_strided_slice %1472 {offsets = [0, 1], sizes = [8, 67], strides = [1, 1]} : vector<8x78xf32> to vector<8x67xf32>
    %1475 = arith.maximumf %1473, %1474 : vector<8x67xf32>
    %1476 = vector.extract_strided_slice %1472 {offsets = [0, 10], sizes = [8, 67], strides = [1, 1]} : vector<8x78xf32> to vector<8x67xf32>
    %1477 = arith.maximumf %1475, %1476 : vector<8x67xf32>
    %1478 = vector.extract_strided_slice %1472 {offsets = [0, 11], sizes = [8, 67], strides = [1, 1]} : vector<8x78xf32> to vector<8x67xf32>
    %1479 = arith.maximumf %1477, %1478 : vector<8x67xf32>
    %c7_64 = arith.constant 7 : index
    %1480 = memref.load %arg8[%c7_64] : memref<8xf32, #tpu.memory_space<smem>>
    %1481 = vector.broadcast %1480 : f32 to vector<8x78xf32>
    %1482 = arith.addf %1395, %1481 : vector<8x78xf32>
    %cst_65 = arith.constant 0.000000e+00 : f32
    %1483 = vector.broadcast %cst_65 : f32 to vector<8x78xf32>
    %1484 = arith.maximumf %1482, %1483 : vector<8x78xf32>
    %1485 = vector.extract_strided_slice %1484 {offsets = [0, 0], sizes = [8, 67], strides = [1, 1]} : vector<8x78xf32> to vector<8x67xf32>
    %1486 = vector.extract_strided_slice %1484 {offsets = [0, 1], sizes = [8, 67], strides = [1, 1]} : vector<8x78xf32> to vector<8x67xf32>
    %1487 = arith.maximumf %1485, %1486 : vector<8x67xf32>
    %1488 = vector.extract_strided_slice %1484 {offsets = [0, 10], sizes = [8, 67], strides = [1, 1]} : vector<8x78xf32> to vector<8x67xf32>
    %1489 = arith.maximumf %1487, %1488 : vector<8x67xf32>
    %1490 = vector.extract_strided_slice %1484 {offsets = [0, 11], sizes = [8, 67], strides = [1, 1]} : vector<8x78xf32> to vector<8x67xf32>
    %1491 = arith.maximumf %1489, %1490 : vector<8x67xf32>
    %1492 = tpu.concatenate %1407, %1419, %1431, %1443, %1455, %1467, %1479, %1491 in 1 : vector<8x67xf32>, vector<8x67xf32>, vector<8x67xf32>, vector<8x67xf32>, vector<8x67xf32>, vector<8x67xf32>, vector<8x67xf32>, vector<8x67xf32> -> vector<8x536xf32>
    %cst_66 = arith.constant 0.000000e+00 : f32
    %1493 = vector.broadcast %cst_66 : f32 to vector<8x104xf32>
    %1494 = tpu.concatenate %1492, %1493 in 1 : vector<8x536xf32>, vector<8x104xf32> -> vector<8x640xf32>
    %1495 = arith.truncf %1494 : vector<8x640xf32> to vector<8x640xbf16>
    %1496 = arith.extf %1495 : vector<8x640xbf16> to vector<8x640xf32>
    %1497 = arith.subf %1494, %1496 : vector<8x640xf32>
    %1498 = tpu.concatenate %1494, %1497 in 0 : vector<8x640xf32>, vector<8x640xf32> -> vector<16x640xf32>
    %1499 = arith.truncf %1498 : vector<16x640xf32> to vector<16x640xbf16>
    %c0_67 = arith.constant 0 : index
    %c0_68 = arith.constant 0 : index
    %1500 = vector.load %arg6[%c0_67, %c0_68] : memref<640x128xbf16, #tpu.memory_space<vmem>>, vector<640x128xbf16>
    %cst_69 = arith.constant dense<0.000000e+00> : vector<16x128xf32>
    %1501 = tpu.matmul %1499, %1500, %cst_69 {dimension_numbers = #tpu.dot_dimension_numbers<[1], [0], [0], [1], [0, 0, 1, 1], [], []>} : vector<16x640xbf16>, vector<640x128xbf16>, vector<16x128xf32> -> vector<16x128xf32>
    %1502 = vector.extract_strided_slice %1501 {offsets = [0, 0], sizes = [8, 128], strides = [1, 1]} : vector<16x128xf32> to vector<8x128xf32>
    %1503 = vector.extract_strided_slice %1501 {offsets = [8, 0], sizes = [8, 128], strides = [1, 1]} : vector<16x128xf32> to vector<8x128xf32>
    %1504 = arith.addf %1502, %1503 : vector<8x128xf32>
    %cst_70 = arith.constant 11.3137083 : f32
    %1505 = vector.broadcast %cst_70 : f32 to vector<8x128xf32>
    %1506 = arith.mulf %1504, %1505 : vector<8x128xf32>
    %c0_71 = arith.constant 0 : index
    %c0_72 = arith.constant 0 : index
    %1507 = vector.load %arg2[%c0_71, %c0_72] : memref<8x128xf32, #tpu.memory_space<vmem>>, vector<8x128xf32>
    %1508 = arith.addf %1506, %1507 : vector<8x128xf32>
    %c0_73 = arith.constant 0 : index
    %c0_74 = arith.constant 0 : index
    %c0_75 = arith.constant 0 : index
    %1509 = vector.load %arg9[%c0_73, %c0_74, %c0_75] : memref<1x8x128xf32, #tpu.memory_space<vmem>>, vector<1x8x128xf32>
    %1510 = vector.shape_cast %1509 : vector<1x8x128xf32> to vector<8x128xf32>
    %1511 = vector.shape_cast %1508 : vector<8x128xf32> to vector<1x8x128xf32>
    tpu.vector_store %arg9[%c0_73, %c0_74, %c0_75], %1511 {strides = array<i32>} : memref<1x8x128xf32, #tpu.memory_space<vmem>>, vector<1x8x128xf32>,
    return
  }
  func.func @transform_0(%arg0: i32) -> (i32, i32, i32) {
    %c0_i32 = arith.constant 0 : i32
    %c0_i32_0 = arith.constant 0 : i32
    %c0_i32_1 = arith.constant 0 : i32
    return %arg0, %c0_i32, %c0_i32_0 : i32, i32, i32
  }
  func.func @transform_1(%arg0: i32) -> (i32, i32) {
    %c0_i32 = arith.constant 0 : i32
    %c0_i32_0 = arith.constant 0 : i32
    %c0_i32_1 = arith.constant 0 : i32
    return %c0_i32, %c0_i32_0 : i32, i32
  }
  func.func @transform_2(%arg0: i32) -> (i32, i32) {
    %c0_i32 = arith.constant 0 : i32
    %c0_i32_0 = arith.constant 0 : i32
    %c0_i32_1 = arith.constant 0 : i32
    return %c0_i32, %c0_i32_0 : i32, i32
  }
  func.func @transform_3(%arg0: i32) -> i32 {
    %c0_i32 = arith.constant 0 : i32
    %c0_i32_0 = arith.constant 0 : i32
    return %c0_i32 : i32
  }
  func.func @transform_4(%arg0: i32) -> i32 {
    %c0_i32 = arith.constant 0 : i32
    %c0_i32_0 = arith.constant 0 : i32
    return %c0_i32 : i32
  }
  func.func @transform_5(%arg0: i32) -> (i32, i32) {
    %c0_i32 = arith.constant 0 : i32
    %c0_i32_0 = arith.constant 0 : i32
    %c0_i32_1 = arith.constant 0 : i32
    return %c0_i32, %c0_i32_0 : i32, i32
  }
  func.func @transform_6(%arg0: i32) -> i32 {
    %c0_i32 = arith.constant 0 : i32
    %c0_i32_0 = arith.constant 0 : i32
    return %c0_i32 : i32
  }
  func.func @transform_7(%arg0: i32) -> i32 {
    %c0_i32 = arith.constant 0 : i32
    %c0_i32_0 = arith.constant 0 : i32
    return %c0_i32 : i32
  }
  func.func @transform_8(%arg0: i32) -> (i32, i32, i32) {
    %c0_i32 = arith.constant 0 : i32
    %c0_i32_0 = arith.constant 0 : i32
    %c0_i32_1 = arith.constant 0 : i32
    return %arg0, %c0_i32, %c0_i32_0 : i32, i32, i32
  }
}

</mosaic_0001>

<llo_original>
// kernel: tpu_custom_call.1
$region0: #{tpu_custom_call.1}
  #allocation0 [shape = 'u32[]', space=smem, size = 0x4, offset = 0x4, fixed_abs, tag = 'smem constant byte address 0x4 - core index']
  #allocation1 [shape = 'u32[144,128]{1,0:T(1,128)}', space=vmem, size = 0x12000, scoped, tag = 'internal scratch']
  %s0 = inlined_call_operand.hbm [shape: f32[2,8,324], index: 0, kind: input, shape index: {}]
  %s1 = inlined_call_operand.hbm [shape: f32[8,128], index: 1, kind: input, shape index: {}]
  %s2 = inlined_call_operand.hbm [shape: bf16[384,128], index: 2, kind: input, shape index: {}]
  %s3 = inlined_call_operand.vmem [shape: f32[36], index: 3, kind: input, shape index: {}]
  %s4 = inlined_call_operand.vmem [shape: f32[4], index: 4, kind: input, shape index: {}]
  %s5 = inlined_call_operand.hbm [shape: bf16[640,128], index: 5, kind: input, shape index: {}]
  %s6 = inlined_call_operand.vmem [shape: f32[288], index: 6, kind: input, shape index: {}]
  %s7 = inlined_call_operand.vmem [shape: f32[8], index: 7, kind: input, shape index: {}]
  %s8 = inlined_call_operand.hbm [shape: f32[2,8,128], index: 8, kind: output, shape index: {}]
  %s9 = sld [smem:[#allocation0]]
  $region97: #{tpu_custom_call.1} parent=0
    _
  %s11 = ssub.s32 1, %s9
  %s12 = scalar_select 0, %s11, %s9
  $region1: #{tpu_custom_call.1} parent=0
    #allocation2 [shape = 'u8[24576]{0}', space=vmem, size = 0x6000, scoped, tag = 'input window, operand 0']
    #allocation3 [shape = 's32[2]{0}', space=sflag, size = 0x8, scoped, tag = 'scoped memory for tpu_custom_call.1']
    #allocation4 [shape = 's32[2]{0}', space=sflag, size = 0x8, scoped, tag = 'scoped memory for tpu_custom_call.1']
    #allocation5 [shape = 's32[2]{0}', space=sflag, size = 0x8, scoped, tag = 'scoped memory for tpu_custom_call.1']
    #allocation6 [shape = 'u8[4096]{0}', space=vmem, size = 0x1000, scoped, tag = 'input window, operand 1, single buffered']
    #allocation7 [shape = 's32[1]{0}', space=sflag, size = 0x4, scoped, tag = 'scoped memory for tpu_custom_call.1']
    #allocation8 [shape = 'u8[98304]{0}', space=vmem, size = 0x18000, scoped, tag = 'input window, operand 2, single buffered']
    #allocation9 [shape = 'u8[512]{0}', space=smem, size = 0x200, scoped, tag = 'input window, operand 3, single buffered']
    #allocation10 [shape = 'u8[512]{0}', space=smem, size = 0x200, scoped, tag = 'input window, operand 4, single buffered']
    #allocation11 [shape = 's32[1]{0}', space=sflag, size = 0x4, scoped, tag = 'scoped memory for tpu_custom_call.1']
    #allocation12 [shape = 'u8[163840]{0}', space=vmem, size = 0x28000, scoped, tag = 'input window, operand 5, single buffered']
    #allocation13 [shape = 's32[1]{0}', space=sflag, size = 0x4, scoped, tag = 'scoped memory for tpu_custom_call.1']
    #allocation14 [shape = 'u8[1536]{0}', space=smem, size = 0x600, scoped, tag = 'input window, operand 6, single buffered']
    #allocation15 [shape = 'u8[512]{0}', space=smem, size = 0x200, scoped, tag = 'input window, operand 7, single buffered']
    #allocation16 [shape = 's32[1]{0}', space=sflag, size = 0x4, scoped, tag = 'scoped memory for tpu_custom_call.1']
    #allocation17 [shape = 'u8[8192]{0}', space=vmem, size = 0x2000, scoped, tag = 'output window, operand 0']
    %13 = vsyncpa [#allocation3], 0
    %s14 = scalar_lea.sflag [#allocation3], 1
    %15 = vsyncpa %s14, 0
    %16 = vsyncpa [#allocation7], 0
    %17 = vsyncpa [#allocation5], 0
    %18 = vsyncpa [#allocation11], 0
    %19 = vsyncpa [#allocation13], 0
    %20 = vsyncpa [#allocation16], 0
    %21 = vsyncpa [#allocation4], 0
    %s22 = scalar_lea.sflag [#allocation4], 1
    %23 = vsyncpa %s22, 0
    loop: start=0, step=1, limit=4
    $region2: #{tpu_custom_call.1} parent=1 // loop_pre_header
      _
    $region3: #{tpu_custom_call.1} parent=1 // loop_header
      %s25 = sphi 0, %s29
      %p26 = scmp.ge.s32.totalorder %s25, 4
      %s35 = sphi 0, %s37
      %s38 = sphi 0, %s35
      %s39 = sphi 0, %s38
      %s55 = sphi 0, %s39
      %s59 = sphi 0, %s59
      %s61 = sphi 0, %s59
      %s62 = sphi 0, %s61
      %s76 = sphi 0, %s62
      %s80 = sphi 0, %s80
      %s82 = sphi 0, %s80
      %s83 = sphi 0, %s82
      %s97 = sphi 0, %s83
      %s101 = sphi 0, %s101
      %s103 = sphi 0, %s101
      %s104 = sphi 0, %s103
      %s118 = sphi 0, %s104
      %s122 = sphi 0, %s122
      %s124 = sphi 0, %s122
      %s125 = sphi 0, %s124
      %s139 = sphi 0, %s125
      %s143 = sphi 0, %s143
      %s145 = sphi 0, %s143
      %s146 = sphi 0, %s145
      %s160 = sphi 0, %s146
      %s164 = sphi 0, %s164
      %s166 = sphi 0, %s164
      %s167 = sphi 0, %s166
      %s181 = sphi 0, %s167
      %s185 = sphi 0, %s185
      %s187 = sphi 0, %s185
      %s188 = sphi 0, %s187
      %s202 = sphi 0, %s188
      %s208 = sphi 0, %s210
      %s211 = sphi 0, %s208
      %s212 = sphi 0, %s211
      %s228 = sphi 0, %s212
    $region4: #{tpu_custom_call.1} parent=1 // loop_header_branch
      %28 = sbr.rel (%p26) target = $region8
    $region5: #{tpu_custom_call.1} parent=1 // loop_body
      %s30 = ssub.s32 %s25, 1
      %s31 = ssub.s32 %s25, 2
      %s32 = sadd.s32 %s25, 1
      %s33 = ssub.s32 %s25, %s32
      %p34 = scmp.eq.s32.totalorder %s33, 0
      %s36 = sadd.s32 %s35, 1
      %s37 = scalar_select %p34, %s35, %s36
      %p40 = pneg %p34
      %p41 = scmp.eq.s32.totalorder %s25, 1
      %p42 = por %p40, %p41
      %p43 = scmp.ne.s32.totalorder %s35, %s38
      %p44 = scmp.eq.s32.totalorder %s25, 0
      %p45 = por %p43, %p44
      %p46 = scmp.ne.s32.totalorder %s35, %s38
      %p47 = scmp.eq.s32.totalorder %s30, 1
      %p48 = por %p46, %p47
      %p49 = scmp.ne.s32.totalorder %s38, %s39
      %p50 = scmp.eq.s32.totalorder %s30, 0
      %p51 = por %p49, %p50
      %p52 = scmp.ne.s32.totalorder %s38, %s39
      %p53 = scmp.eq.s32.totalorder %s31, 1
      %p54 = por %p52, %p53
      %p56 = scmp.ne.s32.totalorder %s39, %s55
      %p57 = scmp.eq.s32.totalorder %s31, 0
      %p58 = por %p56, %p57
      %s60 = sadd.s32 %s59, 1
      %p63 = scmp.eq.s32.totalorder %s25, 1
      %p64 = scmp.ne.s32.totalorder %s59, %s61
      %p65 = scmp.eq.s32.totalorder %s25, 0
      %p66 = por %p64, %p65
      %p67 = scmp.ne.s32.totalorder %s59, %s61
      %p68 = scmp.eq.s32.totalorder %s30, 1
      %p69 = por %p67, %p68
      %p70 = scmp.ne.s32.totalorder %s61, %s62
      %p71 = scmp.eq.s32.totalorder %s30, 0
      %p72 = por %p70, %p71
      %p73 = scmp.ne.s32.totalorder %s61, %s62
      %p74 = scmp.eq.s32.totalorder %s31, 1
      %p75 = por %p73, %p74
      %p77 = scmp.ne.s32.totalorder %s62, %s76
      %p78 = scmp.eq.s32.totalorder %s31, 0
      %p79 = por %p77, %p78
      %s81 = sadd.s32 %s80, 1
      %p84 = scmp.eq.s32.totalorder %s25, 1
      %p85 = scmp.ne.s32.totalorder %s80, %s82
      %p86 = scmp.eq.s32.totalorder %s25, 0
      %p87 = por %p85, %p86
      %p88 = scmp.ne.s32.totalorder %s80, %s82
      %p89 = scmp.eq.s32.totalorder %s30, 1
      %p90 = por %p88, %p89
      %p91 = scmp.ne.s32.totalorder %s82, %s83
      %p92 = scmp.eq.s32.totalorder %s30, 0
      %p93 = por %p91, %p92
      %p94 = scmp.ne.s32.totalorder %s82, %s83
      %p95 = scmp.eq.s32.totalorder %s31, 1
      %p96 = por %p94, %p95
      %p98 = scmp.ne.s32.totalorder %s83, %s97
      %p99 = scmp.eq.s32.totalorder %s31, 0
      %p100 = por %p98, %p99
      %s102 = sadd.s32 %s101, 1
      %p105 = scmp.eq.s32.totalorder %s25, 1
      %p106 = scmp.ne.s32.totalorder %s101, %s103
      %p107 = scmp.eq.s32.totalorder %s25, 0
      %p108 = por %p106, %p107
      %p109 = scmp.ne.s32.totalorder %s101, %s103
      %p110 = scmp.eq.s32.totalorder %s30, 1
      %p111 = por %p109, %p110
      %p112 = scmp.ne.s32.totalorder %s103, %s104
      %p113 = scmp.eq.s32.totalorder %s30, 0
      %p114 = por %p112, %p113
      %p115 = scmp.ne.s32.totalorder %s103, %s104
      %p116 = scmp.eq.s32.totalorder %s31, 1
      %p117 = por %p115, %p116
      %p119 = scmp.ne.s32.totalorder %s104, %s118
      %p120 = scmp.eq.s32.totalorder %s31, 0
      %p121 = por %p119, %p120
      %s123 = sadd.s32 %s122, 1
      %p126 = scmp.eq.s32.totalorder %s25, 1
      %p127 = scmp.ne.s32.totalorder %s122, %s124
      %p128 = scmp.eq.s32.totalorder %s25, 0
      %p129 = por %p127, %p128
      %p130 = scmp.ne.s32.totalorder %s122, %s124
      %p131 = scmp.eq.s32.totalorder %s30, 1
      %p132 = por %p130, %p131
      %p133 = scmp.ne.s32.totalorder %s124, %s125
      %p134 = scmp.eq.s32.totalorder %s30, 0
      %p135 = por %p133, %p134
      %p136 = scmp.ne.s32.totalorder %s124, %s125
      %p137 = scmp.eq.s32.totalorder %s31, 1
      %p138 = por %p136, %p137
      %p140 = scmp.ne.s32.totalorder %s125, %s139
      %p141 = scmp.eq.s32.totalorder %s31, 0
      %p142 = por %p140, %p141
      %s144 = sadd.s32 %s143, 1
      %p147 = scmp.eq.s32.totalorder %s25, 1
      %p148 = scmp.ne.s32.totalorder %s143, %s145
      %p149 = scmp.eq.s32.totalorder %s25, 0
      %p150 = por %p148, %p149
      %p151 = scmp.ne.s32.totalorder %s143, %s145
      %p152 = scmp.eq.s32.totalorder %s30, 1
      %p153 = por %p151, %p152
      %p154 = scmp.ne.s32.totalorder %s145, %s146
      %p155 = scmp.eq.s32.totalorder %s30, 0
      %p156 = por %p154, %p155
      %p157 = scmp.ne.s32.totalorder %s145, %s146
      %p158 = scmp.eq.s32.totalorder %s31, 1
      %p159 = por %p157, %p158
      %p161 = scmp.ne.s32.totalorder %s146, %s160
      %p162 = scmp.eq.s32.totalorder %s31, 0
      %p163 = por %p161, %p162
      %s165 = sadd.s32 %s164, 1
      %p168 = scmp.eq.s32.totalorder %s25, 1
      %p169 = scmp.ne.s32.totalorder %s164, %s166
      %p170 = scmp.eq.s32.totalorder %s25, 0
      %p171 = por %p169, %p170
      %p172 = scmp.ne.s32.totalorder %s164, %s166
      %p173 = scmp.eq.s32.totalorder %s30, 1
      %p174 = por %p172, %p173
      %p175 = scmp.ne.s32.totalorder %s166, %s167
      %p176 = scmp.eq.s32.totalorder %s30, 0
      %p177 = por %p175, %p176
      %p178 = scmp.ne.s32.totalorder %s166, %s167
      %p179 = scmp.eq.s32.totalorder %s31, 1
      %p180 = por %p178, %p179
      %p182 = scmp.ne.s32.totalorder %s167, %s181
      %p183 = scmp.eq.s32.totalorder %s31, 0
      %p184 = por %p182, %p183
      %s186 = sadd.s32 %s185, 1
      %p189 = scmp.eq.s32.totalorder %s25, 1
      %p190 = scmp.ne.s32.totalorder %s185, %s187
      %p191 = scmp.eq.s32.totalorder %s25, 0
      %p192 = por %p190, %p191
      %p193 = scmp.ne.s32.totalorder %s185, %s187
      %p194 = scmp.eq.s32.totalorder %s30, 1
      %p195 = por %p193, %p194
      %p196 = scmp.ne.s32.totalorder %s187, %s188
      %p197 = scmp.eq.s32.totalorder %s30, 0
      %p198 = por %p196, %p197
      %p199 = scmp.ne.s32.totalorder %s187, %s188
      %p200 = scmp.eq.s32.totalorder %s31, 1
      %p201 = por %p199, %p200
      %p203 = scmp.ne.s32.totalorder %s188, %s202
      %p204 = scmp.eq.s32.totalorder %s31, 0
      %p205 = por %p203, %p204
      %s206 = ssub.s32 %s25, %s32
      %p207 = scmp.eq.s32.totalorder %s206, 0
      %s209 = sadd.s32 %s208, 1
      %s210 = scalar_select %p207, %s208, %s209
      %p213 = pneg %p207
      %p214 = scmp.eq.s32.totalorder %s25, 1
      %p215 = por %p213, %p214
      %p216 = scmp.ne.s32.totalorder %s208, %s211
      %p217 = scmp.eq.s32.totalorder %s25, 0
      %p218 = por %p216, %p217
      %p219 = scmp.ne.s32.totalorder %s208, %s211
      %p220 = scmp.eq.s32.totalorder %s30, 1
      %p221 = por %p219, %p220
      %p222 = scmp.ne.s32.totalorder %s211, %s212
      %p223 = scmp.eq.s32.totalorder %s30, 0
      %p224 = por %p222, %p223
      %p225 = scmp.ne.s32.totalorder %s211, %s212
      %p226 = scmp.eq.s32.totalorder %s31, 1
      %p227 = por %p225, %p226
      %p229 = scmp.ne.s32.totalorder %s212, %s228
      %p230 = scmp.eq.s32.totalorder %s31, 0
      %p231 = por %p229, %p230
      %p232 = scmp.le.s32.totalorder 1, %s25
      %p233 = scmp.lt.s32.totalorder %s25, 3
      %p234 = pnand %p232, %p233
      %p235 = pneg %p234
      // Predicated region
      $region9: #{tpu_custom_call.1} parent=5 // pred_check
        _
      $region10: #{tpu_custom_call.1} parent=5 // pred_check_branch
        %237 = sbr.rel (%p234) target = $region12
      $region11: #{tpu_custom_call.1} parent=5 // pred_region
        %s238 = ssub.s32 %s25, 1
        // Predicated region
        $region13: #{tpu_custom_call.1} parent=11 // pred_check
          %p239 = pneg %p72
        $region14: #{tpu_custom_call.1} parent=11 // pred_check_branch
          %241 = sbr.rel (%p239) target = $region16
        $region15: #{tpu_custom_call.1} parent=11 // pred_region
          %s243 = ssub.s32 128, 128
          %244 = vsyncadd [#allocation7], %s243
          %s246 = sshll.u32 [#allocation6], 4
          %s247 = int_to_ptr.vmem [resolvable:$true] %s246
          %249 = dma.hbm_to_vmem [thread:$0]  %s1, 128, %s247, [#allocation7]
        $region16: #{tpu_custom_call.1} parent=11 // pred_fallthru
          _
        // Predicated region
        $region17: #{tpu_custom_call.1} parent=11 // pred_check
          %p250 = pneg %p93
        $region18: #{tpu_custom_call.1} parent=11 // pred_check_branch
          %252 = sbr.rel (%p250) target = $region20
        $region19: #{tpu_custom_call.1} parent=11 // pred_region
          %s254 = ssub.s32 3072, 3072
          %255 = vsyncadd [#allocation7], %s254
          %s256 = sshll.u32 [#allocation8], 4
          %s257 = int_to_ptr.vmem [resolvable:$true] %s256
          %262 = dma.hbm_to_vmem [thread:$0]  %s2, 3072, %s257, [#allocation7], 64, 64, 4
        $region20: #{tpu_custom_call.1} parent=11 // pred_fallthru
          _
        // Predicated region
        $region21: #{tpu_custom_call.1} parent=11 // pred_check
          %p263 = pneg %p114
        $region22: #{tpu_custom_call.1} parent=11 // pred_check_branch
          %265 = sbr.rel (%p263) target = $region24
        $region23: #{tpu_custom_call.1} parent=11 // pred_region
          %s267 = ssub.s32 16, 16
          %268 = vsyncadd [#allocation5], %s267
          %s270 = sshll.u32 %s3, 4
          %s271 = int_to_ptr.vmem [resolvable:$true] %s270
          %273 = dma.vmem_to_smem %s271, 16, [#allocation9], [#allocation5]
        $region24: #{tpu_custom_call.1} parent=11 // pred_fallthru
          _
        // Predicated region
        $region25: #{tpu_custom_call.1} parent=11 // pred_check
          %p274 = pneg %p135
        $region26: #{tpu_custom_call.1} parent=11 // pred_check_branch
          %276 = sbr.rel (%p274) target = $region28
        $region27: #{tpu_custom_call.1} parent=11 // pred_region
          %s278 = ssub.s32 16, 16
          %279 = vsyncadd [#allocation11], %s278
          %s281 = sshll.u32 %s4, 4
          %s282 = int_to_ptr.vmem [resolvable:$true] %s281
          %284 = dma.vmem_to_smem %s282, 16, [#allocation10], [#allocation11]
        $region28: #{tpu_custom_call.1} parent=11 // pred_fallthru
          _
        // Predicated region
        $region29: #{tpu_custom_call.1} parent=11 // pred_check
          %p285 = pneg %p156
        $region30: #{tpu_custom_call.1} parent=11 // pred_check_branch
          %287 = sbr.rel (%p285) target = $region32
        $region31: #{tpu_custom_call.1} parent=11 // pred_region
          %s289 = ssub.s32 5120, 5120
          %290 = vsyncadd [#allocation13], %s289
          %s291 = sshll.u32 [#allocation12], 4
          %s292 = int_to_ptr.vmem [resolvable:$true] %s291
          %297 = dma.hbm_to_vmem [thread:$0]  %s5, 5120, %s292, [#allocation13], 64, 64, 4
        $region32: #{tpu_custom_call.1} parent=11 // pred_fallthru
          _
        // Predicated region
        $region33: #{tpu_custom_call.1} parent=11 // pred_check
          %p298 = pneg %p177
        $region34: #{tpu_custom_call.1} parent=11 // pred_check_branch
          %300 = sbr.rel (%p298) target = $region36
        $region35: #{tpu_custom_call.1} parent=11 // pred_region
          %s302 = ssub.s32 48, 48
          %303 = vsyncadd [#allocation11], %s302
          %s305 = sshll.u32 %s6, 4
          %s306 = int_to_ptr.vmem [resolvable:$true] %s305
          %308 = dma.vmem_to_smem %s306, 48, [#allocation14], [#allocation11]
        $region36: #{tpu_custom_call.1} parent=11 // pred_fallthru
          _
        // Predicated region
        $region37: #{tpu_custom_call.1} parent=11 // pred_check
          %p309 = pneg %p198
        $region38: #{tpu_custom_call.1} parent=11 // pred_check_branch
          %311 = sbr.rel (%p309) target = $region40
        $region39: #{tpu_custom_call.1} parent=11 // pred_region
          %s313 = ssub.s32 16, 16
          %314 = vsyncadd [#allocation16], %s313
          %s316 = sshll.u32 %s7, 4
          %s317 = int_to_ptr.vmem [resolvable:$true] %s316
          %319 = dma.vmem_to_smem %s317, 16, [#allocation15], [#allocation16]
        $region40: #{tpu_custom_call.1} parent=11 // pred_fallthru
          _
      $region12: #{tpu_custom_call.1} parent=5 // pred_fallthru
        _
      %p320 = scmp.lt.s32.totalorder %s25, 2
      // Predicated region
      $region41: #{tpu_custom_call.1} parent=5 // pred_check
        %p321 = pneg %p320
      $region42: #{tpu_custom_call.1} parent=5 // pred_check_branch
        %323 = sbr.rel (%p321) target = $region44
      $region43: #{tpu_custom_call.1} parent=5 // pred_region
        // Predicated region
        $region45: #{tpu_custom_call.1} parent=43 // pred_check
          %p324 = pneg %p45
        $region46: #{tpu_custom_call.1} parent=43 // pred_check_branch
          %326 = sbr.rel (%p324) target = $region48
        $region47: #{tpu_custom_call.1} parent=43 // pred_region
          %s327 = sand.u32 %s35, 1
          %s328 = scalar_lea.sflag [#allocation3], %s327
          %s329 = sand.u32 %s35, 1
          %s330 = smul.addr %s329, 24
          %s331 = scalar_lea.vmem [#allocation2], %s330
          %s333 = ssub.s32 384, 384
          %334 = vsyncadd %s328, %s333
          %s335 = smul.addr %s25, 3
          %s336 = smul.addr %s335, 128
          %s337 = scalar_lea.hbm %s0, %s336
          %s339 = sshll.u32 %s331, 4
          %s340 = int_to_ptr.vmem [resolvable:$true] %s339
          %342 = dma.hbm_to_vmem [thread:$0]  %s337, 384, %s340, %s328
        $region48: #{tpu_custom_call.1} parent=43 // pred_fallthru
          _
      $region44: #{tpu_custom_call.1} parent=5 // pred_fallthru
        _
      %p343 = scmp.le.s32.totalorder 1, %s25
      %p344 = scmp.lt.s32.totalorder %s25, 3
      %p345 = pnand %p343, %p344
      %p346 = pneg %p345
      // Predicated region
      $region49: #{tpu_custom_call.1} parent=5 // pred_check
        _
      $region50: #{tpu_custom_call.1} parent=5 // pred_check_branch
        %348 = sbr.rel (%p345) target = $region52
      $region51: #{tpu_custom_call.1} parent=5 // pred_region
        %s349 = ssub.s32 %s25, 1
        %s350 = sand.u32 %s38, 1
        %s351 = scalar_lea.sflag [#allocation3], %s350
        %s352 = sand.u32 %s38, 1
        %s353 = smul.addr %s352, 24
        %s354 = scalar_lea.vmem [#allocation2], %s353
        // Predicated region
        $region53: #{tpu_custom_call.1} parent=51 // pred_check
          %p355 = pneg %p51
        $region54: #{tpu_custom_call.1} parent=51 // pred_check_branch
          %357 = sbr.rel (%p355) target = $region56
        $region55: #{tpu_custom_call.1} parent=51 // pred_region
          %358 = dma.done %s351, 384
        $region56: #{tpu_custom_call.1} parent=51 // pred_fallthru
          _
        // Predicated region
        $region57: #{tpu_custom_call.1} parent=51 // pred_check
          %p359 = pneg %p72
        $region58: #{tpu_custom_call.1} parent=51 // pred_check_branch
          %361 = sbr.rel (%p359) target = $region60
        $region59: #{tpu_custom_call.1} parent=51 // pred_region
          %362 = dma.done [#allocation7], 128
        $region60: #{tpu_custom_call.1} parent=51 // pred_fallthru
          _
        // Predicated region
        $region61: #{tpu_custom_call.1} parent=51 // pred_check
          %p363 = pneg %p93
        $region62: #{tpu_custom_call.1} parent=51 // pred_check_branch
          %365 = sbr.rel (%p363) target = $region64
        $region63: #{tpu_custom_call.1} parent=51 // pred_region
          %366 = dma.done [#allocation7], 3072
        $region64: #{tpu_custom_call.1} parent=51 // pred_fallthru
          _
        // Predicated region
        $region65: #{tpu_custom_call.1} parent=51 // pred_check
          %p367 = pneg %p114
        $region66: #{tpu_custom_call.1} parent=51 // pred_check_branch
          %369 = sbr.rel (%p367) target = $region68
        $region67: #{tpu_custom_call.1} parent=51 // pred_region
          %370 = dma.done [#allocation5], 16
        $region68: #{tpu_custom_call.1} parent=51 // pred_fallthru
          _
        // Predicated region
        $region69: #{tpu_custom_call.1} parent=51 // pred_check
          %p371 = pneg %p135
        $region70: #{tpu_custom_call.1} parent=51 // pred_check_branch
          %373 = sbr.rel (%p371) target = $region72
        $region71: #{tpu_custom_call.1} parent=51 // pred_region
          %374 = dma.done [#allocation11], 16
        $region72: #{tpu_custom_call.1} parent=51 // pred_fallthru
          _
        // Predicated region
        $region73: #{tpu_custom_call.1} parent=51 // pred_check
          %p375 = pneg %p156
        $region74: #{tpu_custom_call.1} parent=51 // pred_check_branch
          %377 = sbr.rel (%p375) target = $region76
        $region75: #{tpu_custom_call.1} parent=51 // pred_region
          %378 = dma.done [#allocation13], 5120
        $region76: #{tpu_custom_call.1} parent=51 // pred_fallthru
          _
        // Predicated region
        $region77: #{tpu_custom_call.1} parent=51 // pred_check
          %p379 = pneg %p177
        $region78: #{tpu_custom_call.1} parent=51 // pred_check_branch
          %381 = sbr.rel (%p379) target = $region80
        $region79: #{tpu_custom_call.1} parent=51 // pred_region
          %382 = dma.done [#allocation11], 48
        $region80: #{tpu_custom_call.1} parent=51 // pred_fallthru
          _
        // Predicated region
        $region81: #{tpu_custom_call.1} parent=51 // pred_check
          %p383 = pneg %p198
        $region82: #{tpu_custom_call.1} parent=51 // pred_check_branch
          %385 = sbr.rel (%p383) target = $region84
        $region83: #{tpu_custom_call.1} parent=51 // pred_region
          %386 = dma.done [#allocation16], 16
        $region84: #{tpu_custom_call.1} parent=51 // pred_fallthru
          _
        %387 = sfence
        %s388 = sand.u32 %s38, 1
        %s389 = scalar_lea.sflag [#allocation3], %s388
        %s390 = sand.u32 %s38, 1
        %s391 = smul.addr %s390, 24
        %s392 = scalar_lea.vmem [#allocation2], %s391
        %p393 = pneg %p51
        %p394 = pneg %p48
        %p395 = pneg %p72
        %p396 = pneg %p69
        %p397 = pneg %p93
        %p398 = pneg %p90
        %p399 = pneg %p114
        %p400 = pneg %p111
        %p401 = pneg %p135
        %p402 = pneg %p132
        %p403 = pneg %p156
        %p404 = pneg %p153
        %p405 = pneg %p177
        %p406 = pneg %p174
        %p407 = pneg %p198
        %p408 = pneg %p195
        %p409 = pneg %p224
        %p410 = pneg %p221
        %s411 = sand.u32 %s211, 1
        %s412 = scalar_lea.sflag [#allocation4], %s411
        %s413 = sand.u32 %s211, 1
        %s414 = smul.addr %s413, 8
        %s415 = scalar_lea.vmem [#allocation17], %s414
        %v417 = vld [vmem:[%s354] sm:$0xff]
        %v418 = vld [vmem:[%s354 + $0x8] sm:$0xff]
        %v419 = vld [vmem:[%s354 + $0x10] sm:$0xff]
        %s420 = sld [smem:[#allocation9]]
        %v421 = vstv %s420
        %v422 = vmul.f32 %v421, %v417
        %v423 = vmul.f32 %v421, %v418
        %v424 = vmul.f32 %v421, %v419
        %s425 = sld [smem:[#allocation9 + $0x9]]
        %v426 = vstv %s425
        %v427 = vmul.f32 %v426, %v417
        %v428 = vmul.f32 %v426, %v418
        %v429 = vmul.f32 %v426, %v419
        %s430 = sld [smem:[#allocation9 + $0x12]]
        %v431 = vstv %s430
        %v432 = vmul.f32 %v431, %v417
        %v433 = vmul.f32 %v431, %v418
        %v434 = vmul.f32 %v431, %v419
        %s435 = sld [smem:[#allocation9 + $0x1b]]
        %v436 = vstv %s435
        %v437 = vmul.f32 %v436, %v417
        %v438 = vmul.f32 %v436, %v418
        %v439 = vmul.f32 %v436, %v419
        %s440 = sld [smem:[#allocation9 + $0x1]]
        %v441 = vstv %s440
        %v442 = vmul.f32 %v441, %v417
        %v443 = vmul.f32 %v441, %v418
        %v444 = vmul.f32 %v441, %v419
        %448 = vrot.lane.b32.xlu0 %v442, 127
        %v449 = vpop.permute.xlu0 %448
        %450 = vrot.lane.b32.xlu0 %v443, 127
        %v451 = vpop.permute.xlu0 %450
        %452 = vrot.lane.b32.xlu0 %v444, 127
        %v453 = vpop.permute.xlu0 %452
        %vm454 = vcmask 1039360
        %v455 = vsel %vm454, %v449, %v451
        %v456 = vsel %vm454, %v451, %v453
        %v460 = vadd.f32 %v422, %v455
        %v461 = vadd.f32 %v423, %v456
        %v462 = vadd.f32 %v424, %v453
        %s463 = sld [smem:[#allocation9 + $0xa]]
        %v464 = vstv %s463
        %v465 = vmul.f32 %v464, %v417
        %v466 = vmul.f32 %v464, %v418
        %v467 = vmul.f32 %v464, %v419
        %471 = vrot.lane.b32.xlu0 %v465, 127
        %v472 = vpop.permute.xlu0 %471
        %473 = vrot.lane.b32.xlu0 %v466, 127
        %v474 = vpop.permute.xlu0 %473
        %475 = vrot.lane.b32.xlu0 %v467, 127
        %v476 = vpop.permute.xlu0 %475
        %v477 = vsel %vm454, %v472, %v474
        %v478 = vsel %vm454, %v474, %v476
        %v482 = vadd.f32 %v427, %v477
        %v483 = vadd.f32 %v428, %v478
        %v484 = vadd.f32 %v429, %v476
        %s485 = sld [smem:[#allocation9 + $0x13]]
        %v486 = vstv %s485
        %v487 = vmul.f32 %v486, %v417
        %v488 = vmul.f32 %v486, %v418
        %v489 = vmul.f32 %v486, %v419
        %493 = vrot.lane.b32.xlu0 %v487, 127
        %v494 = vpop.permute.xlu0 %493
        %495 = vrot.lane.b32.xlu0 %v488, 127
        %v496 = vpop.permute.xlu0 %495
        %497 = vrot.lane.b32.xlu0 %v489, 127
        %v498 = vpop.permute.xlu0 %497
        %v499 = vsel %vm454, %v494, %v496
        %v500 = vsel %vm454, %v496, %v498
        %v504 = vadd.f32 %v432, %v499
        %v505 = vadd.f32 %v433, %v500
        %v506 = vadd.f32 %v434, %v498
        %s507 = sld [smem:[#allocation9 + $0x1c]]
        %v508 = vstv %s507
        %v509 = vmul.f32 %v508, %v417
        %v510 = vmul.f32 %v508, %v418
        %v511 = vmul.f32 %v508, %v419
        %515 = vrot.lane.b32.xlu0 %v509, 127
        %v516 = vpop.permute.xlu0 %515
        %517 = vrot.lane.b32.xlu0 %v510, 127
        %v518 = vpop.permute.xlu0 %517
        %519 = vrot.lane.b32.xlu0 %v511, 127
        %v520 = vpop.permute.xlu0 %519
        %v521 = vsel %vm454, %v516, %v518
        %v522 = vsel %vm454, %v518, %v520
        %v526 = vadd.f32 %v437, %v521
        %v527 = vadd.f32 %v438, %v522
        %v528 = vadd.f32 %v439, %v520
        %s529 = sld [smem:[#allocation9 + $0x2]]
        %v530 = vstv %s529
        %v531 = vmul.f32 %v530, %v417
        %v532 = vmul.f32 %v530, %v418
        %v533 = vmul.f32 %v530, %v419
        %537 = vrot.lane.b32.xlu0 %v531, 126
        %v538 = vpop.permute.xlu0 %537
        %539 = vrot.lane.b32.xlu0 %v532, 126
        %v540 = vpop.permute.xlu0 %539
        %541 = vrot.lane.b32.xlu0 %v533, 126
        %v542 = vpop.permute.xlu0 %541
        %vm543 = vcmask 1031168
        %v544 = vsel %vm543, %v538, %v540
        %v545 = vsel %vm543, %v540, %v542
        %v549 = vadd.f32 %v460, %v544
        %v550 = vadd.f32 %v461, %v545
        %v551 = vadd.f32 %v462, %v542
        %s552 = sld [smem:[#allocation9 + $0xb]]
        %v553 = vstv %s552
        %v554 = vmul.f32 %v553, %v417
        %v555 = vmul.f32 %v553, %v418
        %v556 = vmul.f32 %v553, %v419
        %560 = vrot.lane.b32.xlu0 %v554, 126
        %v561 = vpop.permute.xlu0 %560
        %562 = vrot.lane.b32.xlu0 %v555, 126
        %v563 = vpop.permute.xlu0 %562
        %564 = vrot.lane.b32.xlu0 %v556, 126
        %v565 = vpop.permute.xlu0 %564
        %v566 = vsel %vm543, %v561, %v563
        %v567 = vsel %vm543, %v563, %v565
        %v571 = vadd.f32 %v482, %v566
        %v572 = vadd.f32 %v483, %v567
        %v573 = vadd.f32 %v484, %v565
        %s574 = sld [smem:[#allocation9 + $0x14]]
        %v575 = vstv %s574
        %v576 = vmul.f32 %v575, %v417
        %v577 = vmul.f32 %v575, %v418
        %v578 = vmul.f32 %v575, %v419
        %582 = vrot.lane.b32.xlu0 %v576, 126
        %v583 = vpop.permute.xlu0 %582
        %584 = vrot.lane.b32.xlu0 %v577, 126
        %v585 = vpop.permute.xlu0 %584
        %586 = vrot.lane.b32.xlu0 %v578, 126
        %v587 = vpop.permute.xlu0 %586
        %v588 = vsel %vm543, %v583, %v585
        %v589 = vsel %vm543, %v585, %v587
        %v593 = vadd.f32 %v504, %v588
        %v594 = vadd.f32 %v505, %v589
        %v595 = vadd.f32 %v506, %v587
        %s596 = sld [smem:[#allocation9 + $0x1d]]
        %v597 = vstv %s596
        %v598 = vmul.f32 %v597, %v417
        %v599 = vmul.f32 %v597, %v418
        %v600 = vmul.f32 %v597, %v419
        %604 = vrot.lane.b32.xlu0 %v598, 126
        %v605 = vpop.permute.xlu0 %604
        %606 = vrot.lane.b32.xlu0 %v599, 126
        %v607 = vpop.permute.xlu0 %606
        %608 = vrot.lane.b32.xlu0 %v600, 126
        %v609 = vpop.permute.xlu0 %608
        %v610 = vsel %vm543, %v605, %v607
        %v611 = vsel %vm543, %v607, %v609
        %v615 = vadd.f32 %v526, %v610
        %v616 = vadd.f32 %v527, %v611
        %v617 = vadd.f32 %v528, %v609
        %s618 = sld [smem:[#allocation9 + $0x3]]
        %v619 = vstv %s618
        %v620 = vmul.f32 %v619, %v417
        %v621 = vmul.f32 %v619, %v418
        %v622 = vmul.f32 %v619, %v419
        %626 = vrot.lane.b32.xlu0 %v620, 110
        %v627 = vpop.permute.xlu0 %626
        %628 = vrot.lane.b32.xlu0 %v621, 110
        %v629 = vpop.permute.xlu0 %628
        %630 = vrot.lane.b32.xlu0 %v622, 110
        %v631 = vpop.permute.xlu0 %630
        %vm632 = vcmask 900096
        %v633 = vsel %vm632, %v627, %v629
        %v634 = vsel %vm632, %v629, %v631
        %v638 = vadd.f32 %v549, %v633
        %v639 = vadd.f32 %v550, %v634
        %v640 = vadd.f32 %v551, %v631
        %s641 = sld [smem:[#allocation9 + $0xc]]
        %v642 = vstv %s641
        %v643 = vmul.f32 %v642, %v417
        %v644 = vmul.f32 %v642, %v418
        %v645 = vmul.f32 %v642, %v419
        %649 = vrot.lane.b32.xlu0 %v643, 110
        %v650 = vpop.permute.xlu0 %649
        %651 = vrot.lane.b32.xlu0 %v644, 110
        %v652 = vpop.permute.xlu0 %651
        %653 = vrot.lane.b32.xlu0 %v645, 110
        %v654 = vpop.permute.xlu0 %653
        %v655 = vsel %vm632, %v650, %v652
        %v656 = vsel %vm632, %v652, %v654
        %v660 = vadd.f32 %v571, %v655
        %v661 = vadd.f32 %v572, %v656
        %v662 = vadd.f32 %v573, %v654
        %s663 = sld [smem:[#allocation9 + $0x15]]
        %v664 = vstv %s663
        %v665 = vmul.f32 %v664, %v417
        %v666 = vmul.f32 %v664, %v418
        %v667 = vmul.f32 %v664, %v419
        %671 = vrot.lane.b32.xlu0 %v665, 110
        %v672 = vpop.permute.xlu0 %671
        %673 = vrot.lane.b32.xlu0 %v666, 110
        %v674 = vpop.permute.xlu0 %673
        %675 = vrot.lane.b32.xlu0 %v667, 110
        %v676 = vpop.permute.xlu0 %675
        %v677 = vsel %vm632, %v672, %v674
        %v678 = vsel %vm632, %v674, %v676
        %v682 = vadd.f32 %v593, %v677
        %v683 = vadd.f32 %v594, %v678
        %v684 = vadd.f32 %v595, %v676
        %s685 = sld [smem:[#allocation9 + $0x1e]]
        %v686 = vstv %s685
        %v687 = vmul.f32 %v686, %v417
        %v688 = vmul.f32 %v686, %v418
        %v689 = vmul.f32 %v686, %v419
        %693 = vrot.lane.b32.xlu0 %v687, 110
        %v694 = vpop.permute.xlu0 %693
        %695 = vrot.lane.b32.xlu0 %v688, 110
        %v696 = vpop.permute.xlu0 %695
        %697 = vrot.lane.b32.xlu0 %v689, 110
        %v698 = vpop.permute.xlu0 %697
        %v699 = vsel %vm632, %v694, %v696
        %v700 = vsel %vm632, %v696, %v698
        %v704 = vadd.f32 %v615, %v699
        %v705 = vadd.f32 %v616, %v700
        %v706 = vadd.f32 %v617, %v698
        %s707 = sld [smem:[#allocation9 + $0x4]]
        %v708 = vstv %s707
        %v709 = vmul.f32 %v708, %v417
        %v710 = vmul.f32 %v708, %v418
        %v711 = vmul.f32 %v708, %v419
        %715 = vrot.lane.b32.xlu0 %v709, 109
        %v716 = vpop.permute.xlu0 %715
        %717 = vrot.lane.b32.xlu0 %v710, 109
        %v718 = vpop.permute.xlu0 %717
        %719 = vrot.lane.b32.xlu0 %v711, 109
        %v720 = vpop.permute.xlu0 %719
        %vm721 = vcmask 891904
        %v722 = vsel %vm721, %v716, %v718
        %v723 = vsel %vm721, %v718, %v720
        %v727 = vadd.f32 %v638, %v722
        %v728 = vadd.f32 %v639, %v723
        %v729 = vadd.f32 %v640, %v720
        %s730 = sld [smem:[#allocation9 + $0xd]]
        %v731 = vstv %s730
        %v732 = vmul.f32 %v731, %v417
        %v733 = vmul.f32 %v731, %v418
        %v734 = vmul.f32 %v731, %v419
        %738 = vrot.lane.b32.xlu0 %v732, 109
        %v739 = vpop.permute.xlu0 %738
        %740 = vrot.lane.b32.xlu0 %v733, 109
        %v741 = vpop.permute.xlu0 %740
        %742 = vrot.lane.b32.xlu0 %v734, 109
        %v743 = vpop.permute.xlu0 %742
        %v744 = vsel %vm721, %v739, %v741
        %v745 = vsel %vm721, %v741, %v743
        %v749 = vadd.f32 %v660, %v744
        %v750 = vadd.f32 %v661, %v745
        %v751 = vadd.f32 %v662, %v743
        %s752 = sld [smem:[#allocation9 + $0x16]]
        %v753 = vstv %s752
        %v754 = vmul.f32 %v753, %v417
        %v755 = vmul.f32 %v753, %v418
        %v756 = vmul.f32 %v753, %v419
        %760 = vrot.lane.b32.xlu0 %v754, 109
        %v761 = vpop.permute.xlu0 %760
        %762 = vrot.lane.b32.xlu0 %v755, 109
        %v763 = vpop.permute.xlu0 %762
        %764 = vrot.lane.b32.xlu0 %v756, 109
        %v765 = vpop.permute.xlu0 %764
        %v766 = vsel %vm721, %v761, %v763
        %v767 = vsel %vm721, %v763, %v765
        %v771 = vadd.f32 %v682, %v766
        %v772 = vadd.f32 %v683, %v767
        %v773 = vadd.f32 %v684, %v765
        %s774 = sld [smem:[#allocation9 + $0x1f]]
        %v775 = vstv %s774
        %v776 = vmul.f32 %v775, %v417
        %v777 = vmul.f32 %v775, %v418
        %v778 = vmul.f32 %v775, %v419
        %782 = vrot.lane.b32.xlu0 %v776, 109
        %v783 = vpop.permute.xlu0 %782
        %784 = vrot.lane.b32.xlu0 %v777, 109
        %v785 = vpop.permute.xlu0 %784
        %786 = vrot.lane.b32.xlu0 %v778, 109
        %v787 = vpop.permute.xlu0 %786
        %v788 = vsel %vm721, %v783, %v785
        %v789 = vsel %vm721, %v785, %v787
        %v793 = vadd.f32 %v704, %v788
        %v794 = vadd.f32 %v705, %v789
        %v795 = vadd.f32 %v706, %v787
        %s796 = sld [smem:[#allocation9 + $0x5]]
        %v797 = vstv %s796
        %v798 = vmul.f32 %v797, %v417
        %v799 = vmul.f32 %v797, %v418
        %v800 = vmul.f32 %v797, %v419
        %804 = vrot.lane.b32.xlu0 %v798, 108
        %v805 = vpop.permute.xlu0 %804
        %806 = vrot.lane.b32.xlu0 %v799, 108
        %v807 = vpop.permute.xlu0 %806
        %808 = vrot.lane.b32.xlu0 %v800, 108
        %v809 = vpop.permute.xlu0 %808
        %vm810 = vcmask 883712
        %v811 = vsel %vm810, %v805, %v807
        %v812 = vsel %vm810, %v807, %v809
        %v816 = vadd.f32 %v727, %v811
        %v817 = vadd.f32 %v728, %v812
        %v818 = vadd.f32 %v729, %v809
        %s819 = sld [smem:[#allocation9 + $0xe]]
        %v820 = vstv %s819
        %v821 = vmul.f32 %v820, %v417
        %v822 = vmul.f32 %v820, %v418
        %v823 = vmul.f32 %v820, %v419
        %827 = vrot.lane.b32.xlu0 %v821, 108
        %v828 = vpop.permute.xlu0 %827
        %829 = vrot.lane.b32.xlu0 %v822, 108
        %v830 = vpop.permute.xlu0 %829
        %831 = vrot.lane.b32.xlu0 %v823, 108
        %v832 = vpop.permute.xlu0 %831
        %v833 = vsel %vm810, %v828, %v830
        %v834 = vsel %vm810, %v830, %v832
        %v838 = vadd.f32 %v749, %v833
        %v839 = vadd.f32 %v750, %v834
        %v840 = vadd.f32 %v751, %v832
        %s841 = sld [smem:[#allocation9 + $0x17]]
        %v842 = vstv %s841
        %v843 = vmul.f32 %v842, %v417
        %v844 = vmul.f32 %v842, %v418
        %v845 = vmul.f32 %v842, %v419
        %849 = vrot.lane.b32.xlu0 %v843, 108
        %v850 = vpop.permute.xlu0 %849
        %851 = vrot.lane.b32.xlu0 %v844, 108
        %v852 = vpop.permute.xlu0 %851
        %853 = vrot.lane.b32.xlu0 %v845, 108
        %v854 = vpop.permute.xlu0 %853
        %v855 = vsel %vm810, %v850, %v852
        %v856 = vsel %vm810, %v852, %v854
        %v860 = vadd.f32 %v771, %v855
        %v861 = vadd.f32 %v772, %v856
        %v862 = vadd.f32 %v773, %v854
        %s863 = sld [smem:[#allocation9 + $0x20]]
        %v864 = vstv %s863
        %v865 = vmul.f32 %v864, %v417
        %v866 = vmul.f32 %v864, %v418
        %v867 = vmul.f32 %v864, %v419
        %871 = vrot.lane.b32.xlu0 %v865, 108
        %v872 = vpop.permute.xlu0 %871
        %873 = vrot.lane.b32.xlu0 %v866, 108
        %v874 = vpop.permute.xlu0 %873
        %875 = vrot.lane.b32.xlu0 %v867, 108
        %v876 = vpop.permute.xlu0 %875
        %v877 = vsel %vm810, %v872, %v874
        %v878 = vsel %vm810, %v874, %v876
        %v882 = vadd.f32 %v793, %v877
        %v883 = vadd.f32 %v794, %v878
        %v884 = vadd.f32 %v795, %v876
        %s885 = sld [smem:[#allocation9 + $0x6]]
        %v886 = vstv %s885
        %v887 = vmul.f32 %v886, %v417
        %v888 = vmul.f32 %v886, %v418
        %v889 = vmul.f32 %v886, %v419
        %893 = vrot.lane.b32.xlu0 %v887, 92
        %v894 = vpop.permute.xlu0 %893
        %895 = vrot.lane.b32.xlu0 %v888, 92
        %v896 = vpop.permute.xlu0 %895
        %897 = vrot.lane.b32.xlu0 %v889, 92
        %v898 = vpop.permute.xlu0 %897
        %vm899 = vcmask 752640
        %v900 = vsel %vm899, %v894, %v896
        %v901 = vsel %vm899, %v896, %v898
        %v905 = vadd.f32 %v816, %v900
        %v906 = vadd.f32 %v817, %v901
        %v907 = vadd.f32 %v818, %v898
        %s908 = sld [smem:[#allocation9 + $0xf]]
        %v909 = vstv %s908
        %v910 = vmul.f32 %v909, %v417
        %v911 = vmul.f32 %v909, %v418
        %v912 = vmul.f32 %v909, %v419
        %916 = vrot.lane.b32.xlu0 %v910, 92
        %v917 = vpop.permute.xlu0 %916
        %918 = vrot.lane.b32.xlu0 %v911, 92
        %v919 = vpop.permute.xlu0 %918
        %920 = vrot.lane.b32.xlu0 %v912, 92
        %v921 = vpop.permute.xlu0 %920
        %v922 = vsel %vm899, %v917, %v919
        %v923 = vsel %vm899, %v919, %v921
        %v927 = vadd.f32 %v838, %v922
        %v928 = vadd.f32 %v839, %v923
        %v929 = vadd.f32 %v840, %v921
        %s930 = sld [smem:[#allocation9 + $0x18]]
        %v931 = vstv %s930
        %v932 = vmul.f32 %v931, %v417
        %v933 = vmul.f32 %v931, %v418
        %v934 = vmul.f32 %v931, %v419
        %938 = vrot.lane.b32.xlu0 %v932, 92
        %v939 = vpop.permute.xlu0 %938
        %940 = vrot.lane.b32.xlu0 %v933, 92
        %v941 = vpop.permute.xlu0 %940
        %942 = vrot.lane.b32.xlu0 %v934, 92
        %v943 = vpop.permute.xlu0 %942
        %v944 = vsel %vm899, %v939, %v941
        %v945 = vsel %vm899, %v941, %v943
        %v949 = vadd.f32 %v860, %v944
        %v950 = vadd.f32 %v861, %v945
        %v951 = vadd.f32 %v862, %v943
        %s952 = sld [smem:[#allocation9 + $0x21]]
        %v953 = vstv %s952
        %v954 = vmul.f32 %v953, %v417
        %v955 = vmul.f32 %v953, %v418
        %v956 = vmul.f32 %v953, %v419
        %960 = vrot.lane.b32.xlu0 %v954, 92
        %v961 = vpop.permute.xlu0 %960
        %962 = vrot.lane.b32.xlu0 %v955, 92
        %v963 = vpop.permute.xlu0 %962
        %964 = vrot.lane.b32.xlu0 %v956, 92
        %v965 = vpop.permute.xlu0 %964
        %v966 = vsel %vm899, %v961, %v963
        %v967 = vsel %vm899, %v963, %v965
        %v971 = vadd.f32 %v882, %v966
        %v972 = vadd.f32 %v883, %v967
        %v973 = vadd.f32 %v884, %v965
        %s974 = sld [smem:[#allocation9 + $0x7]]
        %v975 = vstv %s974
        %v976 = vmul.f32 %v975, %v417
        %v977 = vmul.f32 %v975, %v418
        %v978 = vmul.f32 %v975, %v419
        %982 = vrot.lane.b32.xlu0 %v976, 91
        %v983 = vpop.permute.xlu0 %982
        %984 = vrot.lane.b32.xlu0 %v977, 91
        %v985 = vpop.permute.xlu0 %984
        %986 = vrot.lane.b32.xlu0 %v978, 91
        %v987 = vpop.permute.xlu0 %986
        %vm988 = vcmask 744448
        %v989 = vsel %vm988, %v983, %v985
        %v990 = vsel %vm988, %v985, %v987
        %v994 = vadd.f32 %v905, %v989
        %v995 = vadd.f32 %v906, %v990
        %v996 = vadd.f32 %v907, %v987
        %s997 = sld [smem:[#allocation9 + $0x10]]
        %v998 = vstv %s997
        %v999 = vmul.f32 %v998, %v417
        %v1000 = vmul.f32 %v998, %v418
        %v1001 = vmul.f32 %v998, %v419
        %1005 = vrot.lane.b32.xlu0 %v999, 91
        %v1006 = vpop.permute.xlu0 %1005
        %1007 = vrot.lane.b32.xlu0 %v1000, 91
        %v1008 = vpop.permute.xlu0 %1007
        %1009 = vrot.lane.b32.xlu0 %v1001, 91
        %v1010 = vpop.permute.xlu0 %1009
        %v1011 = vsel %vm988, %v1006, %v1008
        %v1012 = vsel %vm988, %v1008, %v1010
        %v1016 = vadd.f32 %v927, %v1011
        %v1017 = vadd.f32 %v928, %v1012
        %v1018 = vadd.f32 %v929, %v1010
        %s1019 = sld [smem:[#allocation9 + $0x19]]
        %v1020 = vstv %s1019
        %v1021 = vmul.f32 %v1020, %v417
        %v1022 = vmul.f32 %v1020, %v418
        %v1023 = vmul.f32 %v1020, %v419
        %1027 = vrot.lane.b32.xlu0 %v1021, 91
        %v1028 = vpop.permute.xlu0 %1027
        %1029 = vrot.lane.b32.xlu0 %v1022, 91
        %v1030 = vpop.permute.xlu0 %1029
        %1031 = vrot.lane.b32.xlu0 %v1023, 91
        %v1032 = vpop.permute.xlu0 %1031
        %v1033 = vsel %vm988, %v1028, %v1030
        %v1034 = vsel %vm988, %v1030, %v1032
        %v1038 = vadd.f32 %v949, %v1033
        %v1039 = vadd.f32 %v950, %v1034
        %v1040 = vadd.f32 %v951, %v1032
        %s1041 = sld [smem:[#allocation9 + $0x22]]
        %v1042 = vstv %s1041
        %v1043 = vmul.f32 %v1042, %v417
        %v1044 = vmul.f32 %v1042, %v418
        %v1045 = vmul.f32 %v1042, %v419
        %1049 = vrot.lane.b32.xlu0 %v1043, 91
        %v1050 = vpop.permute.xlu0 %1049
        %1051 = vrot.lane.b32.xlu0 %v1044, 91
        %v1052 = vpop.permute.xlu0 %1051
        %1053 = vrot.lane.b32.xlu0 %v1045, 91
        %v1054 = vpop.permute.xlu0 %1053
        %v1055 = vsel %vm988, %v1050, %v1052
        %v1056 = vsel %vm988, %v1052, %v1054
        %v1060 = vadd.f32 %v971, %v1055
        %v1061 = vadd.f32 %v972, %v1056
        %v1062 = vadd.f32 %v973, %v1054
        %s1063 = sld [smem:[#allocation9 + $0x8]]
        %v1064 = vstv %s1063
        %v1065 = vmul.f32 %v1064, %v417
        %v1066 = vmul.f32 %v1064, %v418
        %v1067 = vmul.f32 %v1064, %v419
        %1071 = vrot.lane.b32.xlu0 %v1065, 90
        %v1072 = vpop.permute.xlu0 %1071
        %1073 = vrot.lane.b32.xlu0 %v1066, 90
        %v1074 = vpop.permute.xlu0 %1073
        %1075 = vrot.lane.b32.xlu0 %v1067, 90
        %v1076 = vpop.permute.xlu0 %1075
        %vm1077 = vcmask 736256
        %v1078 = vsel %vm1077, %v1072, %v1074
        %v1079 = vsel %vm1077, %v1074, %v1076
        %v1083 = vadd.f32 %v994, %v1078
        %v1084 = vadd.f32 %v995, %v1079
        %v1085 = vadd.f32 %v996, %v1076
        %s1086 = sld [smem:[#allocation9 + $0x11]]
        %v1087 = vstv %s1086
        %v1088 = vmul.f32 %v1087, %v417
        %v1089 = vmul.f32 %v1087, %v418
        %v1090 = vmul.f32 %v1087, %v419
        %1094 = vrot.lane.b32.xlu0 %v1088, 90
        %v1095 = vpop.permute.xlu0 %1094
        %1096 = vrot.lane.b32.xlu0 %v1089, 90
        %v1097 = vpop.permute.xlu0 %1096
        %1098 = vrot.lane.b32.xlu0 %v1090, 90
        %v1099 = vpop.permute.xlu0 %1098
        %v1100 = vsel %vm1077, %v1095, %v1097
        %v1101 = vsel %vm1077, %v1097, %v1099
        %v1105 = vadd.f32 %v1016, %v1100
        %v1106 = vadd.f32 %v1017, %v1101
        %v1107 = vadd.f32 %v1018, %v1099
        %s1108 = sld [smem:[#allocation9 + $0x1a]]
        %v1109 = vstv %s1108
        %v1110 = vmul.f32 %v1109, %v417
        %v1111 = vmul.f32 %v1109, %v418
        %v1112 = vmul.f32 %v1109, %v419
        %1116 = vrot.lane.b32.xlu0 %v1110, 90
        %v1117 = vpop.permute.xlu0 %1116
        %1118 = vrot.lane.b32.xlu0 %v1111, 90
        %v1119 = vpop.permute.xlu0 %1118
        %1120 = vrot.lane.b32.xlu0 %v1112, 90
        %v1121 = vpop.permute.xlu0 %1120
        %v1122 = vsel %vm1077, %v1117, %v1119
        %v1123 = vsel %vm1077, %v1119, %v1121
        %v1127 = vadd.f32 %v1038, %v1122
        %v1128 = vadd.f32 %v1039, %v1123
        %v1129 = vadd.f32 %v1040, %v1121
        %s1130 = sld [smem:[#allocation9 + $0x23]]
        %v1131 = vstv %s1130
        %v1132 = vmul.f32 %v1131, %v417
        %v1133 = vmul.f32 %v1131, %v418
        %v1134 = vmul.f32 %v1131, %v419
        %1138 = vrot.lane.b32.xlu0 %v1132, 90
        %v1139 = vpop.permute.xlu0 %1138
        %1140 = vrot.lane.b32.xlu0 %v1133, 90
        %v1141 = vpop.permute.xlu0 %1140
        %1142 = vrot.lane.b32.xlu0 %v1134, 90
        %v1143 = vpop.permute.xlu0 %1142
        %v1144 = vsel %vm1077, %v1139, %v1141
        %v1145 = vsel %vm1077, %v1141, %v1143
        %v1149 = vadd.f32 %v1060, %v1144
        %v1150 = vadd.f32 %v1061, %v1145
        %v1151 = vadd.f32 %v1062, %v1143
        %s1152 = sld [smem:[#allocation10]]
        %v1153 = vstv %s1152
        %v1154 = vadd.f32 %v1083, %v1153
        %v1155 = vadd.f32 %v1084, %v1153
        %v1156 = vadd.f32 %v1085, %v1153
        %v1157 = vmax.f32 %v1154, 0.0
        %v1158 = vmax.f32 %v1155, 0.0
        %v1159 = vmax.f32 %v1156, 0.0
        %1163 = vrot.lane.b32.xlu0 %v1157, 127
        %v1164 = vpop.permute.xlu0 %1163
        %1165 = vrot.lane.b32.xlu0 %v1158, 127
        %v1166 = vpop.permute.xlu0 %1165
        %1167 = vrot.lane.b32.xlu0 %v1159, 127
        %v1168 = vpop.permute.xlu0 %1167
        %v1169 = vsel %vm454, %v1164, %v1166
        %v1170 = vsel %vm454, %v1166, %v1168
        %v1174 = vmax.f32 %v1157, %v1169
        %v1175 = vmax.f32 %v1158, %v1170
        %v1176 = vmax.f32 %v1159, %v1168
        %1177 = vrot.lane.b32.xlu0 %v1157, 110
        %v1178 = vpop.permute.xlu0 %1177
        %1179 = vrot.lane.b32.xlu0 %v1158, 110
        %v1180 = vpop.permute.xlu0 %1179
        %1181 = vrot.lane.b32.xlu0 %v1159, 110
        %v1182 = vpop.permute.xlu0 %1181
        %v1183 = vsel %vm632, %v1178, %v1180
        %v1184 = vsel %vm632, %v1180, %v1182
        %v1188 = vmax.f32 %v1174, %v1183
        %v1189 = vmax.f32 %v1175, %v1184
        %v1190 = vmax.f32 %v1176, %v1182
        %1191 = vrot.lane.b32.xlu0 %v1157, 109
        %v1192 = vpop.permute.xlu0 %1191
        %1193 = vrot.lane.b32.xlu0 %v1158, 109
        %v1194 = vpop.permute.xlu0 %1193
        %1195 = vrot.lane.b32.xlu0 %v1159, 109
        %v1196 = vpop.permute.xlu0 %1195
        %v1197 = vsel %vm721, %v1192, %v1194
        %v1198 = vsel %vm721, %v1194, %v1196
        %v1202 = vmax.f32 %v1188, %v1197
        %v1203 = vmax.f32 %v1189, %v1198
        %v1204 = vmax.f32 %v1190, %v1196
        %s1205 = sld [smem:[#allocation10 + $0x1]]
        %v1206 = vstv %s1205
        %v1207 = vadd.f32 %v1105, %v1206
        %v1208 = vadd.f32 %v1106, %v1206
        %v1209 = vadd.f32 %v1107, %v1206
        %v1210 = vmax.f32 %v1207, 0.0
        %v1211 = vmax.f32 %v1208, 0.0
        %v1212 = vmax.f32 %v1209, 0.0
        %1216 = vrot.lane.b32.xlu0 %v1210, 127
        %v1217 = vpop.permute.xlu0 %1216
        %1218 = vrot.lane.b32.xlu0 %v1211, 127
        %v1219 = vpop.permute.xlu0 %1218
        %1220 = vrot.lane.b32.xlu0 %v1212, 127
        %v1221 = vpop.permute.xlu0 %1220
        %v1222 = vsel %vm454, %v1217, %v1219
        %v1223 = vsel %vm454, %v1219, %v1221
        %v1227 = vmax.f32 %v1210, %v1222
        %v1228 = vmax.f32 %v1211, %v1223
        %v1229 = vmax.f32 %v1212, %v1221
        %1230 = vrot.lane.b32.xlu0 %v1210, 110
        %v1231 = vpop.permute.xlu0 %1230
        %1232 = vrot.lane.b32.xlu0 %v1211, 110
        %v1233 = vpop.permute.xlu0 %1232
        %1234 = vrot.lane.b32.xlu0 %v1212, 110
        %v1235 = vpop.permute.xlu0 %1234
        %v1236 = vsel %vm632, %v1231, %v1233
        %v1237 = vsel %vm632, %v1233, %v1235
        %v1241 = vmax.f32 %v1227, %v1236
        %v1242 = vmax.f32 %v1228, %v1237
        %v1243 = vmax.f32 %v1229, %v1235
        %1244 = vrot.lane.b32.xlu0 %v1210, 109
        %v1245 = vpop.permute.xlu0 %1244
        %1246 = vrot.lane.b32.xlu0 %v1211, 109
        %v1247 = vpop.permute.xlu0 %1246
        %1248 = vrot.lane.b32.xlu0 %v1212, 109
        %v1249 = vpop.permute.xlu0 %1248
        %v1250 = vsel %vm721, %v1245, %v1247
        %v1251 = vsel %vm721, %v1247, %v1249
        %v1255 = vmax.f32 %v1241, %v1250
        %v1256 = vmax.f32 %v1242, %v1251
        %v1257 = vmax.f32 %v1243, %v1249
        %s1258 = sld [smem:[#allocation10 + $0x2]]
        %v1259 = vstv %s1258
        %v1260 = vadd.f32 %v1127, %v1259
        %v1261 = vadd.f32 %v1128, %v1259
        %v1262 = vadd.f32 %v1129, %v1259
        %v1263 = vmax.f32 %v1260, 0.0
        %v1264 = vmax.f32 %v1261, 0.0
        %v1265 = vmax.f32 %v1262, 0.0
        %1269 = vrot.lane.b32.xlu0 %v1263, 127
        %v1270 = vpop.permute.xlu0 %1269
        %1271 = vrot.lane.b32.xlu0 %v1264, 127
        %v1272 = vpop.permute.xlu0 %1271
        %1273 = vrot.lane.b32.xlu0 %v1265, 127
        %v1274 = vpop.permute.xlu0 %1273
        %v1275 = vsel %vm454, %v1270, %v1272
        %v1276 = vsel %vm454, %v1272, %v1274
        %v1280 = vmax.f32 %v1263, %v1275
        %v1281 = vmax.f32 %v1264, %v1276
        %v1282 = vmax.f32 %v1265, %v1274
        %1283 = vrot.lane.b32.xlu0 %v1263, 110
        %v1284 = vpop.permute.xlu0 %1283
        %1285 = vrot.lane.b32.xlu0 %v1264, 110
        %v1286 = vpop.permute.xlu0 %1285
        %1287 = vrot.lane.b32.xlu0 %v1265, 110
        %v1288 = vpop.permute.xlu0 %1287
        %v1289 = vsel %vm632, %v1284, %v1286
        %v1290 = vsel %vm632, %v1286, %v1288
        %v1294 = vmax.f32 %v1280, %v1289
        %v1295 = vmax.f32 %v1281, %v1290
        %v1296 = vmax.f32 %v1282, %v1288
        %1297 = vrot.lane.b32.xlu0 %v1263, 109
        %v1298 = vpop.permute.xlu0 %1297
        %1299 = vrot.lane.b32.xlu0 %v1264, 109
        %v1300 = vpop.permute.xlu0 %1299
        %1301 = vrot.lane.b32.xlu0 %v1265, 109
        %v1302 = vpop.permute.xlu0 %1301
        %v1303 = vsel %vm721, %v1298, %v1300
        %v1304 = vsel %vm721, %v1300, %v1302
        %v1308 = vmax.f32 %v1294, %v1303
        %v1309 = vmax.f32 %v1295, %v1304
        %v1310 = vmax.f32 %v1296, %v1302
        %s1311 = sld [smem:[#allocation10 + $0x3]]
        %v1312 = vstv %s1311
        %v1313 = vadd.f32 %v1149, %v1312
        %v1314 = vadd.f32 %v1150, %v1312
        %v1315 = vadd.f32 %v1151, %v1312
        %v1316 = vmax.f32 %v1313, 0.0
        %v1317 = vmax.f32 %v1314, 0.0
        %v1318 = vmax.f32 %v1315, 0.0
        %1322 = vrot.lane.b32.xlu0 %v1316, 127
        %v1323 = vpop.permute.xlu0 %1322
        %1324 = vrot.lane.b32.xlu0 %v1317, 127
        %v1325 = vpop.permute.xlu0 %1324
        %1326 = vrot.lane.b32.xlu0 %v1318, 127
        %v1327 = vpop.permute.xlu0 %1326
        %v1328 = vsel %vm454, %v1323, %v1325
        %v1329 = vsel %vm454, %v1325, %v1327
        %v1333 = vmax.f32 %v1316, %v1328
        %v1334 = vmax.f32 %v1317, %v1329
        %v1335 = vmax.f32 %v1318, %v1327
        %1336 = vrot.lane.b32.xlu0 %v1316, 110
        %v1337 = vpop.permute.xlu0 %1336
        %1338 = vrot.lane.b32.xlu0 %v1317, 110
        %v1339 = vpop.permute.xlu0 %1338
        %1340 = vrot.lane.b32.xlu0 %v1318, 110
        %v1341 = vpop.permute.xlu0 %1340
        %v1342 = vsel %vm632, %v1337, %v1339
        %v1343 = vsel %vm632, %v1339, %v1341
        %v1347 = vmax.f32 %v1333, %v1342
        %v1348 = vmax.f32 %v1334, %v1343
        %v1349 = vmax.f32 %v1335, %v1341
        %1350 = vrot.lane.b32.xlu0 %v1316, 109
        %v1351 = vpop.permute.xlu0 %1350
        %1352 = vrot.lane.b32.xlu0 %v1317, 109
        %v1353 = vpop.permute.xlu0 %1352
        %1354 = vrot.lane.b32.xlu0 %v1318, 109
        %v1355 = vpop.permute.xlu0 %1354
        %v1356 = vsel %vm721, %v1351, %v1353
        %v1357 = vsel %vm721, %v1353, %v1355
        %v1361 = vmax.f32 %v1347, %v1356
        %v1362 = vmax.f32 %v1348, %v1357
        %v1363 = vmax.f32 %v1349, %v1355
        %vm1364 = vcmask 89088
        %v1365 = vsel %vm1364, %v1204, 0.0
        %v1366 = vsel %vm1364, %v1257, 0.0
        %v1367 = vsel %vm1364, %v1310, 0.0
        %v1368 = vsel %vm1364, %v1363, 0.0
        %v1369 = vpack.c.bf16 %v1255, %v1202
        %v1370 = vpack.c.bf16 %v1256, %v1203
        %v1371 = vpack.c.bf16 %v1366, %v1365
        %v1372 = vpack.c.bf16 %v1361, %v1308
        %v1373 = vpack.c.bf16 %v1362, %v1309
        %v1374 = vpack.c.bf16 %v1368, %v1367
        %v1375 = vunpack.c.l.bf16 %v1369
        %v1376 = vunpack.c.l.bf16 %v1370
        %v1377 = vunpack.c.l.bf16 %v1371
        %v1378 = vunpack.c.h.bf16 %v1369
        %v1379 = vunpack.c.h.bf16 %v1370
        %v1380 = vunpack.c.h.bf16 %v1371
        %v1381 = vunpack.c.l.bf16 %v1372
        %v1382 = vunpack.c.l.bf16 %v1373
        %v1383 = vunpack.c.l.bf16 %v1374
        %v1384 = vunpack.c.h.bf16 %v1372
        %v1385 = vunpack.c.h.bf16 %v1373
        %v1386 = vunpack.c.h.bf16 %v1374
        %v1387 = vsub.f32 %v1202, %v1375
        %v1388 = vsub.f32 %v1203, %v1376
        %v1389 = vsub.f32 %v1365, %v1377
        %v1390 = vsub.f32 %v1255, %v1378
        %v1391 = vsub.f32 %v1256, %v1379
        %v1392 = vsub.f32 %v1366, %v1380
        %v1393 = vsub.f32 %v1308, %v1381
        %v1394 = vsub.f32 %v1309, %v1382
        %v1395 = vsub.f32 %v1367, %v1383
        %v1396 = vsub.f32 %v1361, %v1384
        %v1397 = vsub.f32 %v1362, %v1385
        %v1398 = vsub.f32 %v1368, %v1386
        %v1399 = vpack.c.bf16 %v1390, %v1387
        %v1400 = vpack.c.bf16 %v1391, %v1388
        %v1401 = vpack.c.bf16 %v1392, %v1389
        %v1402 = vpack.c.bf16 %v1396, %v1393
        %v1403 = vpack.c.bf16 %v1397, %v1394
        %v1404 = vpack.c.bf16 %v1398, %v1395
        %v1405 = vld [vmem:[#allocation8] sm:$0xf]
        %v1406 = vld [vmem:[#allocation8 + $0x4] sm:$0xf]
        %v1407 = vld [vmem:[#allocation8 + $0x8] sm:$0xf]
        %v1408 = vld [vmem:[#allocation8 + $0xc] sm:$0xf]
        %v1409 = vld [vmem:[#allocation8 + $0x10] sm:$0xf]
        %v1410 = vld [vmem:[#allocation8 + $0x14] sm:$0xf]
        %v1411 = vld [vmem:[#allocation8 + $0x18] sm:$0xf]
        %v1412 = vld [vmem:[#allocation8 + $0x1c] sm:$0xf]
        %v1413 = vld [vmem:[#allocation8 + $0x20] sm:$0xf]
        %v1414 = vld [vmem:[#allocation8 + $0x24] sm:$0xf]
        %v1415 = vld [vmem:[#allocation8 + $0x28] sm:$0xf]
        %v1416 = vld [vmem:[#allocation8 + $0x2c] sm:$0xf]
        %v1417 = vld [vmem:[#allocation8 + $0x30] sm:$0xf]
        %v1418 = vld [vmem:[#allocation8 + $0x34] sm:$0xf]
        %v1419 = vld [vmem:[#allocation8 + $0x38] sm:$0xf]
        %v1420 = vld [vmem:[#allocation8 + $0x3c] sm:$0xf]
        %v1421 = vld [vmem:[#allocation8 + $0x40] sm:$0xf]
        %v1422 = vld [vmem:[#allocation8 + $0x44] sm:$0xf]
        %v1423 = vld [vmem:[#allocation8 + $0x48] sm:$0xf]
        %v1424 = vld [vmem:[#allocation8 + $0x4c] sm:$0xf]
        %v1425 = vld [vmem:[#allocation8 + $0x50] sm:$0xf]
        %v1426 = vld [vmem:[#allocation8 + $0x54] sm:$0xf]
        %v1427 = vld [vmem:[#allocation8 + $0x58] sm:$0xf]
        %v1428 = vld [vmem:[#allocation8 + $0x5c] sm:$0xf]
        %v1429 = vld [vmem:[#allocation8 + $0x60] sm:$0xf]
        %v1430 = vld [vmem:[#allocation8 + $0x64] sm:$0xf]
        %v1431 = vld [vmem:[#allocation8 + $0x68] sm:$0xf]
        %v1432 = vld [vmem:[#allocation8 + $0x6c] sm:$0xf]
        %v1433 = vld [vmem:[#allocation8 + $0x70] sm:$0xf]
        %v1434 = vld [vmem:[#allocation8 + $0x74] sm:$0xf]
        %v1435 = vld [vmem:[#allocation8 + $0x78] sm:$0xf]
        %v1436 = vld [vmem:[#allocation8 + $0x7c] sm:$0xf]
        %v1437 = vld [vmem:[#allocation8 + $0x80] sm:$0xf]
        %v1438 = vld [vmem:[#allocation8 + $0x84] sm:$0xf]
        %v1439 = vld [vmem:[#allocation8 + $0x88] sm:$0xf]
        %v1440 = vld [vmem:[#allocation8 + $0x8c] sm:$0xf]
        %v1441 = vld [vmem:[#allocation8 + $0x90] sm:$0xf]
        %v1442 = vld [vmem:[#allocation8 + $0x94] sm:$0xf]
        %v1443 = vld [vmem:[#allocation8 + $0x98] sm:$0xf]
        %v1444 = vld [vmem:[#allocation8 + $0x9c] sm:$0xf]
        %v1445 = vld [vmem:[#allocation8 + $0xa0] sm:$0xf]
        %v1446 = vld [vmem:[#allocation8 + $0xa4] sm:$0xf]
        %v1447 = vld [vmem:[#allocation8 + $0xa8] sm:$0xf]
        %v1448 = vld [vmem:[#allocation8 + $0xac] sm:$0xf]
        %v1449 = vld [vmem:[#allocation8 + $0xb0] sm:$0xf]
        %v1450 = vld [vmem:[#allocation8 + $0xb4] sm:$0xf]
        %v1451 = vld [vmem:[#allocation8 + $0xb8] sm:$0xf]
        %v1452 = vld [vmem:[#allocation8 + $0xbc] sm:$0xf]
        %v1501 = vunpack.c.l.b16 %v1405
        %v1502 = vunpack.c.l.b16 %v1406
        %v1503 = vunpack.c.l.b16 %v1407
        %v1504 = vunpack.c.l.b16 %v1408
        %v1505 = vunpack.c.l.b16 %v1409
        %v1506 = vunpack.c.l.b16 %v1410
        %v1507 = vunpack.c.l.b16 %v1411
        %v1508 = vunpack.c.l.b16 %v1412
        %v1509 = vunpack.c.l.b16 %v1413
        %v1510 = vunpack.c.l.b16 %v1414
        %v1511 = vunpack.c.l.b16 %v1415
        %v1512 = vunpack.c.l.b16 %v1416
        %v1513 = vunpack.c.l.b16 %v1417
        %v1514 = vunpack.c.l.b16 %v1418
        %v1515 = vunpack.c.l.b16 %v1419
        %v1516 = vunpack.c.l.b16 %v1420
        %v1517 = vunpack.c.l.b16 %v1421
        %v1518 = vunpack.c.l.b16 %v1422
        %v1519 = vunpack.c.l.b16 %v1423
        %v1520 = vunpack.c.l.b16 %v1424
        %v1521 = vunpack.c.l.b16 %v1425
        %v1522 = vunpack.c.l.b16 %v1426
        %v1523 = vunpack.c.l.b16 %v1427
        %v1524 = vunpack.c.l.b16 %v1428
        %v1525 = vunpack.c.l.b16 %v1429
        %v1526 = vunpack.c.l.b16 %v1430
        %v1527 = vunpack.c.l.b16 %v1431
        %v1528 = vunpack.c.l.b16 %v1432
        %v1529 = vunpack.c.l.b16 %v1433
        %v1530 = vunpack.c.l.b16 %v1434
        %v1531 = vunpack.c.l.b16 %v1435
        %v1532 = vunpack.c.l.b16 %v1436
        %v1533 = vunpack.c.l.b16 %v1437
        %v1534 = vunpack.c.l.b16 %v1438
        %v1535 = vunpack.c.l.b16 %v1439
        %v1536 = vunpack.c.l.b16 %v1440
        %v1537 = vunpack.c.l.b16 %v1441
        %v1538 = vunpack.c.l.b16 %v1442
        %v1539 = vunpack.c.l.b16 %v1443
        %v1540 = vunpack.c.l.b16 %v1444
        %v1541 = vunpack.c.l.b16 %v1445
        %v1542 = vunpack.c.l.b16 %v1446
        %v1543 = vunpack.c.l.b16 %v1447
        %v1544 = vunpack.c.l.b16 %v1448
        %v1545 = vunpack.c.l.b16 %v1449
        %v1546 = vunpack.c.l.b16 %v1450
        %v1547 = vunpack.c.l.b16 %v1451
        %v1548 = vunpack.c.l.b16 %v1452
        %v1549 = vpack.c.b16 %v1502, %v1501
        %v1550 = vpack.c.b16 %v1504, %v1503
        %v1551 = vpack.c.b16 %v1506, %v1505
        %v1552 = vpack.c.b16 %v1508, %v1507
        %v1553 = vpack.c.b16 %v1510, %v1509
        %v1554 = vpack.c.b16 %v1512, %v1511
        %v1555 = vpack.c.b16 %v1514, %v1513
        %v1556 = vpack.c.b16 %v1516, %v1515
        %v1557 = vpack.c.b16 %v1518, %v1517
        %v1558 = vpack.c.b16 %v1520, %v1519
        %v1559 = vpack.c.b16 %v1522, %v1521
        %v1560 = vpack.c.b16 %v1524, %v1523
        %v1561 = vpack.c.b16 %v1526, %v1525
        %v1562 = vpack.c.b16 %v1528, %v1527
        %v1563 = vpack.c.b16 %v1530, %v1529
        %v1564 = vpack.c.b16 %v1532, %v1531
        %v1565 = vpack.c.b16 %v1534, %v1533
        %v1566 = vpack.c.b16 %v1536, %v1535
        %v1567 = vpack.c.b16 %v1538, %v1537
        %v1568 = vpack.c.b16 %v1540, %v1539
        %v1569 = vpack.c.b16 %v1542, %v1541
        %v1570 = vpack.c.b16 %v1544, %v1543
        %v1571 = vpack.c.b16 %v1546, %v1545
        %v1572 = vpack.c.b16 %v1548, %v1547
        %1597 = vmatprep.subr.bf16.mxu0 0
        %1598 = vmatpush1.bf16.msra.mxu0 %v1549
        %1599 = vmatprep.subr.bf16.mxu0 0
        %1600 = vmatpush1.bf16.msra.mxu0 %v1550
        %1601 = vmatprep.subr.bf16.mxu0 0
        %1602 = vmatpush1.bf16.msra.mxu0 %v1551
        %1603 = vmatprep.subr.bf16.mxu0 0
        %1604 = vmatpush1.bf16.msra.mxu0 %v1552
        %1605 = vmatprep.subr.bf16.mxu0 0
        %1606 = vmatpush1.bf16.msra.mxu0 %v1553
        %1607 = vmatprep.subr.bf16.mxu0 0
        %1608 = vmatpush1.bf16.msra.mxu0 %v1554
        %1609 = vmatprep.subr.bf16.mxu0 0
        %1610 = vmatpush1.bf16.msra.mxu0 %v1555
        %1611 = vmatprep.subr.bf16.mxu0 0
        %1612 = vmatpush1.bf16.msra.mxu0 %v1556
        %1613 = vmatprep.subr.bf16.mxu0 0
        %1614 = vmatpush1.bf16.msra.mxu0 %v1557
        %1615 = vmatprep.subr.bf16.mxu0 0
        %1616 = vmatpush1.bf16.msra.mxu0 %v1558
        %1617 = vmatprep.subr.bf16.mxu0 0
        %1618 = vmatpush1.bf16.msra.mxu0 %v1559
        %1619 = vmatprep.subr.bf16.mxu0 0
        %1620 = vmatpush1.bf16.msra.mxu0 %v1560
        %1621 = vmatprep.subr.bf16.mxu0 0
        %1622 = vmatpush1.bf16.msra.mxu0 %v1561
        %1623 = vmatprep.subr.bf16.mxu0 0
        %1624 = vmatpush1.bf16.msra.mxu0 %v1562
        %1625 = vmatprep.subr.bf16.mxu0 0
        %1626 = vmatpush1.bf16.msra.mxu0 %v1563
        %1627 = vmatprep.subr.bf16.mxu0 0
        %1628 = vmatpush1.bf16.msra.mxu0 %v1564
        %1629 = vmatprep.mubr.bf16.mxu0 %v1370
        %1630 = vmatmul.mubr.bf16.gmra.mrb[0].mxu0 %v1369
        %v1631 = vpop.f32.mrb[0].mxu0
        %v1632 = vadd.f32 0.0, %v1631
        %v1633 = vpop.f32.mrb[0].mxu0
        %v1634 = vpop.f32.mrb[0].mxu0
        %v1635 = vadd.f32 0.0, %v1634
        %v1636 = vpop.f32.mrb[0].mxu0
        %1637 = vmatprep.mubr.bf16.mxu0 %v1373
        %1638 = vmatmul.mubr.bf16.gmra.mrb[0].mxu0 %v1372
        %v1639 = vpop.f32.mrb[0].mxu0
        %v1640 = vadd.f32 0.0, %v1639
        %v1641 = vpop.f32.mrb[0].mxu0
        %v1642 = vpop.f32.mrb[0].mxu0
        %v1643 = vadd.f32 0.0, %v1642
        %v1644 = vpop.f32.mrb[0].mxu0
        %1645 = vmatprep.mubr.bf16.mxu0 %v1400
        %1646 = vmatmul.mubr.bf16.gmra.mrb[0].mxu0 %v1399
        %v1647 = vpop.f32.mrb[0].mxu0
        %v1648 = vadd.f32 0.0, %v1647
        %v1649 = vpop.f32.mrb[0].mxu0
        %v1650 = vpop.f32.mrb[0].mxu0
        %v1651 = vadd.f32 0.0, %v1650
        %v1652 = vpop.f32.mrb[0].mxu0
        %1653 = vmatprep.mubr.bf16.mxu0 %v1403
        %1654 = vmatmul.mubr.bf16.gmra.mrb[0].mxu0 %v1402
        %v1655 = vpop.f32.mrb[0].mxu0
        %v1656 = vadd.f32 0.0, %v1655
        %v1657 = vpop.f32.mrb[0].mxu0
        %v1658 = vpop.f32.mrb[0].mxu0
        %v1659 = vadd.f32 0.0, %v1658
        %v1660 = vpop.f32.mrb[0].mxu0
        %1661 = vdwg.mxu0
        %1662 = vmatprep.subr.bf16.mxu0 0
        %1663 = vmatpush1.bf16.msra.mxu0 %v1565
        %1664 = vmatprep.subr.bf16.mxu0 0
        %1665 = vmatpush1.bf16.msra.mxu0 %v1566
        %1666 = vmatprep.subr.bf16.mxu0 0
        %1667 = vmatpush1.bf16.msra.mxu0 %v1567
        %1668 = vmatprep.subr.bf16.mxu0 0
        %1669 = vmatpush1.bf16.msra.mxu0 %v1568
        %1670 = vmatprep.subr.bf16.mxu0 0
        %1671 = vmatpush1.bf16.msra.mxu0 %v1569
        %1672 = vmatprep.subr.bf16.mxu0 0
        %1673 = vmatpush1.bf16.msra.mxu0 %v1570
        %1674 = vmatprep.subr.bf16.mxu0 0
        %1675 = vmatpush1.bf16.msra.mxu0 %v1571
        %1676 = vmatprep.subr.bf16.mxu0 0
        %1677 = vmatpush1.bf16.msra.mxu0 %v1572
        %1678 = vmatprep.subr.bf16.mxu0 0
        %1679 = vmatpush1.bf16.msra.mxu0 0
        %1680 = vmatprep.subr.bf16.mxu0 0
        %1681 = vmatpush1.bf16.msra.mxu0 0
        %1682 = vmatprep.subr.bf16.mxu0 0
        %1683 = vmatpush1.bf16.msra.mxu0 0
        %1684 = vmatprep.subr.bf16.mxu0 0
        %1685 = vmatpush1.bf16.msra.mxu0 0
        %1686 = vmatprep.subr.bf16.mxu0 0
        %1687 = vmatpush1.bf16.msra.mxu0 0
        %1688 = vmatprep.subr.bf16.mxu0 0
        %1689 = vmatpush1.bf16.msra.mxu0 0
        %1690 = vmatprep.subr.bf16.mxu0 0
        %1691 = vmatpush1.bf16.msra.mxu0 0
        %1692 = vmatprep.subr.bf16.mxu0 0
        %1693 = vmatpush1.bf16.msra.mxu0 0
        %1694 = vmatprep.mubr.bf16.mxu0 0
        %1695 = vmatmul.mubr.bf16.gmra.mrb[0].mxu0 %v1371
        %v1696 = vpop.f32.mrb[0].mxu0
        %v1697 = vadd.f32 %v1632, %v1696
        %v1698 = vpop.f32.mrb[0].mxu0
        %v1699 = vpop.f32.mrb[0].mxu0
        %v1700 = vadd.f32 %v1635, %v1699
        %v1701 = vpop.f32.mrb[0].mxu0
        %1702 = vmatprep.mubr.bf16.mxu0 0
        %1703 = vmatmul.mubr.bf16.gmra.mrb[0].mxu0 %v1374
        %v1704 = vpop.f32.mrb[0].mxu0
        %v1705 = vadd.f32 %v1640, %v1704
        %v1706 = vpop.f32.mrb[0].mxu0
        %v1707 = vpop.f32.mrb[0].mxu0
        %v1708 = vadd.f32 %v1643, %v1707
        %v1709 = vpop.f32.mrb[0].mxu0
        %1710 = vmatprep.mubr.bf16.mxu0 0
        %1711 = vmatmul.mubr.bf16.gmra.mrb[0].mxu0 %v1401
        %v1712 = vpop.f32.mrb[0].mxu0
        %v1713 = vadd.f32 %v1648, %v1712
        %v1714 = vpop.f32.mrb[0].mxu0
        %v1715 = vpop.f32.mrb[0].mxu0
        %v1716 = vadd.f32 %v1651, %v1715
        %v1717 = vpop.f32.mrb[0].mxu0
        %1718 = vmatprep.mubr.bf16.mxu0 0
        %1719 = vmatmul.mubr.bf16.gmra.mrb[0].mxu0 %v1404
        %v1720 = vpop.f32.mrb[0].mxu0
        %v1721 = vadd.f32 %v1656, %v1720
        %v1722 = vpop.f32.mrb[0].mxu0
        %v1723 = vpop.f32.mrb[0].mxu0
        %v1724 = vadd.f32 %v1659, %v1723
        %v1725 = vpop.f32.mrb[0].mxu0
        %1726 = vdwg.mxu0
        %v1727 = vadd.f32 %v1697, %v1713
        %v1728 = vadd.f32 %v1700, %v1716
        %v1729 = vadd.f32 %v1705, %v1721
        %v1730 = vadd.f32 %v1708, %v1724
        %s1731 = sld [smem:[#allocation14]]
        %v1732 = vstv %s1731
        %v1733 = vmul.f32 %v1732, %v1727
        %s1734 = sld [smem:[#allocation14 + $0x24]]
        %v1735 = vstv %s1734
        %v1736 = vmul.f32 %v1735, %v1727
        %s1737 = sld [smem:[#allocation14 + $0x48]]
        %v1738 = vstv %s1737
        %v1739 = vmul.f32 %v1738, %v1727
        %s1740 = sld [smem:[#allocation14 + $0x6c]]
        %v1741 = vstv %s1740
        %v1742 = vmul.f32 %v1741, %v1727
        %s1743 = sld [smem:[#allocation14 + $0x90]]
        %v1744 = vstv %s1743
        %v1745 = vmul.f32 %v1744, %v1727
        %s1746 = sld [smem:[#allocation14 + $0xb4]]
        %v1747 = vstv %s1746
        %v1748 = vmul.f32 %v1747, %v1727
        %s1749 = sld [smem:[#allocation14 + $0xd8]]
        %v1750 = vstv %s1749
        %v1751 = vmul.f32 %v1750, %v1727
        %s1752 = sld [smem:[#allocation14 + $0xfc]]
        %v1753 = vstv %s1752
        %v1754 = vmul.f32 %v1753, %v1727
        %s1755 = sld [smem:[#allocation14 + $0x1]]
        %v1756 = vstv %s1755
        %v1757 = vmul.f32 %v1756, %v1727
        %1759 = vrot.lane.b32.xlu0 %v1757, 127
        %v1760 = vpop.permute.xlu0 %1759
        %v1762 = vadd.f32 %v1733, %v1760
        %s1763 = sld [smem:[#allocation14 + $0x25]]
        %v1764 = vstv %s1763
        %v1765 = vmul.f32 %v1764, %v1727
        %1767 = vrot.lane.b32.xlu0 %v1765, 127
        %v1768 = vpop.permute.xlu0 %1767
        %v1770 = vadd.f32 %v1736, %v1768
        %s1771 = sld [smem:[#allocation14 + $0x49]]
        %v1772 = vstv %s1771
        %v1773 = vmul.f32 %v1772, %v1727
        %1775 = vrot.lane.b32.xlu0 %v1773, 127
        %v1776 = vpop.permute.xlu0 %1775
        %v1778 = vadd.f32 %v1739, %v1776
        %s1779 = sld [smem:[#allocation14 + $0x6d]]
        %v1780 = vstv %s1779
        %v1781 = vmul.f32 %v1780, %v1727
        %1783 = vrot.lane.b32.xlu0 %v1781, 127
        %v1784 = vpop.permute.xlu0 %1783
        %v1786 = vadd.f32 %v1742, %v1784
        %s1787 = sld [smem:[#allocation14 + $0x91]]
        %v1788 = vstv %s1787
        %v1789 = vmul.f32 %v1788, %v1727
        %1791 = vrot.lane.b32.xlu0 %v1789, 127
        %v1792 = vpop.permute.xlu0 %1791
        %v1794 = vadd.f32 %v1745, %v1792
        %s1795 = sld [smem:[#allocation14 + $0xb5]]
        %v1796 = vstv %s1795
        %v1797 = vmul.f32 %v1796, %v1727
        %1799 = vrot.lane.b32.xlu0 %v1797, 127
        %v1800 = vpop.permute.xlu0 %1799
        %v1802 = vadd.f32 %v1748, %v1800
        %s1803 = sld [smem:[#allocation14 + $0xd9]]
        %v1804 = vstv %s1803
        %v1805 = vmul.f32 %v1804, %v1727
        %1807 = vrot.lane.b32.xlu0 %v1805, 127
        %v1808 = vpop.permute.xlu0 %1807
        %v1810 = vadd.f32 %v1751, %v1808
        %s1811 = sld [smem:[#allocation14 + $0xfd]]
        %v1812 = vstv %s1811
        %v1813 = vmul.f32 %v1812, %v1727
        %1815 = vrot.lane.b32.xlu0 %v1813, 127
        %v1816 = vpop.permute.xlu0 %1815
        %v1818 = vadd.f32 %v1754, %v1816
        %s1819 = sld [smem:[#allocation14 + $0x2]]
        %v1820 = vstv %s1819
        %v1821 = vmul.f32 %v1820, %v1727
        %1823 = vrot.lane.b32.xlu0 %v1821, 126
        %v1824 = vpop.permute.xlu0 %1823
        %v1826 = vadd.f32 %v1762, %v1824
        %s1827 = sld [smem:[#allocation14 + $0x26]]
        %v1828 = vstv %s1827
        %v1829 = vmul.f32 %v1828, %v1727
        %1831 = vrot.lane.b32.xlu0 %v1829, 126
        %v1832 = vpop.permute.xlu0 %1831
        %v1834 = vadd.f32 %v1770, %v1832
        %s1835 = sld [smem:[#allocation14 + $0x4a]]
        %v1836 = vstv %s1835
        %v1837 = vmul.f32 %v1836, %v1727
        %1839 = vrot.lane.b32.xlu0 %v1837, 126
        %v1840 = vpop.permute.xlu0 %1839
        %v1842 = vadd.f32 %v1778, %v1840
        %s1843 = sld [smem:[#allocation14 + $0x6e]]
        %v1844 = vstv %s1843
        %v1845 = vmul.f32 %v1844, %v1727
        %1847 = vrot.lane.b32.xlu0 %v1845, 126
        %v1848 = vpop.permute.xlu0 %1847
        %v1850 = vadd.f32 %v1786, %v1848
        %s1851 = sld [smem:[#allocation14 + $0x92]]
        %v1852 = vstv %s1851
        %v1853 = vmul.f32 %v1852, %v1727
        %1855 = vrot.lane.b32.xlu0 %v1853, 126
        %v1856 = vpop.permute.xlu0 %1855
        %v1858 = vadd.f32 %v1794, %v1856
        %s1859 = sld [smem:[#allocation14 + $0xb6]]
        %v1860 = vstv %s1859
        %v1861 = vmul.f32 %v1860, %v1727
        %1863 = vrot.lane.b32.xlu0 %v1861, 126
        %v1864 = vpop.permute.xlu0 %1863
        %v1866 = vadd.f32 %v1802, %v1864
        %s1867 = sld [smem:[#allocation14 + $0xda]]
        %v1868 = vstv %s1867
        %v1869 = vmul.f32 %v1868, %v1727
        %1871 = vrot.lane.b32.xlu0 %v1869, 126
        %v1872 = vpop.permute.xlu0 %1871
        %v1874 = vadd.f32 %v1810, %v1872
        %s1875 = sld [smem:[#allocation14 + $0xfe]]
        %v1876 = vstv %s1875
        %v1877 = vmul.f32 %v1876, %v1727
        %1879 = vrot.lane.b32.xlu0 %v1877, 126
        %v1880 = vpop.permute.xlu0 %1879
        %v1882 = vadd.f32 %v1818, %v1880
        %s1883 = sld [smem:[#allocation14 + $0x3]]
        %v1884 = vstv %s1883
        %v1885 = vmul.f32 %v1884, %v1727
        %1887 = vrot.lane.b32.xlu0 %v1885, 118
        %v1888 = vpop.permute.xlu0 %1887
        %v1890 = vadd.f32 %v1826, %v1888
        %s1891 = sld [smem:[#allocation14 + $0x27]]
        %v1892 = vstv %s1891
        %v1893 = vmul.f32 %v1892, %v1727
        %1895 = vrot.lane.b32.xlu0 %v1893, 118
        %v1896 = vpop.permute.xlu0 %1895
        %v1898 = vadd.f32 %v1834, %v1896
        %s1899 = sld [smem:[#allocation14 + $0x4b]]
        %v1900 = vstv %s1899
        %v1901 = vmul.f32 %v1900, %v1727
        %1903 = vrot.lane.b32.xlu0 %v1901, 118
        %v1904 = vpop.permute.xlu0 %1903
        %v1906 = vadd.f32 %v1842, %v1904
        %s1907 = sld [smem:[#allocation14 + $0x6f]]
        %v1908 = vstv %s1907
        %v1909 = vmul.f32 %v1908, %v1727
        %1911 = vrot.lane.b32.xlu0 %v1909, 118
        %v1912 = vpop.permute.xlu0 %1911
        %v1914 = vadd.f32 %v1850, %v1912
        %s1915 = sld [smem:[#allocation14 + $0x93]]
        %v1916 = vstv %s1915
        %v1917 = vmul.f32 %v1916, %v1727
        %1919 = vrot.lane.b32.xlu0 %v1917, 118
        %v1920 = vpop.permute.xlu0 %1919
        %v1922 = vadd.f32 %v1858, %v1920
        %s1923 = sld [smem:[#allocation14 + $0xb7]]
        %v1924 = vstv %s1923
        %v1925 = vmul.f32 %v1924, %v1727
        %1927 = vrot.lane.b32.xlu0 %v1925, 118
        %v1928 = vpop.permute.xlu0 %1927
        %v1930 = vadd.f32 %v1866, %v1928
        %s1931 = sld [smem:[#allocation14 + $0xdb]]
        %v1932 = vstv %s1931
        %v1933 = vmul.f32 %v1932, %v1727
        %1935 = vrot.lane.b32.xlu0 %v1933, 118
        %v1936 = vpop.permute.xlu0 %1935
        %v1938 = vadd.f32 %v1874, %v1936
        %s1939 = sld [smem:[#allocation14 + $0xff]]
        %v1940 = vstv %s1939
        %v1941 = vmul.f32 %v1940, %v1727
        %1943 = vrot.lane.b32.xlu0 %v1941, 118
        %v1944 = vpop.permute.xlu0 %1943
        %v1946 = vadd.f32 %v1882, %v1944
        %s1947 = sld [smem:[#allocation14 + $0x4]]
        %v1948 = vstv %s1947
        %v1949 = vmul.f32 %v1948, %v1727
        %1951 = vrot.lane.b32.xlu0 %v1949, 117
        %v1952 = vpop.permute.xlu0 %1951
        %v1954 = vadd.f32 %v1890, %v1952
        %s1955 = sld [smem:[#allocation14 + $0x28]]
        %v1956 = vstv %s1955
        %v1957 = vmul.f32 %v1956, %v1727
        %1959 = vrot.lane.b32.xlu0 %v1957, 117
        %v1960 = vpop.permute.xlu0 %1959
        %v1962 = vadd.f32 %v1898, %v1960
        %s1963 = sld [smem:[#allocation14 + $0x4c]]
        %v1964 = vstv %s1963
        %v1965 = vmul.f32 %v1964, %v1727
        %1967 = vrot.lane.b32.xlu0 %v1965, 117
        %v1968 = vpop.permute.xlu0 %1967
        %v1970 = vadd.f32 %v1906, %v1968
        %s1971 = sld [smem:[#allocation14 + $0x70]]
        %v1972 = vstv %s1971
        %v1973 = vmul.f32 %v1972, %v1727
        %1975 = vrot.lane.b32.xlu0 %v1973, 117
        %v1976 = vpop.permute.xlu0 %1975
        %v1978 = vadd.f32 %v1914, %v1976
        %s1979 = sld [smem:[#allocation14 + $0x94]]
        %v1980 = vstv %s1979
        %v1981 = vmul.f32 %v1980, %v1727
        %1983 = vrot.lane.b32.xlu0 %v1981, 117
        %v1984 = vpop.permute.xlu0 %1983
        %v1986 = vadd.f32 %v1922, %v1984
        %s1987 = sld [smem:[#allocation14 + $0xb8]]
        %v1988 = vstv %s1987
        %v1989 = vmul.f32 %v1988, %v1727
        %1991 = vrot.lane.b32.xlu0 %v1989, 117
        %v1992 = vpop.permute.xlu0 %1991
        %v1994 = vadd.f32 %v1930, %v1992
        %s1995 = sld [smem:[#allocation14 + $0xdc]]
        %v1996 = vstv %s1995
        %v1997 = vmul.f32 %v1996, %v1727
        %1999 = vrot.lane.b32.xlu0 %v1997, 117
        %v2000 = vpop.permute.xlu0 %1999
        %v2002 = vadd.f32 %v1938, %v2000
        %s2003 = sld [smem:[#allocation14 + $0x100]]
        %v2004 = vstv %s2003
        %v2005 = vmul.f32 %v2004, %v1727
        %2007 = vrot.lane.b32.xlu0 %v2005, 117
        %v2008 = vpop.permute.xlu0 %2007
        %v2010 = vadd.f32 %v1946, %v2008
        %s2011 = sld [smem:[#allocation14 + $0x5]]
        %v2012 = vstv %s2011
        %v2013 = vmul.f32 %v2012, %v1727
        %2015 = vrot.lane.b32.xlu0 %v2013, 116
        %v2016 = vpop.permute.xlu0 %2015
        %v2018 = vadd.f32 %v1954, %v2016
        %s2019 = sld [smem:[#allocation14 + $0x29]]
        %v2020 = vstv %s2019
        %v2021 = vmul.f32 %v2020, %v1727
        %2023 = vrot.lane.b32.xlu0 %v2021, 116
        %v2024 = vpop.permute.xlu0 %2023
        %v2026 = vadd.f32 %v1962, %v2024
        %s2027 = sld [smem:[#allocation14 + $0x4d]]
        %v2028 = vstv %s2027
        %v2029 = vmul.f32 %v2028, %v1727
        %2031 = vrot.lane.b32.xlu0 %v2029, 116
        %v2032 = vpop.permute.xlu0 %2031
        %v2034 = vadd.f32 %v1970, %v2032
        %s2035 = sld [smem:[#allocation14 + $0x71]]
        %v2036 = vstv %s2035
        %v2037 = vmul.f32 %v2036, %v1727
        %2039 = vrot.lane.b32.xlu0 %v2037, 116
        %v2040 = vpop.permute.xlu0 %2039
        %v2042 = vadd.f32 %v1978, %v2040
        %s2043 = sld [smem:[#allocation14 + $0x95]]
        %v2044 = vstv %s2043
        %v2045 = vmul.f32 %v2044, %v1727
        %2047 = vrot.lane.b32.xlu0 %v2045, 116
        %v2048 = vpop.permute.xlu0 %2047
        %v2050 = vadd.f32 %v1986, %v2048
        %s2051 = sld [smem:[#allocation14 + $0xb9]]
        %v2052 = vstv %s2051
        %v2053 = vmul.f32 %v2052, %v1727
        %2055 = vrot.lane.b32.xlu0 %v2053, 116
        %v2056 = vpop.permute.xlu0 %2055
        %v2058 = vadd.f32 %v1994, %v2056
        %s2059 = sld [smem:[#allocation14 + $0xdd]]
        %v2060 = vstv %s2059
        %v2061 = vmul.f32 %v2060, %v1727
        %2063 = vrot.lane.b32.xlu0 %v2061, 116
        %v2064 = vpop.permute.xlu0 %2063
        %v2066 = vadd.f32 %v2002, %v2064
        %s2067 = sld [smem:[#allocation14 + $0x101]]
        %v2068 = vstv %s2067
        %v2069 = vmul.f32 %v2068, %v1727
        %2071 = vrot.lane.b32.xlu0 %v2069, 116
        %v2072 = vpop.permute.xlu0 %2071
        %v2074 = vadd.f32 %v2010, %v2072
        %s2075 = sld [smem:[#allocation14 + $0x6]]
        %v2076 = vstv %s2075
        %v2077 = vmul.f32 %v2076, %v1727
        %2079 = vrot.lane.b32.xlu0 %v2077, 108
        %v2080 = vpop.permute.xlu0 %2079
        %v2082 = vadd.f32 %v2018, %v2080
        %s2083 = sld [smem:[#allocation14 + $0x2a]]
        %v2084 = vstv %s2083
        %v2085 = vmul.f32 %v2084, %v1727
        %2087 = vrot.lane.b32.xlu0 %v2085, 108
        %v2088 = vpop.permute.xlu0 %2087
        %v2090 = vadd.f32 %v2026, %v2088
        %s2091 = sld [smem:[#allocation14 + $0x4e]]
        %v2092 = vstv %s2091
        %v2093 = vmul.f32 %v2092, %v1727
        %2095 = vrot.lane.b32.xlu0 %v2093, 108
        %v2096 = vpop.permute.xlu0 %2095
        %v2098 = vadd.f32 %v2034, %v2096
        %s2099 = sld [smem:[#allocation14 + $0x72]]
        %v2100 = vstv %s2099
        %v2101 = vmul.f32 %v2100, %v1727
        %2103 = vrot.lane.b32.xlu0 %v2101, 108
        %v2104 = vpop.permute.xlu0 %2103
        %v2106 = vadd.f32 %v2042, %v2104
        %s2107 = sld [smem:[#allocation14 + $0x96]]
        %v2108 = vstv %s2107
        %v2109 = vmul.f32 %v2108, %v1727
        %2111 = vrot.lane.b32.xlu0 %v2109, 108
        %v2112 = vpop.permute.xlu0 %2111
        %v2114 = vadd.f32 %v2050, %v2112
        %s2115 = sld [smem:[#allocation14 + $0xba]]
        %v2116 = vstv %s2115
        %v2117 = vmul.f32 %v2116, %v1727
        %2119 = vrot.lane.b32.xlu0 %v2117, 108
        %v2120 = vpop.permute.xlu0 %2119
        %v2122 = vadd.f32 %v2058, %v2120
        %s2123 = sld [smem:[#allocation14 + $0xde]]
        %v2124 = vstv %s2123
        %v2125 = vmul.f32 %v2124, %v1727
        %2127 = vrot.lane.b32.xlu0 %v2125, 108
        %v2128 = vpop.permute.xlu0 %2127
        %v2130 = vadd.f32 %v2066, %v2128
        %s2131 = sld [smem:[#allocation14 + $0x102]]
        %v2132 = vstv %s2131
        %v2133 = vmul.f32 %v2132, %v1727
        %2135 = vrot.lane.b32.xlu0 %v2133, 108
        %v2136 = vpop.permute.xlu0 %2135
        %v2138 = vadd.f32 %v2074, %v2136
        %s2139 = sld [smem:[#allocation14 + $0x7]]
        %v2140 = vstv %s2139
        %v2141 = vmul.f32 %v2140, %v1727
        %2143 = vrot.lane.b32.xlu0 %v2141, 107
        %v2144 = vpop.permute.xlu0 %2143
        %v2146 = vadd.f32 %v2082, %v2144
        %s2147 = sld [smem:[#allocation14 + $0x2b]]
        %v2148 = vstv %s2147
        %v2149 = vmul.f32 %v2148, %v1727
        %2151 = vrot.lane.b32.xlu0 %v2149, 107
        %v2152 = vpop.permute.xlu0 %2151
        %v2154 = vadd.f32 %v2090, %v2152
        %s2155 = sld [smem:[#allocation14 + $0x4f]]
        %v2156 = vstv %s2155
        %v2157 = vmul.f32 %v2156, %v1727
        %2159 = vrot.lane.b32.xlu0 %v2157, 107
        %v2160 = vpop.permute.xlu0 %2159
        %v2162 = vadd.f32 %v2098, %v2160
        %s2163 = sld [smem:[#allocation14 + $0x73]]
        %v2164 = vstv %s2163
        %v2165 = vmul.f32 %v2164, %v1727
        %2167 = vrot.lane.b32.xlu0 %v2165, 107
        %v2168 = vpop.permute.xlu0 %2167
        %v2170 = vadd.f32 %v2106, %v2168
        %s2171 = sld [smem:[#allocation14 + $0x97]]
        %v2172 = vstv %s2171
        %v2173 = vmul.f32 %v2172, %v1727
        %2175 = vrot.lane.b32.xlu0 %v2173, 107
        %v2176 = vpop.permute.xlu0 %2175
        %v2178 = vadd.f32 %v2114, %v2176
        %s2179 = sld [smem:[#allocation14 + $0xbb]]
        %v2180 = vstv %s2179
        %v2181 = vmul.f32 %v2180, %v1727
        %2183 = vrot.lane.b32.xlu0 %v2181, 107
        %v2184 = vpop.permute.xlu0 %2183
        %v2186 = vadd.f32 %v2122, %v2184
        %s2187 = sld [smem:[#allocation14 + $0xdf]]
        %v2188 = vstv %s2187
        %v2189 = vmul.f32 %v2188, %v1727
        %2191 = vrot.lane.b32.xlu0 %v2189, 107
        %v2192 = vpop.permute.xlu0 %2191
        %v2194 = vadd.f32 %v2130, %v2192
        %s2195 = sld [smem:[#allocation14 + $0x103]]
        %v2196 = vstv %s2195
        %v2197 = vmul.f32 %v2196, %v1727
        %2199 = vrot.lane.b32.xlu0 %v2197, 107
        %v2200 = vpop.permute.xlu0 %2199
        %v2202 = vadd.f32 %v2138, %v2200
        %s2203 = sld [smem:[#allocation14 + $0x8]]
        %v2204 = vstv %s2203
        %v2205 = vmul.f32 %v2204, %v1727
        %2207 = vrot.lane.b32.xlu0 %v2205, 106
        %v2208 = vpop.permute.xlu0 %2207
        %v2210 = vadd.f32 %v2146, %v2208
        %s2211 = sld [smem:[#allocation14 + $0x2c]]
        %v2212 = vstv %s2211
        %v2213 = vmul.f32 %v2212, %v1727
        %2215 = vrot.lane.b32.xlu0 %v2213, 106
        %v2216 = vpop.permute.xlu0 %2215
        %v2218 = vadd.f32 %v2154, %v2216
        %s2219 = sld [smem:[#allocation14 + $0x50]]
        %v2220 = vstv %s2219
        %v2221 = vmul.f32 %v2220, %v1727
        %2223 = vrot.lane.b32.xlu0 %v2221, 106
        %v2224 = vpop.permute.xlu0 %2223
        %v2226 = vadd.f32 %v2162, %v2224
        %s2227 = sld [smem:[#allocation14 + $0x74]]
        %v2228 = vstv %s2227
        %v2229 = vmul.f32 %v2228, %v1727
        %2231 = vrot.lane.b32.xlu0 %v2229, 106
        %v2232 = vpop.permute.xlu0 %2231
        %v2234 = vadd.f32 %v2170, %v2232
        %s2235 = sld [smem:[#allocation14 + $0x98]]
        %v2236 = vstv %s2235
        %v2237 = vmul.f32 %v2236, %v1727
        %2239 = vrot.lane.b32.xlu0 %v2237, 106
        %v2240 = vpop.permute.xlu0 %2239
        %v2242 = vadd.f32 %v2178, %v2240
        %s2243 = sld [smem:[#allocation14 + $0xbc]]
        %v2244 = vstv %s2243
        %v2245 = vmul.f32 %v2244, %v1727
        %2247 = vrot.lane.b32.xlu0 %v2245, 106
        %v2248 = vpop.permute.xlu0 %2247
        %v2250 = vadd.f32 %v2186, %v2248
        %s2251 = sld [smem:[#allocation14 + $0xe0]]
        %v2252 = vstv %s2251
        %v2253 = vmul.f32 %v2252, %v1727
        %2255 = vrot.lane.b32.xlu0 %v2253, 106
        %v2256 = vpop.permute.xlu0 %2255
        %v2258 = vadd.f32 %v2194, %v2256
        %s2259 = sld [smem:[#allocation14 + $0x104]]
        %v2260 = vstv %s2259
        %v2261 = vmul.f32 %v2260, %v1727
        %2263 = vrot.lane.b32.xlu0 %v2261, 106
        %v2264 = vpop.permute.xlu0 %2263
        %v2266 = vadd.f32 %v2202, %v2264
        %s2267 = sld [smem:[#allocation14 + $0x9]]
        %v2268 = vstv %s2267
        %v2269 = vmul.f32 %v2268, %v1728
        %v2270 = vadd.f32 %v2210, %v2269
        %s2271 = sld [smem:[#allocation14 + $0x2d]]
        %v2272 = vstv %s2271
        %v2273 = vmul.f32 %v2272, %v1728
        %v2274 = vadd.f32 %v2218, %v2273
        %s2275 = sld [smem:[#allocation14 + $0x51]]
        %v2276 = vstv %s2275
        %v2277 = vmul.f32 %v2276, %v1728
        %v2278 = vadd.f32 %v2226, %v2277
        %s2279 = sld [smem:[#allocation14 + $0x75]]
        %v2280 = vstv %s2279
        %v2281 = vmul.f32 %v2280, %v1728
        %v2282 = vadd.f32 %v2234, %v2281
        %s2283 = sld [smem:[#allocation14 + $0x99]]
        %v2284 = vstv %s2283
        %v2285 = vmul.f32 %v2284, %v1728
        %v2286 = vadd.f32 %v2242, %v2285
        %s2287 = sld [smem:[#allocation14 + $0xbd]]
        %v2288 = vstv %s2287
        %v2289 = vmul.f32 %v2288, %v1728
        %v2290 = vadd.f32 %v2250, %v2289
        %s2291 = sld [smem:[#allocation14 + $0xe1]]
        %v2292 = vstv %s2291
        %v2293 = vmul.f32 %v2292, %v1728
        %v2294 = vadd.f32 %v2258, %v2293
        %s2295 = sld [smem:[#allocation14 + $0x105]]
        %v2296 = vstv %s2295
        %v2297 = vmul.f32 %v2296, %v1728
        %v2298 = vadd.f32 %v2266, %v2297
        %s2299 = sld [smem:[#allocation14 + $0xa]]
        %v2300 = vstv %s2299
        %v2301 = vmul.f32 %v2300, %v1728
        %2303 = vrot.lane.b32.xlu0 %v2301, 127
        %v2304 = vpop.permute.xlu0 %2303
        %v2306 = vadd.f32 %v2270, %v2304
        %s2307 = sld [smem:[#allocation14 + $0x2e]]
        %v2308 = vstv %s2307
        %v2309 = vmul.f32 %v2308, %v1728
        %2311 = vrot.lane.b32.xlu0 %v2309, 127
        %v2312 = vpop.permute.xlu0 %2311
        %v2314 = vadd.f32 %v2274, %v2312
        %s2315 = sld [smem:[#allocation14 + $0x52]]
        %v2316 = vstv %s2315
        %v2317 = vmul.f32 %v2316, %v1728
        %2319 = vrot.lane.b32.xlu0 %v2317, 127
        %v2320 = vpop.permute.xlu0 %2319
        %v2322 = vadd.f32 %v2278, %v2320
        %s2323 = sld [smem:[#allocation14 + $0x76]]
        %v2324 = vstv %s2323
        %v2325 = vmul.f32 %v2324, %v1728
        %2327 = vrot.lane.b32.xlu0 %v2325, 127
        %v2328 = vpop.permute.xlu0 %2327
        %v2330 = vadd.f32 %v2282, %v2328
        %s2331 = sld [smem:[#allocation14 + $0x9a]]
        %v2332 = vstv %s2331
        %v2333 = vmul.f32 %v2332, %v1728
        %2335 = vrot.lane.b32.xlu0 %v2333, 127
        %v2336 = vpop.permute.xlu0 %2335
        %v2338 = vadd.f32 %v2286, %v2336
        %s2339 = sld [smem:[#allocation14 + $0xbe]]
        %v2340 = vstv %s2339
        %v2341 = vmul.f32 %v2340, %v1728
        %2343 = vrot.lane.b32.xlu0 %v2341, 127
        %v2344 = vpop.permute.xlu0 %2343
        %v2346 = vadd.f32 %v2290, %v2344
        %s2347 = sld [smem:[#allocation14 + $0xe2]]
        %v2348 = vstv %s2347
        %v2349 = vmul.f32 %v2348, %v1728
        %2351 = vrot.lane.b32.xlu0 %v2349, 127
        %v2352 = vpop.permute.xlu0 %2351
        %v2354 = vadd.f32 %v2294, %v2352
        %s2355 = sld [smem:[#allocation14 + $0x106]]
        %v2356 = vstv %s2355
        %v2357 = vmul.f32 %v2356, %v1728
        %2359 = vrot.lane.b32.xlu0 %v2357, 127
        %v2360 = vpop.permute.xlu0 %2359
        %v2362 = vadd.f32 %v2298, %v2360
        %s2363 = sld [smem:[#allocation14 + $0xb]]
        %v2364 = vstv %s2363
        %v2365 = vmul.f32 %v2364, %v1728
        %2367 = vrot.lane.b32.xlu0 %v2365, 126
        %v2368 = vpop.permute.xlu0 %2367
        %v2370 = vadd.f32 %v2306, %v2368
        %s2371 = sld [smem:[#allocation14 + $0x2f]]
        %v2372 = vstv %s2371
        %v2373 = vmul.f32 %v2372, %v1728
        %2375 = vrot.lane.b32.xlu0 %v2373, 126
        %v2376 = vpop.permute.xlu0 %2375
        %v2378 = vadd.f32 %v2314, %v2376
        %s2379 = sld [smem:[#allocation14 + $0x53]]
        %v2380 = vstv %s2379
        %v2381 = vmul.f32 %v2380, %v1728
        %2383 = vrot.lane.b32.xlu0 %v2381, 126
        %v2384 = vpop.permute.xlu0 %2383
        %v2386 = vadd.f32 %v2322, %v2384
        %s2387 = sld [smem:[#allocation14 + $0x77]]
        %v2388 = vstv %s2387
        %v2389 = vmul.f32 %v2388, %v1728
        %2391 = vrot.lane.b32.xlu0 %v2389, 126
        %v2392 = vpop.permute.xlu0 %2391
        %v2394 = vadd.f32 %v2330, %v2392
        %s2395 = sld [smem:[#allocation14 + $0x9b]]
        %v2396 = vstv %s2395
        %v2397 = vmul.f32 %v2396, %v1728
        %2399 = vrot.lane.b32.xlu0 %v2397, 126
        %v2400 = vpop.permute.xlu0 %2399
        %v2402 = vadd.f32 %v2338, %v2400
        %s2403 = sld [smem:[#allocation14 + $0xbf]]
        %v2404 = vstv %s2403
        %v2405 = vmul.f32 %v2404, %v1728
        %2407 = vrot.lane.b32.xlu0 %v2405, 126
        %v2408 = vpop.permute.xlu0 %2407
        %v2410 = vadd.f32 %v2346, %v2408
        %s2411 = sld [smem:[#allocation14 + $0xe3]]
        %v2412 = vstv %s2411
        %v2413 = vmul.f32 %v2412, %v1728
        %2415 = vrot.lane.b32.xlu0 %v2413, 126
        %v2416 = vpop.permute.xlu0 %2415
        %v2418 = vadd.f32 %v2354, %v2416
        %s2419 = sld [smem:[#allocation14 + $0x107]]
        %v2420 = vstv %s2419
        %v2421 = vmul.f32 %v2420, %v1728
        %2423 = vrot.lane.b32.xlu0 %v2421, 126
        %v2424 = vpop.permute.xlu0 %2423
        %v2426 = vadd.f32 %v2362, %v2424
        %s2427 = sld [smem:[#allocation14 + $0xc]]
        %v2428 = vstv %s2427
        %v2429 = vmul.f32 %v2428, %v1728
        %2431 = vrot.lane.b32.xlu0 %v2429, 118
        %v2432 = vpop.permute.xlu0 %2431
        %v2434 = vadd.f32 %v2370, %v2432
        %s2435 = sld [smem:[#allocation14 + $0x30]]
        %v2436 = vstv %s2435
        %v2437 = vmul.f32 %v2436, %v1728
        %2439 = vrot.lane.b32.xlu0 %v2437, 118
        %v2440 = vpop.permute.xlu0 %2439
        %v2442 = vadd.f32 %v2378, %v2440
        %s2443 = sld [smem:[#allocation14 + $0x54]]
        %v2444 = vstv %s2443
        %v2445 = vmul.f32 %v2444, %v1728
        %2447 = vrot.lane.b32.xlu0 %v2445, 118
        %v2448 = vpop.permute.xlu0 %2447
        %v2450 = vadd.f32 %v2386, %v2448
        %s2451 = sld [smem:[#allocation14 + $0x78]]
        %v2452 = vstv %s2451
        %v2453 = vmul.f32 %v2452, %v1728
        %2455 = vrot.lane.b32.xlu0 %v2453, 118
        %v2456 = vpop.permute.xlu0 %2455
        %v2458 = vadd.f32 %v2394, %v2456
        %s2459 = sld [smem:[#allocation14 + $0x9c]]
        %v2460 = vstv %s2459
        %v2461 = vmul.f32 %v2460, %v1728
        %2463 = vrot.lane.b32.xlu0 %v2461, 118
        %v2464 = vpop.permute.xlu0 %2463
        %v2466 = vadd.f32 %v2402, %v2464
        %s2467 = sld [smem:[#allocation14 + $0xc0]]
        %v2468 = vstv %s2467
        %v2469 = vmul.f32 %v2468, %v1728
        %2471 = vrot.lane.b32.xlu0 %v2469, 118
        %v2472 = vpop.permute.xlu0 %2471
        %v2474 = vadd.f32 %v2410, %v2472
        %s2475 = sld [smem:[#allocation14 + $0xe4]]
        %v2476 = vstv %s2475
        %v2477 = vmul.f32 %v2476, %v1728
        %2479 = vrot.lane.b32.xlu0 %v2477, 118
        %v2480 = vpop.permute.xlu0 %2479
        %v2482 = vadd.f32 %v2418, %v2480
        %s2483 = sld [smem:[#allocation14 + $0x108]]
        %v2484 = vstv %s2483
        %v2485 = vmul.f32 %v2484, %v1728
        %2487 = vrot.lane.b32.xlu0 %v2485, 118
        %v2488 = vpop.permute.xlu0 %2487
        %v2490 = vadd.f32 %v2426, %v2488
        %s2491 = sld [smem:[#allocation14 + $0xd]]
        %v2492 = vstv %s2491
        %v2493 = vmul.f32 %v2492, %v1728
        %2495 = vrot.lane.b32.xlu0 %v2493, 117
        %v2496 = vpop.permute.xlu0 %2495
        %v2498 = vadd.f32 %v2434, %v2496
        %s2499 = sld [smem:[#allocation14 + $0x31]]
        %v2500 = vstv %s2499
        %v2501 = vmul.f32 %v2500, %v1728
        %2503 = vrot.lane.b32.xlu0 %v2501, 117
        %v2504 = vpop.permute.xlu0 %2503
        %v2506 = vadd.f32 %v2442, %v2504
        %s2507 = sld [smem:[#allocation14 + $0x55]]
        %v2508 = vstv %s2507
        %v2509 = vmul.f32 %v2508, %v1728
        %2511 = vrot.lane.b32.xlu0 %v2509, 117
        %v2512 = vpop.permute.xlu0 %2511
        %v2514 = vadd.f32 %v2450, %v2512
        %s2515 = sld [smem:[#allocation14 + $0x79]]
        %v2516 = vstv %s2515
        %v2517 = vmul.f32 %v2516, %v1728
        %2519 = vrot.lane.b32.xlu0 %v2517, 117
        %v2520 = vpop.permute.xlu0 %2519
        %v2522 = vadd.f32 %v2458, %v2520
        %s2523 = sld [smem:[#allocation14 + $0x9d]]
        %v2524 = vstv %s2523
        %v2525 = vmul.f32 %v2524, %v1728
        %2527 = vrot.lane.b32.xlu0 %v2525, 117
        %v2528 = vpop.permute.xlu0 %2527
        %v2530 = vadd.f32 %v2466, %v2528
        %s2531 = sld [smem:[#allocation14 + $0xc1]]
        %v2532 = vstv %s2531
        %v2533 = vmul.f32 %v2532, %v1728
        %2535 = vrot.lane.b32.xlu0 %v2533, 117
        %v2536 = vpop.permute.xlu0 %2535
        %v2538 = vadd.f32 %v2474, %v2536
        %s2539 = sld [smem:[#allocation14 + $0xe5]]
        %v2540 = vstv %s2539
        %v2541 = vmul.f32 %v2540, %v1728
        %2543 = vrot.lane.b32.xlu0 %v2541, 117
        %v2544 = vpop.permute.xlu0 %2543
        %v2546 = vadd.f32 %v2482, %v2544
        %s2547 = sld [smem:[#allocation14 + $0x109]]
        %v2548 = vstv %s2547
        %v2549 = vmul.f32 %v2548, %v1728
        %2551 = vrot.lane.b32.xlu0 %v2549, 117
        %v2552 = vpop.permute.xlu0 %2551
        %v2554 = vadd.f32 %v2490, %v2552
        %s2555 = sld [smem:[#allocation14 + $0xe]]
        %v2556 = vstv %s2555
        %v2557 = vmul.f32 %v2556, %v1728
        %2559 = vrot.lane.b32.xlu0 %v2557, 116
        %v2560 = vpop.permute.xlu0 %2559
        %v2562 = vadd.f32 %v2498, %v2560
        %s2563 = sld [smem:[#allocation14 + $0x32]]
        %v2564 = vstv %s2563
        %v2565 = vmul.f32 %v2564, %v1728
        %2567 = vrot.lane.b32.xlu0 %v2565, 116
        %v2568 = vpop.permute.xlu0 %2567
        %v2570 = vadd.f32 %v2506, %v2568
        %s2571 = sld [smem:[#allocation14 + $0x56]]
        %v2572 = vstv %s2571
        %v2573 = vmul.f32 %v2572, %v1728
        %2575 = vrot.lane.b32.xlu0 %v2573, 116
        %v2576 = vpop.permute.xlu0 %2575
        %v2578 = vadd.f32 %v2514, %v2576
        %s2579 = sld [smem:[#allocation14 + $0x7a]]
        %v2580 = vstv %s2579
        %v2581 = vmul.f32 %v2580, %v1728
        %2583 = vrot.lane.b32.xlu0 %v2581, 116
        %v2584 = vpop.permute.xlu0 %2583
        %v2586 = vadd.f32 %v2522, %v2584
        %s2587 = sld [smem:[#allocation14 + $0x9e]]
        %v2588 = vstv %s2587
        %v2589 = vmul.f32 %v2588, %v1728
        %2591 = vrot.lane.b32.xlu0 %v2589, 116
        %v2592 = vpop.permute.xlu0 %2591
        %v2594 = vadd.f32 %v2530, %v2592
        %s2595 = sld [smem:[#allocation14 + $0xc2]]
        %v2596 = vstv %s2595
        %v2597 = vmul.f32 %v2596, %v1728
        %2599 = vrot.lane.b32.xlu0 %v2597, 116
        %v2600 = vpop.permute.xlu0 %2599
        %v2602 = vadd.f32 %v2538, %v2600
        %s2603 = sld [smem:[#allocation14 + $0xe6]]
        %v2604 = vstv %s2603
        %v2605 = vmul.f32 %v2604, %v1728
        %2607 = vrot.lane.b32.xlu0 %v2605, 116
        %v2608 = vpop.permute.xlu0 %2607
        %v2610 = vadd.f32 %v2546, %v2608
        %s2611 = sld [smem:[#allocation14 + $0x10a]]
        %v2612 = vstv %s2611
        %v2613 = vmul.f32 %v2612, %v1728
        %2615 = vrot.lane.b32.xlu0 %v2613, 116
        %v2616 = vpop.permute.xlu0 %2615
        %v2618 = vadd.f32 %v2554, %v2616
        %s2619 = sld [smem:[#allocation14 + $0xf]]
        %v2620 = vstv %s2619
        %v2621 = vmul.f32 %v2620, %v1728
        %2623 = vrot.lane.b32.xlu0 %v2621, 108
        %v2624 = vpop.permute.xlu0 %2623
        %v2626 = vadd.f32 %v2562, %v2624
        %s2627 = sld [smem:[#allocation14 + $0x33]]
        %v2628 = vstv %s2627
        %v2629 = vmul.f32 %v2628, %v1728
        %2631 = vrot.lane.b32.xlu0 %v2629, 108
        %v2632 = vpop.permute.xlu0 %2631
        %v2634 = vadd.f32 %v2570, %v2632
        %s2635 = sld [smem:[#allocation14 + $0x57]]
        %v2636 = vstv %s2635
        %v2637 = vmul.f32 %v2636, %v1728
        %2639 = vrot.lane.b32.xlu0 %v2637, 108
        %v2640 = vpop.permute.xlu0 %2639
        %v2642 = vadd.f32 %v2578, %v2640
        %s2643 = sld [smem:[#allocation14 + $0x7b]]
        %v2644 = vstv %s2643
        %v2645 = vmul.f32 %v2644, %v1728
        %2647 = vrot.lane.b32.xlu0 %v2645, 108
        %v2648 = vpop.permute.xlu0 %2647
        %v2650 = vadd.f32 %v2586, %v2648
        %s2651 = sld [smem:[#allocation14 + $0x9f]]
        %v2652 = vstv %s2651
        %v2653 = vmul.f32 %v2652, %v1728
        %2655 = vrot.lane.b32.xlu0 %v2653, 108
        %v2656 = vpop.permute.xlu0 %2655
        %v2658 = vadd.f32 %v2594, %v2656
        %s2659 = sld [smem:[#allocation14 + $0xc3]]
        %v2660 = vstv %s2659
        %v2661 = vmul.f32 %v2660, %v1728
        %2663 = vrot.lane.b32.xlu0 %v2661, 108
        %v2664 = vpop.permute.xlu0 %2663
        %v2666 = vadd.f32 %v2602, %v2664
        %s2667 = sld [smem:[#allocation14 + $0xe7]]
        %v2668 = vstv %s2667
        %v2669 = vmul.f32 %v2668, %v1728
        %2671 = vrot.lane.b32.xlu0 %v2669, 108
        %v2672 = vpop.permute.xlu0 %2671
        %v2674 = vadd.f32 %v2610, %v2672
        %s2675 = sld [smem:[#allocation14 + $0x10b]]
        %v2676 = vstv %s2675
        %v2677 = vmul.f32 %v2676, %v1728
        %2679 = vrot.lane.b32.xlu0 %v2677, 108
        %v2680 = vpop.permute.xlu0 %2679
        %v2682 = vadd.f32 %v2618, %v2680
        %s2683 = sld [smem:[#allocation14 + $0x10]]
        %v2684 = vstv %s2683
        %v2685 = vmul.f32 %v2684, %v1728
        %2687 = vrot.lane.b32.xlu0 %v2685, 107
        %v2688 = vpop.permute.xlu0 %2687
        %v2690 = vadd.f32 %v2626, %v2688
        %s2691 = sld [smem:[#allocation14 + $0x34]]
        %v2692 = vstv %s2691
        %v2693 = vmul.f32 %v2692, %v1728
        %2695 = vrot.lane.b32.xlu0 %v2693, 107
        %v2696 = vpop.permute.xlu0 %2695
        %v2698 = vadd.f32 %v2634, %v2696
        %s2699 = sld [smem:[#allocation14 + $0x58]]
        %v2700 = vstv %s2699
        %v2701 = vmul.f32 %v2700, %v1728
        %2703 = vrot.lane.b32.xlu0 %v2701, 107
        %v2704 = vpop.permute.xlu0 %2703
        %v2706 = vadd.f32 %v2642, %v2704
        %s2707 = sld [smem:[#allocation14 + $0x7c]]
        %v2708 = vstv %s2707
        %v2709 = vmul.f32 %v2708, %v1728
        %2711 = vrot.lane.b32.xlu0 %v2709, 107
        %v2712 = vpop.permute.xlu0 %2711
        %v2714 = vadd.f32 %v2650, %v2712
        %s2715 = sld [smem:[#allocation14 + $0xa0]]
        %v2716 = vstv %s2715
        %v2717 = vmul.f32 %v2716, %v1728
        %2719 = vrot.lane.b32.xlu0 %v2717, 107
        %v2720 = vpop.permute.xlu0 %2719
        %v2722 = vadd.f32 %v2658, %v2720
        %s2723 = sld [smem:[#allocation14 + $0xc4]]
        %v2724 = vstv %s2723
        %v2725 = vmul.f32 %v2724, %v1728
        %2727 = vrot.lane.b32.xlu0 %v2725, 107
        %v2728 = vpop.permute.xlu0 %2727
        %v2730 = vadd.f32 %v2666, %v2728
        %s2731 = sld [smem:[#allocation14 + $0xe8]]
        %v2732 = vstv %s2731
        %v2733 = vmul.f32 %v2732, %v1728
        %2735 = vrot.lane.b32.xlu0 %v2733, 107
        %v2736 = vpop.permute.xlu0 %2735
        %v2738 = vadd.f32 %v2674, %v2736
        %s2739 = sld [smem:[#allocation14 + $0x10c]]
        %v2740 = vstv %s2739
        %v2741 = vmul.f32 %v2740, %v1728
        %2743 = vrot.lane.b32.xlu0 %v2741, 107
        %v2744 = vpop.permute.xlu0 %2743
        %v2746 = vadd.f32 %v2682, %v2744
        %s2747 = sld [smem:[#allocation14 + $0x11]]
        %v2748 = vstv %s2747
        %v2749 = vmul.f32 %v2748, %v1728
        %2751 = vrot.lane.b32.xlu0 %v2749, 106
        %v2752 = vpop.permute.xlu0 %2751
        %v2754 = vadd.f32 %v2690, %v2752
        %s2755 = sld [smem:[#allocation14 + $0x35]]
        %v2756 = vstv %s2755
        %v2757 = vmul.f32 %v2756, %v1728
        %2759 = vrot.lane.b32.xlu0 %v2757, 106
        %v2760 = vpop.permute.xlu0 %2759
        %v2762 = vadd.f32 %v2698, %v2760
        %s2763 = sld [smem:[#allocation14 + $0x59]]
        %v2764 = vstv %s2763
        %v2765 = vmul.f32 %v2764, %v1728
        %2767 = vrot.lane.b32.xlu0 %v2765, 106
        %v2768 = vpop.permute.xlu0 %2767
        %v2770 = vadd.f32 %v2706, %v2768
        %s2771 = sld [smem:[#allocation14 + $0x7d]]
        %v2772 = vstv %s2771
        %v2773 = vmul.f32 %v2772, %v1728
        %2775 = vrot.lane.b32.xlu0 %v2773, 106
        %v2776 = vpop.permute.xlu0 %2775
        %v2778 = vadd.f32 %v2714, %v2776
        %s2779 = sld [smem:[#allocation14 + $0xa1]]
        %v2780 = vstv %s2779
        %v2781 = vmul.f32 %v2780, %v1728
        %2783 = vrot.lane.b32.xlu0 %v2781, 106
        %v2784 = vpop.permute.xlu0 %2783
        %v2786 = vadd.f32 %v2722, %v2784
        %s2787 = sld [smem:[#allocation14 + $0xc5]]
        %v2788 = vstv %s2787
        %v2789 = vmul.f32 %v2788, %v1728
        %2791 = vrot.lane.b32.xlu0 %v2789, 106
        %v2792 = vpop.permute.xlu0 %2791
        %v2794 = vadd.f32 %v2730, %v2792
        %s2795 = sld [smem:[#allocation14 + $0xe9]]
        %v2796 = vstv %s2795
        %v2797 = vmul.f32 %v2796, %v1728
        %2799 = vrot.lane.b32.xlu0 %v2797, 106
        %v2800 = vpop.permute.xlu0 %2799
        %v2802 = vadd.f32 %v2738, %v2800
        %s2803 = sld [smem:[#allocation14 + $0x10d]]
        %v2804 = vstv %s2803
        %v2805 = vmul.f32 %v2804, %v1728
        %2807 = vrot.lane.b32.xlu0 %v2805, 106
        %v2808 = vpop.permute.xlu0 %2807
        %v2810 = vadd.f32 %v2746, %v2808
        %s2811 = sld [smem:[#allocation14 + $0x12]]
        %v2812 = vstv %s2811
        %v2813 = vmul.f32 %v2812, %v1729
        %v2814 = vadd.f32 %v2754, %v2813
        %s2815 = sld [smem:[#allocation14 + $0x36]]
        %v2816 = vstv %s2815
        %v2817 = vmul.f32 %v2816, %v1729
        %v2818 = vadd.f32 %v2762, %v2817
        %s2819 = sld [smem:[#allocation14 + $0x5a]]
        %v2820 = vstv %s2819
        %v2821 = vmul.f32 %v2820, %v1729
        %v2822 = vadd.f32 %v2770, %v2821
        %s2823 = sld [smem:[#allocation14 + $0x7e]]
        %v2824 = vstv %s2823
        %v2825 = vmul.f32 %v2824, %v1729
        %v2826 = vadd.f32 %v2778, %v2825
        %s2827 = sld [smem:[#allocation14 + $0xa2]]
        %v2828 = vstv %s2827
        %v2829 = vmul.f32 %v2828, %v1729
        %v2830 = vadd.f32 %v2786, %v2829
        %s2831 = sld [smem:[#allocation14 + $0xc6]]
        %v2832 = vstv %s2831
        %v2833 = vmul.f32 %v2832, %v1729
        %v2834 = vadd.f32 %v2794, %v2833
        %s2835 = sld [smem:[#allocation14 + $0xea]]
        %v2836 = vstv %s2835
        %v2837 = vmul.f32 %v2836, %v1729
        %v2838 = vadd.f32 %v2802, %v2837
        %s2839 = sld [smem:[#allocation14 + $0x10e]]
        %v2840 = vstv %s2839
        %v2841 = vmul.f32 %v2840, %v1729
        %v2842 = vadd.f32 %v2810, %v2841
        %s2843 = sld [smem:[#allocation14 + $0x13]]
        %v2844 = vstv %s2843
        %v2845 = vmul.f32 %v2844, %v1729
        %2847 = vrot.lane.b32.xlu0 %v2845, 127
        %v2848 = vpop.permute.xlu0 %2847
        %v2850 = vadd.f32 %v2814, %v2848
        %s2851 = sld [smem:[#allocation14 + $0x37]]
        %v2852 = vstv %s2851
        %v2853 = vmul.f32 %v2852, %v1729
        %2855 = vrot.lane.b32.xlu0 %v2853, 127
        %v2856 = vpop.permute.xlu0 %2855
        %v2858 = vadd.f32 %v2818, %v2856
        %s2859 = sld [smem:[#allocation14 + $0x5b]]
        %v2860 = vstv %s2859
        %v2861 = vmul.f32 %v2860, %v1729
        %2863 = vrot.lane.b32.xlu0 %v2861, 127
        %v2864 = vpop.permute.xlu0 %2863
        %v2866 = vadd.f32 %v2822, %v2864
        %s2867 = sld [smem:[#allocation14 + $0x7f]]
        %v2868 = vstv %s2867
        %v2869 = vmul.f32 %v2868, %v1729
        %2871 = vrot.lane.b32.xlu0 %v2869, 127
        %v2872 = vpop.permute.xlu0 %2871
        %v2874 = vadd.f32 %v2826, %v2872
        %s2875 = sld [smem:[#allocation14 + $0xa3]]
        %v2876 = vstv %s2875
        %v2877 = vmul.f32 %v2876, %v1729
        %2879 = vrot.lane.b32.xlu0 %v2877, 127
        %v2880 = vpop.permute.xlu0 %2879
        %v2882 = vadd.f32 %v2830, %v2880
        %s2883 = sld [smem:[#allocation14 + $0xc7]]
        %v2884 = vstv %s2883
        %v2885 = vmul.f32 %v2884, %v1729
        %2887 = vrot.lane.b32.xlu0 %v2885, 127
        %v2888 = vpop.permute.xlu0 %2887
        %v2890 = vadd.f32 %v2834, %v2888
        %s2891 = sld [smem:[#allocation14 + $0xeb]]
        %v2892 = vstv %s2891
        %v2893 = vmul.f32 %v2892, %v1729
        %2895 = vrot.lane.b32.xlu0 %v2893, 127
        %v2896 = vpop.permute.xlu0 %2895
        %v2898 = vadd.f32 %v2838, %v2896
        %s2899 = sld [smem:[#allocation14 + $0x10f]]
        %v2900 = vstv %s2899
        %v2901 = vmul.f32 %v2900, %v1729
        %2903 = vrot.lane.b32.xlu0 %v2901, 127
        %v2904 = vpop.permute.xlu0 %2903
        %v2906 = vadd.f32 %v2842, %v2904
        %s2907 = sld [smem:[#allocation14 + $0x14]]
        %v2908 = vstv %s2907
        %v2909 = vmul.f32 %v2908, %v1729
        %2911 = vrot.lane.b32.xlu0 %v2909, 126
        %v2912 = vpop.permute.xlu0 %2911
        %v2914 = vadd.f32 %v2850, %v2912
        %s2915 = sld [smem:[#allocation14 + $0x38]]
        %v2916 = vstv %s2915
        %v2917 = vmul.f32 %v2916, %v1729
        %2919 = vrot.lane.b32.xlu0 %v2917, 126
        %v2920 = vpop.permute.xlu0 %2919
        %v2922 = vadd.f32 %v2858, %v2920
        %s2923 = sld [smem:[#allocation14 + $0x5c]]
        %v2924 = vstv %s2923
        %v2925 = vmul.f32 %v2924, %v1729
        %2927 = vrot.lane.b32.xlu0 %v2925, 126
        %v2928 = vpop.permute.xlu0 %2927
        %v2930 = vadd.f32 %v2866, %v2928
        %s2931 = sld [smem:[#allocation14 + $0x80]]
        %v2932 = vstv %s2931
        %v2933 = vmul.f32 %v2932, %v1729
        %2935 = vrot.lane.b32.xlu0 %v2933, 126
        %v2936 = vpop.permute.xlu0 %2935
        %v2938 = vadd.f32 %v2874, %v2936
        %s2939 = sld [smem:[#allocation14 + $0xa4]]
        %v2940 = vstv %s2939
        %v2941 = vmul.f32 %v2940, %v1729
        %2943 = vrot.lane.b32.xlu0 %v2941, 126
        %v2944 = vpop.permute.xlu0 %2943
        %v2946 = vadd.f32 %v2882, %v2944
        %s2947 = sld [smem:[#allocation14 + $0xc8]]
        %v2948 = vstv %s2947
        %v2949 = vmul.f32 %v2948, %v1729
        %2951 = vrot.lane.b32.xlu0 %v2949, 126
        %v2952 = vpop.permute.xlu0 %2951
        %v2954 = vadd.f32 %v2890, %v2952
        %s2955 = sld [smem:[#allocation14 + $0xec]]
        %v2956 = vstv %s2955
        %v2957 = vmul.f32 %v2956, %v1729
        %2959 = vrot.lane.b32.xlu0 %v2957, 126
        %v2960 = vpop.permute.xlu0 %2959
        %v2962 = vadd.f32 %v2898, %v2960
        %s2963 = sld [smem:[#allocation14 + $0x110]]
        %v2964 = vstv %s2963
        %v2965 = vmul.f32 %v2964, %v1729
        %2967 = vrot.lane.b32.xlu0 %v2965, 126
        %v2968 = vpop.permute.xlu0 %2967
        %v2970 = vadd.f32 %v2906, %v2968
        %s2971 = sld [smem:[#allocation14 + $0x15]]
        %v2972 = vstv %s2971
        %v2973 = vmul.f32 %v2972, %v1729
        %2975 = vrot.lane.b32.xlu0 %v2973, 118
        %v2976 = vpop.permute.xlu0 %2975
        %v2978 = vadd.f32 %v2914, %v2976
        %s2979 = sld [smem:[#allocation14 + $0x39]]
        %v2980 = vstv %s2979
        %v2981 = vmul.f32 %v2980, %v1729
        %2983 = vrot.lane.b32.xlu0 %v2981, 118
        %v2984 = vpop.permute.xlu0 %2983
        %v2986 = vadd.f32 %v2922, %v2984
        %s2987 = sld [smem:[#allocation14 + $0x5d]]
        %v2988 = vstv %s2987
        %v2989 = vmul.f32 %v2988, %v1729
        %2991 = vrot.lane.b32.xlu0 %v2989, 118
        %v2992 = vpop.permute.xlu0 %2991
        %v2994 = vadd.f32 %v2930, %v2992
        %s2995 = sld [smem:[#allocation14 + $0x81]]
        %v2996 = vstv %s2995
        %v2997 = vmul.f32 %v2996, %v1729
        %2999 = vrot.lane.b32.xlu0 %v2997, 118
        %v3000 = vpop.permute.xlu0 %2999
        %v3002 = vadd.f32 %v2938, %v3000
        %s3003 = sld [smem:[#allocation14 + $0xa5]]
        %v3004 = vstv %s3003
        %v3005 = vmul.f32 %v3004, %v1729
        %3007 = vrot.lane.b32.xlu0 %v3005, 118
        %v3008 = vpop.permute.xlu0 %3007
        %v3010 = vadd.f32 %v2946, %v3008
        %s3011 = sld [smem:[#allocation14 + $0xc9]]
        %v3012 = vstv %s3011
        %v3013 = vmul.f32 %v3012, %v1729
        %3015 = vrot.lane.b32.xlu0 %v3013, 118
        %v3016 = vpop.permute.xlu0 %3015
        %v3018 = vadd.f32 %v2954, %v3016
        %s3019 = sld [smem:[#allocation14 + $0xed]]
        %v3020 = vstv %s3019
        %v3021 = vmul.f32 %v3020, %v1729
        %3023 = vrot.lane.b32.xlu0 %v3021, 118
        %v3024 = vpop.permute.xlu0 %3023
        %v3026 = vadd.f32 %v2962, %v3024
        %s3027 = sld [smem:[#allocation14 + $0x111]]
        %v3028 = vstv %s3027
        %v3029 = vmul.f32 %v3028, %v1729
        %3031 = vrot.lane.b32.xlu0 %v3029, 118
        %v3032 = vpop.permute.xlu0 %3031
        %v3034 = vadd.f32 %v2970, %v3032
        %s3035 = sld [smem:[#allocation14 + $0x16]]
        %v3036 = vstv %s3035
        %v3037 = vmul.f32 %v3036, %v1729
        %3039 = vrot.lane.b32.xlu0 %v3037, 117
        %v3040 = vpop.permute.xlu0 %3039
        %v3042 = vadd.f32 %v2978, %v3040
        %s3043 = sld [smem:[#allocation14 + $0x3a]]
        %v3044 = vstv %s3043
        %v3045 = vmul.f32 %v3044, %v1729
        %3047 = vrot.lane.b32.xlu0 %v3045, 117
        %v3048 = vpop.permute.xlu0 %3047
        %v3050 = vadd.f32 %v2986, %v3048
        %s3051 = sld [smem:[#allocation14 + $0x5e]]
        %v3052 = vstv %s3051
        %v3053 = vmul.f32 %v3052, %v1729
        %3055 = vrot.lane.b32.xlu0 %v3053, 117
        %v3056 = vpop.permute.xlu0 %3055
        %v3058 = vadd.f32 %v2994, %v3056
        %s3059 = sld [smem:[#allocation14 + $0x82]]
        %v3060 = vstv %s3059
        %v3061 = vmul.f32 %v3060, %v1729
        %3063 = vrot.lane.b32.xlu0 %v3061, 117
        %v3064 = vpop.permute.xlu0 %3063
        %v3066 = vadd.f32 %v3002, %v3064
        %s3067 = sld [smem:[#allocation14 + $0xa6]]
        %v3068 = vstv %s3067
        %v3069 = vmul.f32 %v3068, %v1729
        %3071 = vrot.lane.b32.xlu0 %v3069, 117
        %v3072 = vpop.permute.xlu0 %3071
        %v3074 = vadd.f32 %v3010, %v3072
        %s3075 = sld [smem:[#allocation14 + $0xca]]
        %v3076 = vstv %s3075
        %v3077 = vmul.f32 %v3076, %v1729
        %3079 = vrot.lane.b32.xlu0 %v3077, 117
        %v3080 = vpop.permute.xlu0 %3079
        %v3082 = vadd.f32 %v3018, %v3080
        %s3083 = sld [smem:[#allocation14 + $0xee]]
        %v3084 = vstv %s3083
        %v3085 = vmul.f32 %v3084, %v1729
        %3087 = vrot.lane.b32.xlu0 %v3085, 117
        %v3088 = vpop.permute.xlu0 %3087
        %v3090 = vadd.f32 %v3026, %v3088
        %s3091 = sld [smem:[#allocation14 + $0x112]]
        %v3092 = vstv %s3091
        %v3093 = vmul.f32 %v3092, %v1729
        %3095 = vrot.lane.b32.xlu0 %v3093, 117
        %v3096 = vpop.permute.xlu0 %3095
        %v3098 = vadd.f32 %v3034, %v3096
        %s3099 = sld [smem:[#allocation14 + $0x17]]
        %v3100 = vstv %s3099
        %v3101 = vmul.f32 %v3100, %v1729
        %3103 = vrot.lane.b32.xlu0 %v3101, 116
        %v3104 = vpop.permute.xlu0 %3103
        %v3106 = vadd.f32 %v3042, %v3104
        %s3107 = sld [smem:[#allocation14 + $0x3b]]
        %v3108 = vstv %s3107
        %v3109 = vmul.f32 %v3108, %v1729
        %3111 = vrot.lane.b32.xlu0 %v3109, 116
        %v3112 = vpop.permute.xlu0 %3111
        %v3114 = vadd.f32 %v3050, %v3112
        %s3115 = sld [smem:[#allocation14 + $0x5f]]
        %v3116 = vstv %s3115
        %v3117 = vmul.f32 %v3116, %v1729
        %3119 = vrot.lane.b32.xlu0 %v3117, 116
        %v3120 = vpop.permute.xlu0 %3119
        %v3122 = vadd.f32 %v3058, %v3120
        %s3123 = sld [smem:[#allocation14 + $0x83]]
        %v3124 = vstv %s3123
        %v3125 = vmul.f32 %v3124, %v1729
        %3127 = vrot.lane.b32.xlu0 %v3125, 116
        %v3128 = vpop.permute.xlu0 %3127
        %v3130 = vadd.f32 %v3066, %v3128
        %s3131 = sld [smem:[#allocation14 + $0xa7]]
        %v3132 = vstv %s3131
        %v3133 = vmul.f32 %v3132, %v1729
        %3135 = vrot.lane.b32.xlu0 %v3133, 116
        %v3136 = vpop.permute.xlu0 %3135
        %v3138 = vadd.f32 %v3074, %v3136
        %s3139 = sld [smem:[#allocation14 + $0xcb]]
        %v3140 = vstv %s3139
        %v3141 = vmul.f32 %v3140, %v1729
        %3143 = vrot.lane.b32.xlu0 %v3141, 116
        %v3144 = vpop.permute.xlu0 %3143
        %v3146 = vadd.f32 %v3082, %v3144
        %s3147 = sld [smem:[#allocation14 + $0xef]]
        %v3148 = vstv %s3147
        %v3149 = vmul.f32 %v3148, %v1729
        %3151 = vrot.lane.b32.xlu0 %v3149, 116
        %v3152 = vpop.permute.xlu0 %3151
        %v3154 = vadd.f32 %v3090, %v3152
        %s3155 = sld [smem:[#allocation14 + $0x113]]
        %v3156 = vstv %s3155
        %v3157 = vmul.f32 %v3156, %v1729
        %3159 = vrot.lane.b32.xlu0 %v3157, 116
        %v3160 = vpop.permute.xlu0 %3159
        %v3162 = vadd.f32 %v3098, %v3160
        %s3163 = sld [smem:[#allocation14 + $0x18]]
        %v3164 = vstv %s3163
        %v3165 = vmul.f32 %v3164, %v1729
        %3167 = vrot.lane.b32.xlu0 %v3165, 108
        %v3168 = vpop.permute.xlu0 %3167
        %v3170 = vadd.f32 %v3106, %v3168
        %s3171 = sld [smem:[#allocation14 + $0x3c]]
        %v3172 = vstv %s3171
        %v3173 = vmul.f32 %v3172, %v1729
        %3175 = vrot.lane.b32.xlu0 %v3173, 108
        %v3176 = vpop.permute.xlu0 %3175
        %v3178 = vadd.f32 %v3114, %v3176
        %s3179 = sld [smem:[#allocation14 + $0x60]]
        %v3180 = vstv %s3179
        %v3181 = vmul.f32 %v3180, %v1729
        %3183 = vrot.lane.b32.xlu0 %v3181, 108
        %v3184 = vpop.permute.xlu0 %3183
        %v3186 = vadd.f32 %v3122, %v3184
        %s3187 = sld [smem:[#allocation14 + $0x84]]
        %v3188 = vstv %s3187
        %v3189 = vmul.f32 %v3188, %v1729
        %3191 = vrot.lane.b32.xlu0 %v3189, 108
        %v3192 = vpop.permute.xlu0 %3191
        %v3194 = vadd.f32 %v3130, %v3192
        %s3195 = sld [smem:[#allocation14 + $0xa8]]
        %v3196 = vstv %s3195
        %v3197 = vmul.f32 %v3196, %v1729
        %3199 = vrot.lane.b32.xlu0 %v3197, 108
        %v3200 = vpop.permute.xlu0 %3199
        %v3202 = vadd.f32 %v3138, %v3200
        %s3203 = sld [smem:[#allocation14 + $0xcc]]
        %v3204 = vstv %s3203
        %v3205 = vmul.f32 %v3204, %v1729
        %3207 = vrot.lane.b32.xlu0 %v3205, 108
        %v3208 = vpop.permute.xlu0 %3207
        %v3210 = vadd.f32 %v3146, %v3208
        %s3211 = sld [smem:[#allocation14 + $0xf0]]
        %v3212 = vstv %s3211
        %v3213 = vmul.f32 %v3212, %v1729
        %3215 = vrot.lane.b32.xlu0 %v3213, 108
        %v3216 = vpop.permute.xlu0 %3215
        %v3218 = vadd.f32 %v3154, %v3216
        %s3219 = sld [smem:[#allocation14 + $0x114]]
        %v3220 = vstv %s3219
        %v3221 = vmul.f32 %v3220, %v1729
        %3223 = vrot.lane.b32.xlu0 %v3221, 108
        %v3224 = vpop.permute.xlu0 %3223
        %v3226 = vadd.f32 %v3162, %v3224
        %s3227 = sld [smem:[#allocation14 + $0x19]]
        %v3228 = vstv %s3227
        %v3229 = vmul.f32 %v3228, %v1729
        %3231 = vrot.lane.b32.xlu0 %v3229, 107
        %v3232 = vpop.permute.xlu0 %3231
        %v3234 = vadd.f32 %v3170, %v3232
        %s3235 = sld [smem:[#allocation14 + $0x3d]]
        %v3236 = vstv %s3235
        %v3237 = vmul.f32 %v3236, %v1729
        %3239 = vrot.lane.b32.xlu0 %v3237, 107
        %v3240 = vpop.permute.xlu0 %3239
        %v3242 = vadd.f32 %v3178, %v3240
        %s3243 = sld [smem:[#allocation14 + $0x61]]
        %v3244 = vstv %s3243
        %v3245 = vmul.f32 %v3244, %v1729
        %3247 = vrot.lane.b32.xlu0 %v3245, 107
        %v3248 = vpop.permute.xlu0 %3247
        %v3250 = vadd.f32 %v3186, %v3248
        %s3251 = sld [smem:[#allocation14 + $0x85]]
        %v3252 = vstv %s3251
        %v3253 = vmul.f32 %v3252, %v1729
        %3255 = vrot.lane.b32.xlu0 %v3253, 107
        %v3256 = vpop.permute.xlu0 %3255
        %v3258 = vadd.f32 %v3194, %v3256
        %s3259 = sld [smem:[#allocation14 + $0xa9]]
        %v3260 = vstv %s3259
        %v3261 = vmul.f32 %v3260, %v1729
        %3263 = vrot.lane.b32.xlu0 %v3261, 107
        %v3264 = vpop.permute.xlu0 %3263
        %v3266 = vadd.f32 %v3202, %v3264
        %s3267 = sld [smem:[#allocation14 + $0xcd]]
        %v3268 = vstv %s3267
        %v3269 = vmul.f32 %v3268, %v1729
        %3271 = vrot.lane.b32.xlu0 %v3269, 107
        %v3272 = vpop.permute.xlu0 %3271
        %v3274 = vadd.f32 %v3210, %v3272
        %s3275 = sld [smem:[#allocation14 + $0xf1]]
        %v3276 = vstv %s3275
        %v3277 = vmul.f32 %v3276, %v1729
        %3279 = vrot.lane.b32.xlu0 %v3277, 107
        %v3280 = vpop.permute.xlu0 %3279
        %v3282 = vadd.f32 %v3218, %v3280
        %s3283 = sld [smem:[#allocation14 + $0x115]]
        %v3284 = vstv %s3283
        %v3285 = vmul.f32 %v3284, %v1729
        %3287 = vrot.lane.b32.xlu0 %v3285, 107
        %v3288 = vpop.permute.xlu0 %3287
        %v3290 = vadd.f32 %v3226, %v3288
        %s3291 = sld [smem:[#allocation14 + $0x1a]]
        %v3292 = vstv %s3291
        %v3293 = vmul.f32 %v3292, %v1729
        %3295 = vrot.lane.b32.xlu0 %v3293, 106
        %v3296 = vpop.permute.xlu0 %3295
        %v3298 = vadd.f32 %v3234, %v3296
        %s3299 = sld [smem:[#allocation14 + $0x3e]]
        %v3300 = vstv %s3299
        %v3301 = vmul.f32 %v3300, %v1729
        %3303 = vrot.lane.b32.xlu0 %v3301, 106
        %v3304 = vpop.permute.xlu0 %3303
        %v3306 = vadd.f32 %v3242, %v3304
        %s3307 = sld [smem:[#allocation14 + $0x62]]
        %v3308 = vstv %s3307
        %v3309 = vmul.f32 %v3308, %v1729
        %3311 = vrot.lane.b32.xlu0 %v3309, 106
        %v3312 = vpop.permute.xlu0 %3311
        %v3314 = vadd.f32 %v3250, %v3312
        %s3315 = sld [smem:[#allocation14 + $0x86]]
        %v3316 = vstv %s3315
        %v3317 = vmul.f32 %v3316, %v1729
        %3319 = vrot.lane.b32.xlu0 %v3317, 106
        %v3320 = vpop.permute.xlu0 %3319
        %v3322 = vadd.f32 %v3258, %v3320
        %s3323 = sld [smem:[#allocation14 + $0xaa]]
        %v3324 = vstv %s3323
        %v3325 = vmul.f32 %v3324, %v1729
        %3327 = vrot.lane.b32.xlu0 %v3325, 106
        %v3328 = vpop.permute.xlu0 %3327
        %v3330 = vadd.f32 %v3266, %v3328
        %s3331 = sld [smem:[#allocation14 + $0xce]]
        %v3332 = vstv %s3331
        %v3333 = vmul.f32 %v3332, %v1729
        %3335 = vrot.lane.b32.xlu0 %v3333, 106
        %v3336 = vpop.permute.xlu0 %3335
        %v3338 = vadd.f32 %v3274, %v3336
        %s3339 = sld [smem:[#allocation14 + $0xf2]]
        %v3340 = vstv %s3339
        %v3341 = vmul.f32 %v3340, %v1729
        %3343 = vrot.lane.b32.xlu0 %v3341, 106
        %v3344 = vpop.permute.xlu0 %3343
        %v3346 = vadd.f32 %v3282, %v3344
        %s3347 = sld [smem:[#allocation14 + $0x116]]
        %v3348 = vstv %s3347
        %v3349 = vmul.f32 %v3348, %v1729
        %3351 = vrot.lane.b32.xlu0 %v3349, 106
        %v3352 = vpop.permute.xlu0 %3351
        %v3354 = vadd.f32 %v3290, %v3352
        %s3355 = sld [smem:[#allocation14 + $0x1b]]
        %v3356 = vstv %s3355
        %v3357 = vmul.f32 %v3356, %v1730
        %v3358 = vadd.f32 %v3298, %v3357
        %s3359 = sld [smem:[#allocation14 + $0x3f]]
        %v3360 = vstv %s3359
        %v3361 = vmul.f32 %v3360, %v1730
        %v3362 = vadd.f32 %v3306, %v3361
        %s3363 = sld [smem:[#allocation14 + $0x63]]
        %v3364 = vstv %s3363
        %v3365 = vmul.f32 %v3364, %v1730
        %v3366 = vadd.f32 %v3314, %v3365
        %s3367 = sld [smem:[#allocation14 + $0x87]]
        %v3368 = vstv %s3367
        %v3369 = vmul.f32 %v3368, %v1730
        %v3370 = vadd.f32 %v3322, %v3369
        %s3371 = sld [smem:[#allocation14 + $0xab]]
        %v3372 = vstv %s3371
        %v3373 = vmul.f32 %v3372, %v1730
        %v3374 = vadd.f32 %v3330, %v3373
        %s3375 = sld [smem:[#allocation14 + $0xcf]]
        %v3376 = vstv %s3375
        %v3377 = vmul.f32 %v3376, %v1730
        %v3378 = vadd.f32 %v3338, %v3377
        %s3379 = sld [smem:[#allocation14 + $0xf3]]
        %v3380 = vstv %s3379
        %v3381 = vmul.f32 %v3380, %v1730
        %v3382 = vadd.f32 %v3346, %v3381
        %s3383 = sld [smem:[#allocation14 + $0x117]]
        %v3384 = vstv %s3383
        %v3385 = vmul.f32 %v3384, %v1730
        %v3386 = vadd.f32 %v3354, %v3385
        %s3387 = sld [smem:[#allocation14 + $0x1c]]
        %v3388 = vstv %s3387
        %v3389 = vmul.f32 %v3388, %v1730
        %3391 = vrot.lane.b32.xlu0 %v3389, 127
        %v3392 = vpop.permute.xlu0 %3391
        %v3394 = vadd.f32 %v3358, %v3392
        %s3395 = sld [smem:[#allocation14 + $0x40]]
        %v3396 = vstv %s3395
        %v3397 = vmul.f32 %v3396, %v1730
        %3399 = vrot.lane.b32.xlu0 %v3397, 127
        %v3400 = vpop.permute.xlu0 %3399
        %v3402 = vadd.f32 %v3362, %v3400
        %s3403 = sld [smem:[#allocation14 + $0x64]]
        %v3404 = vstv %s3403
        %v3405 = vmul.f32 %v3404, %v1730
        %3407 = vrot.lane.b32.xlu0 %v3405, 127
        %v3408 = vpop.permute.xlu0 %3407
        %v3410 = vadd.f32 %v3366, %v3408
        %s3411 = sld [smem:[#allocation14 + $0x88]]
        %v3412 = vstv %s3411
        %v3413 = vmul.f32 %v3412, %v1730
        %3415 = vrot.lane.b32.xlu0 %v3413, 127
        %v3416 = vpop.permute.xlu0 %3415
        %v3418 = vadd.f32 %v3370, %v3416
        %s3419 = sld [smem:[#allocation14 + $0xac]]
        %v3420 = vstv %s3419
        %v3421 = vmul.f32 %v3420, %v1730
        %3423 = vrot.lane.b32.xlu0 %v3421, 127
        %v3424 = vpop.permute.xlu0 %3423
        %v3426 = vadd.f32 %v3374, %v3424
        %s3427 = sld [smem:[#allocation14 + $0xd0]]
        %v3428 = vstv %s3427
        %v3429 = vmul.f32 %v3428, %v1730
        %3431 = vrot.lane.b32.xlu0 %v3429, 127
        %v3432 = vpop.permute.xlu0 %3431
        %v3434 = vadd.f32 %v3378, %v3432
        %s3435 = sld [smem:[#allocation14 + $0xf4]]
        %v3436 = vstv %s3435
        %v3437 = vmul.f32 %v3436, %v1730
        %3439 = vrot.lane.b32.xlu0 %v3437, 127
        %v3440 = vpop.permute.xlu0 %3439
        %v3442 = vadd.f32 %v3382, %v3440
        %s3443 = sld [smem:[#allocation14 + $0x118]]
        %v3444 = vstv %s3443
        %v3445 = vmul.f32 %v3444, %v1730
        %3447 = vrot.lane.b32.xlu0 %v3445, 127
        %v3448 = vpop.permute.xlu0 %3447
        %v3450 = vadd.f32 %v3386, %v3448
        %s3451 = sld [smem:[#allocation14 + $0x1d]]
        %v3452 = vstv %s3451
        %v3453 = vmul.f32 %v3452, %v1730
        %3455 = vrot.lane.b32.xlu0 %v3453, 126
        %v3456 = vpop.permute.xlu0 %3455
        %v3458 = vadd.f32 %v3394, %v3456
        %s3459 = sld [smem:[#allocation14 + $0x41]]
        %v3460 = vstv %s3459
        %v3461 = vmul.f32 %v3460, %v1730
        %3463 = vrot.lane.b32.xlu0 %v3461, 126
        %v3464 = vpop.permute.xlu0 %3463
        %v3466 = vadd.f32 %v3402, %v3464
        %s3467 = sld [smem:[#allocation14 + $0x65]]
        %v3468 = vstv %s3467
        %v3469 = vmul.f32 %v3468, %v1730
        %3471 = vrot.lane.b32.xlu0 %v3469, 126
        %v3472 = vpop.permute.xlu0 %3471
        %v3474 = vadd.f32 %v3410, %v3472
        %s3475 = sld [smem:[#allocation14 + $0x89]]
        %v3476 = vstv %s3475
        %v3477 = vmul.f32 %v3476, %v1730
        %3479 = vrot.lane.b32.xlu0 %v3477, 126
        %v3480 = vpop.permute.xlu0 %3479
        %v3482 = vadd.f32 %v3418, %v3480
        %s3483 = sld [smem:[#allocation14 + $0xad]]
        %v3484 = vstv %s3483
        %v3485 = vmul.f32 %v3484, %v1730
        %3487 = vrot.lane.b32.xlu0 %v3485, 126
        %v3488 = vpop.permute.xlu0 %3487
        %v3490 = vadd.f32 %v3426, %v3488
        %s3491 = sld [smem:[#allocation14 + $0xd1]]
        %v3492 = vstv %s3491
        %v3493 = vmul.f32 %v3492, %v1730
        %3495 = vrot.lane.b32.xlu0 %v3493, 126
        %v3496 = vpop.permute.xlu0 %3495
        %v3498 = vadd.f32 %v3434, %v3496
        %s3499 = sld [smem:[#allocation14 + $0xf5]]
        %v3500 = vstv %s3499
        %v3501 = vmul.f32 %v3500, %v1730
        %3503 = vrot.lane.b32.xlu0 %v3501, 126
        %v3504 = vpop.permute.xlu0 %3503
        %v3506 = vadd.f32 %v3442, %v3504
        %s3507 = sld [smem:[#allocation14 + $0x119]]
        %v3508 = vstv %s3507
        %v3509 = vmul.f32 %v3508, %v1730
        %3511 = vrot.lane.b32.xlu0 %v3509, 126
        %v3512 = vpop.permute.xlu0 %3511
        %v3514 = vadd.f32 %v3450, %v3512
        %s3515 = sld [smem:[#allocation14 + $0x1e]]
        %v3516 = vstv %s3515
        %v3517 = vmul.f32 %v3516, %v1730
        %3519 = vrot.lane.b32.xlu0 %v3517, 118
        %v3520 = vpop.permute.xlu0 %3519
        %v3522 = vadd.f32 %v3458, %v3520
        %s3523 = sld [smem:[#allocation14 + $0x42]]
        %v3524 = vstv %s3523
        %v3525 = vmul.f32 %v3524, %v1730
        %3527 = vrot.lane.b32.xlu0 %v3525, 118
        %v3528 = vpop.permute.xlu0 %3527
        %v3530 = vadd.f32 %v3466, %v3528
        %s3531 = sld [smem:[#allocation14 + $0x66]]
        %v3532 = vstv %s3531
        %v3533 = vmul.f32 %v3532, %v1730
        %3535 = vrot.lane.b32.xlu0 %v3533, 118
        %v3536 = vpop.permute.xlu0 %3535
        %v3538 = vadd.f32 %v3474, %v3536
        %s3539 = sld [smem:[#allocation14 + $0x8a]]
        %v3540 = vstv %s3539
        %v3541 = vmul.f32 %v3540, %v1730
        %3543 = vrot.lane.b32.xlu0 %v3541, 118
        %v3544 = vpop.permute.xlu0 %3543
        %v3546 = vadd.f32 %v3482, %v3544
        %s3547 = sld [smem:[#allocation14 + $0xae]]
        %v3548 = vstv %s3547
        %v3549 = vmul.f32 %v3548, %v1730
        %3551 = vrot.lane.b32.xlu0 %v3549, 118
        %v3552 = vpop.permute.xlu0 %3551
        %v3554 = vadd.f32 %v3490, %v3552
        %s3555 = sld [smem:[#allocation14 + $0xd2]]
        %v3556 = vstv %s3555
        %v3557 = vmul.f32 %v3556, %v1730
        %3559 = vrot.lane.b32.xlu0 %v3557, 118
        %v3560 = vpop.permute.xlu0 %3559
        %v3562 = vadd.f32 %v3498, %v3560
        %s3563 = sld [smem:[#allocation14 + $0xf6]]
        %v3564 = vstv %s3563
        %v3565 = vmul.f32 %v3564, %v1730
        %3567 = vrot.lane.b32.xlu0 %v3565, 118
        %v3568 = vpop.permute.xlu0 %3567
        %v3570 = vadd.f32 %v3506, %v3568
        %s3571 = sld [smem:[#allocation14 + $0x11a]]
        %v3572 = vstv %s3571
        %v3573 = vmul.f32 %v3572, %v1730
        %3575 = vrot.lane.b32.xlu0 %v3573, 118
        %v3576 = vpop.permute.xlu0 %3575
        %v3578 = vadd.f32 %v3514, %v3576
        %s3579 = sld [smem:[#allocation14 + $0x1f]]
        %v3580 = vstv %s3579
        %v3581 = vmul.f32 %v3580, %v1730
        %3583 = vrot.lane.b32.xlu0 %v3581, 117
        %v3584 = vpop.permute.xlu0 %3583
        %v3586 = vadd.f32 %v3522, %v3584
        %s3587 = sld [smem:[#allocation14 + $0x43]]
        %v3588 = vstv %s3587
        %v3589 = vmul.f32 %v3588, %v1730
        %3591 = vrot.lane.b32.xlu0 %v3589, 117
        %v3592 = vpop.permute.xlu0 %3591
        %v3594 = vadd.f32 %v3530, %v3592
        %s3595 = sld [smem:[#allocation14 + $0x67]]
        %v3596 = vstv %s3595
        %v3597 = vmul.f32 %v3596, %v1730
        %3599 = vrot.lane.b32.xlu0 %v3597, 117
        %v3600 = vpop.permute.xlu0 %3599
        %v3602 = vadd.f32 %v3538, %v3600
        %s3603 = sld [smem:[#allocation14 + $0x8b]]
        %v3604 = vstv %s3603
        %v3605 = vmul.f32 %v3604, %v1730
        %3607 = vrot.lane.b32.xlu0 %v3605, 117
        %v3608 = vpop.permute.xlu0 %3607
        %v3610 = vadd.f32 %v3546, %v3608
        %s3611 = sld [smem:[#allocation14 + $0xaf]]
        %v3612 = vstv %s3611
        %v3613 = vmul.f32 %v3612, %v1730
        %3615 = vrot.lane.b32.xlu0 %v3613, 117
        %v3616 = vpop.permute.xlu0 %3615
        %v3618 = vadd.f32 %v3554, %v3616
        %s3619 = sld [smem:[#allocation14 + $0xd3]]
        %v3620 = vstv %s3619
        %v3621 = vmul.f32 %v3620, %v1730
        %3623 = vrot.lane.b32.xlu0 %v3621, 117
        %v3624 = vpop.permute.xlu0 %3623
        %v3626 = vadd.f32 %v3562, %v3624
        %s3627 = sld [smem:[#allocation14 + $0xf7]]
        %v3628 = vstv %s3627
        %v3629 = vmul.f32 %v3628, %v1730
        %3631 = vrot.lane.b32.xlu0 %v3629, 117
        %v3632 = vpop.permute.xlu0 %3631
        %v3634 = vadd.f32 %v3570, %v3632
        %s3635 = sld [smem:[#allocation14 + $0x11b]]
        %v3636 = vstv %s3635
        %v3637 = vmul.f32 %v3636, %v1730
        %3639 = vrot.lane.b32.xlu0 %v3637, 117
        %v3640 = vpop.permute.xlu0 %3639
        %v3642 = vadd.f32 %v3578, %v3640
        %s3643 = sld [smem:[#allocation14 + $0x20]]
        %v3644 = vstv %s3643
        %v3645 = vmul.f32 %v3644, %v1730
        %3647 = vrot.lane.b32.xlu0 %v3645, 116
        %v3648 = vpop.permute.xlu0 %3647
        %v3650 = vadd.f32 %v3586, %v3648
        %s3651 = sld [smem:[#allocation14 + $0x44]]
        %v3652 = vstv %s3651
        %v3653 = vmul.f32 %v3652, %v1730
        %3655 = vrot.lane.b32.xlu0 %v3653, 116
        %v3656 = vpop.permute.xlu0 %3655
        %v3658 = vadd.f32 %v3594, %v3656
        %s3659 = sld [smem:[#allocation14 + $0x68]]
        %v3660 = vstv %s3659
        %v3661 = vmul.f32 %v3660, %v1730
        %3663 = vrot.lane.b32.xlu0 %v3661, 116
        %v3664 = vpop.permute.xlu0 %3663
        %v3666 = vadd.f32 %v3602, %v3664
        %s3667 = sld [smem:[#allocation14 + $0x8c]]
        %v3668 = vstv %s3667
        %v3669 = vmul.f32 %v3668, %v1730
        %3671 = vrot.lane.b32.xlu0 %v3669, 116
        %v3672 = vpop.permute.xlu0 %3671
        %v3674 = vadd.f32 %v3610, %v3672
        %s3675 = sld [smem:[#allocation14 + $0xb0]]
        %v3676 = vstv %s3675
        %v3677 = vmul.f32 %v3676, %v1730
        %3679 = vrot.lane.b32.xlu0 %v3677, 116
        %v3680 = vpop.permute.xlu0 %3679
        %v3682 = vadd.f32 %v3618, %v3680
        %s3683 = sld [smem:[#allocation14 + $0xd4]]
        %v3684 = vstv %s3683
        %v3685 = vmul.f32 %v3684, %v1730
        %3687 = vrot.lane.b32.xlu0 %v3685, 116
        %v3688 = vpop.permute.xlu0 %3687
        %v3690 = vadd.f32 %v3626, %v3688
        %s3691 = sld [smem:[#allocation14 + $0xf8]]
        %v3692 = vstv %s3691
        %v3693 = vmul.f32 %v3692, %v1730
        %3695 = vrot.lane.b32.xlu0 %v3693, 116
        %v3696 = vpop.permute.xlu0 %3695
        %v3698 = vadd.f32 %v3634, %v3696
        %s3699 = sld [smem:[#allocation14 + $0x11c]]
        %v3700 = vstv %s3699
        %v3701 = vmul.f32 %v3700, %v1730
        %3703 = vrot.lane.b32.xlu0 %v3701, 116
        %v3704 = vpop.permute.xlu0 %3703
        %v3706 = vadd.f32 %v3642, %v3704
        %s3707 = sld [smem:[#allocation14 + $0x21]]
        %v3708 = vstv %s3707
        %v3709 = vmul.f32 %v3708, %v1730
        %3711 = vrot.lane.b32.xlu0 %v3709, 108
        %v3712 = vpop.permute.xlu0 %3711
        %v3714 = vadd.f32 %v3650, %v3712
        %s3715 = sld [smem:[#allocation14 + $0x45]]
        %v3716 = vstv %s3715
        %v3717 = vmul.f32 %v3716, %v1730
        %3719 = vrot.lane.b32.xlu0 %v3717, 108
        %v3720 = vpop.permute.xlu0 %3719
        %v3722 = vadd.f32 %v3658, %v3720
        %s3723 = sld [smem:[#allocation14 + $0x69]]
        %v3724 = vstv %s3723
        %v3725 = vmul.f32 %v3724, %v1730
        %3727 = vrot.lane.b32.xlu0 %v3725, 108
        %v3728 = vpop.permute.xlu0 %3727
        %v3730 = vadd.f32 %v3666, %v3728
        %s3731 = sld [smem:[#allocation14 + $0x8d]]
        %v3732 = vstv %s3731
        %v3733 = vmul.f32 %v3732, %v1730
        %3735 = vrot.lane.b32.xlu0 %v3733, 108
        %v3736 = vpop.permute.xlu0 %3735
        %v3738 = vadd.f32 %v3674, %v3736
        %s3739 = sld [smem:[#allocation14 + $0xb1]]
        %v3740 = vstv %s3739
        %v3741 = vmul.f32 %v3740, %v1730
        %3743 = vrot.lane.b32.xlu0 %v3741, 108
        %v3744 = vpop.permute.xlu0 %3743
        %v3746 = vadd.f32 %v3682, %v3744
        %s3747 = sld [smem:[#allocation14 + $0xd5]]
        %v3748 = vstv %s3747
        %v3749 = vmul.f32 %v3748, %v1730
        %3751 = vrot.lane.b32.xlu0 %v3749, 108
        %v3752 = vpop.permute.xlu0 %3751
        %v3754 = vadd.f32 %v3690, %v3752
        %s3755 = sld [smem:[#allocation14 + $0xf9]]
        %v3756 = vstv %s3755
        %v3757 = vmul.f32 %v3756, %v1730
        %3759 = vrot.lane.b32.xlu0 %v3757, 108
        %v3760 = vpop.permute.xlu0 %3759
        %v3762 = vadd.f32 %v3698, %v3760
        %s3763 = sld [smem:[#allocation14 + $0x11d]]
        %v3764 = vstv %s3763
        %v3765 = vmul.f32 %v3764, %v1730
        %3767 = vrot.lane.b32.xlu0 %v3765, 108
        %v3768 = vpop.permute.xlu0 %3767
        %v3770 = vadd.f32 %v3706, %v3768
        %s3771 = sld [smem:[#allocation14 + $0x22]]
        %v3772 = vstv %s3771
        %v3773 = vmul.f32 %v3772, %v1730
        %3775 = vrot.lane.b32.xlu0 %v3773, 107
        %v3776 = vpop.permute.xlu0 %3775
        %v3778 = vadd.f32 %v3714, %v3776
        %s3779 = sld [smem:[#allocation14 + $0x46]]
        %v3780 = vstv %s3779
        %v3781 = vmul.f32 %v3780, %v1730
        %3783 = vrot.lane.b32.xlu0 %v3781, 107
        %v3784 = vpop.permute.xlu0 %3783
        %v3786 = vadd.f32 %v3722, %v3784
        %s3787 = sld [smem:[#allocation14 + $0x6a]]
        %v3788 = vstv %s3787
        %v3789 = vmul.f32 %v3788, %v1730
        %3791 = vrot.lane.b32.xlu0 %v3789, 107
        %v3792 = vpop.permute.xlu0 %3791
        %v3794 = vadd.f32 %v3730, %v3792
        %s3795 = sld [smem:[#allocation14 + $0x8e]]
        %v3796 = vstv %s3795
        %v3797 = vmul.f32 %v3796, %v1730
        %3799 = vrot.lane.b32.xlu0 %v3797, 107
        %v3800 = vpop.permute.xlu0 %3799
        %v3802 = vadd.f32 %v3738, %v3800
        %s3803 = sld [smem:[#allocation14 + $0xb2]]
        %v3804 = vstv %s3803
        %v3805 = vmul.f32 %v3804, %v1730
        %3807 = vrot.lane.b32.xlu0 %v3805, 107
        %v3808 = vpop.permute.xlu0 %3807
        %v3810 = vadd.f32 %v3746, %v3808
        %s3811 = sld [smem:[#allocation14 + $0xd6]]
        %v3812 = vstv %s3811
        %v3813 = vmul.f32 %v3812, %v1730
        %3815 = vrot.lane.b32.xlu0 %v3813, 107
        %v3816 = vpop.permute.xlu0 %3815
        %v3818 = vadd.f32 %v3754, %v3816
        %s3819 = sld [smem:[#allocation14 + $0xfa]]
        %v3820 = vstv %s3819
        %v3821 = vmul.f32 %v3820, %v1730
        %3823 = vrot.lane.b32.xlu0 %v3821, 107
        %v3824 = vpop.permute.xlu0 %3823
        %v3826 = vadd.f32 %v3762, %v3824
        %s3827 = sld [smem:[#allocation14 + $0x11e]]
        %v3828 = vstv %s3827
        %v3829 = vmul.f32 %v3828, %v1730
        %3831 = vrot.lane.b32.xlu0 %v3829, 107
        %v3832 = vpop.permute.xlu0 %3831
        %v3834 = vadd.f32 %v3770, %v3832
        %s3835 = sld [smem:[#allocation14 + $0x23]]
        %v3836 = vstv %s3835
        %v3837 = vmul.f32 %v3836, %v1730
        %3839 = vrot.lane.b32.xlu0 %v3837, 106
        %v3840 = vpop.permute.xlu0 %3839
        %v3842 = vadd.f32 %v3778, %v3840
        %s3843 = sld [smem:[#allocation14 + $0x47]]
        %v3844 = vstv %s3843
        %v3845 = vmul.f32 %v3844, %v1730
        %3847 = vrot.lane.b32.xlu0 %v3845, 106
        %v3848 = vpop.permute.xlu0 %3847
        %v3850 = vadd.f32 %v3786, %v3848
        %s3851 = sld [smem:[#allocation14 + $0x6b]]
        %v3852 = vstv %s3851
        %v3853 = vmul.f32 %v3852, %v1730
        %3855 = vrot.lane.b32.xlu0 %v3853, 106
        %v3856 = vpop.permute.xlu0 %3855
        %v3858 = vadd.f32 %v3794, %v3856
        %s3859 = sld [smem:[#allocation14 + $0x8f]]
        %v3860 = vstv %s3859
        %v3861 = vmul.f32 %v3860, %v1730
        %3863 = vrot.lane.b32.xlu0 %v3861, 106
        %v3864 = vpop.permute.xlu0 %3863
        %v3866 = vadd.f32 %v3802, %v3864
        %s3867 = sld [smem:[#allocation14 + $0xb3]]
        %v3868 = vstv %s3867
        %v3869 = vmul.f32 %v3868, %v1730
        %3871 = vrot.lane.b32.xlu0 %v3869, 106
        %v3872 = vpop.permute.xlu0 %3871
        %v3874 = vadd.f32 %v3810, %v3872
        %s3875 = sld [smem:[#allocation14 + $0xd7]]
        %v3876 = vstv %s3875
        %v3877 = vmul.f32 %v3876, %v1730
        %3879 = vrot.lane.b32.xlu0 %v3877, 106
        %v3880 = vpop.permute.xlu0 %3879
        %v3882 = vadd.f32 %v3818, %v3880
        %s3883 = sld [smem:[#allocation14 + $0xfb]]
        %v3884 = vstv %s3883
        %v3885 = vmul.f32 %v3884, %v1730
        %3887 = vrot.lane.b32.xlu0 %v3885, 106
        %v3888 = vpop.permute.xlu0 %3887
        %v3890 = vadd.f32 %v3826, %v3888
        %s3891 = sld [smem:[#allocation14 + $0x11f]]
        %v3892 = vstv %s3891
        %v3893 = vmul.f32 %v3892, %v1730
        %3895 = vrot.lane.b32.xlu0 %v3893, 106
        %v3896 = vpop.permute.xlu0 %3895
        %v3898 = vadd.f32 %v3834, %v3896
        %s3899 = sld [smem:[#allocation15]]
        %v3900 = vstv %s3899
        %v3901 = vadd.f32 %v3842, %v3900
        %v3902 = vmax.f32 %v3901, 0.0
        %3904 = vrot.lane.b32.xlu0 %v3902, 127
        %v3905 = vpop.permute.xlu0 %3904
        %v3907 = vmax.f32 %v3902, %v3905
        %3908 = vrot.lane.b32.xlu0 %v3902, 118
        %v3909 = vpop.permute.xlu0 %3908
        %v3911 = vmax.f32 %v3907, %v3909
        %3912 = vrot.lane.b32.xlu0 %v3902, 117
        %v3913 = vpop.permute.xlu0 %3912
        %v3915 = vmax.f32 %v3911, %v3913
        %s3916 = sld [smem:[#allocation15 + $0x1]]
        %v3917 = vstv %s3916
        %v3918 = vadd.f32 %v3850, %v3917
        %v3919 = vmax.f32 %v3918, 0.0
        %3921 = vrot.lane.b32.xlu0 %v3919, 127
        %v3922 = vpop.permute.xlu0 %3921
        %v3924 = vmax.f32 %v3919, %v3922
        %3925 = vrot.lane.b32.xlu0 %v3919, 118
        %v3926 = vpop.permute.xlu0 %3925
        %v3928 = vmax.f32 %v3924, %v3926
        %3929 = vrot.lane.b32.xlu0 %v3919, 117
        %v3930 = vpop.permute.xlu0 %3929
        %v3932 = vmax.f32 %v3928, %v3930
        %s3933 = sld [smem:[#allocation15 + $0x2]]
        %v3934 = vstv %s3933
        %v3935 = vadd.f32 %v3858, %v3934
        %v3936 = vmax.f32 %v3935, 0.0
        %3938 = vrot.lane.b32.xlu0 %v3936, 127
        %v3939 = vpop.permute.xlu0 %3938
        %v3941 = vmax.f32 %v3936, %v3939
        %3942 = vrot.lane.b32.xlu0 %v3936, 118
        %v3943 = vpop.permute.xlu0 %3942
        %v3945 = vmax.f32 %v3941, %v3943
        %3946 = vrot.lane.b32.xlu0 %v3936, 117
        %v3947 = vpop.permute.xlu0 %3946
        %v3949 = vmax.f32 %v3945, %v3947
        %s3950 = sld [smem:[#allocation15 + $0x3]]
        %v3951 = vstv %s3950
        %v3952 = vadd.f32 %v3866, %v3951
        %v3953 = vmax.f32 %v3952, 0.0
        %3955 = vrot.lane.b32.xlu0 %v3953, 127
        %v3956 = vpop.permute.xlu0 %3955
        %v3958 = vmax.f32 %v3953, %v3956
        %3959 = vrot.lane.b32.xlu0 %v3953, 118
        %v3960 = vpop.permute.xlu0 %3959
        %v3962 = vmax.f32 %v3958, %v3960
        %3963 = vrot.lane.b32.xlu0 %v3953, 117
        %v3964 = vpop.permute.xlu0 %3963
        %v3966 = vmax.f32 %v3962, %v3964
        %s3967 = sld [smem:[#allocation15 + $0x4]]
        %v3968 = vstv %s3967
        %v3969 = vadd.f32 %v3874, %v3968
        %v3970 = vmax.f32 %v3969, 0.0
        %3972 = vrot.lane.b32.xlu0 %v3970, 127
        %v3973 = vpop.permute.xlu0 %3972
        %v3975 = vmax.f32 %v3970, %v3973
        %3976 = vrot.lane.b32.xlu0 %v3970, 118
        %v3977 = vpop.permute.xlu0 %3976
        %v3979 = vmax.f32 %v3975, %v3977
        %3980 = vrot.lane.b32.xlu0 %v3970, 117
        %v3981 = vpop.permute.xlu0 %3980
        %v3983 = vmax.f32 %v3979, %v3981
        %s3984 = sld [smem:[#allocation15 + $0x5]]
        %v3985 = vstv %s3984
        %v3986 = vadd.f32 %v3882, %v3985
        %v3987 = vmax.f32 %v3986, 0.0
        %3989 = vrot.lane.b32.xlu0 %v3987, 127
        %v3990 = vpop.permute.xlu0 %3989
        %v3992 = vmax.f32 %v3987, %v3990
        %3993 = vrot.lane.b32.xlu0 %v3987, 118
        %v3994 = vpop.permute.xlu0 %3993
        %v3996 = vmax.f32 %v3992, %v3994
        %3997 = vrot.lane.b32.xlu0 %v3987, 117
        %v3998 = vpop.permute.xlu0 %3997
        %v4000 = vmax.f32 %v3996, %v3998
        %s4001 = sld [smem:[#allocation15 + $0x6]]
        %v4002 = vstv %s4001
        %v4003 = vadd.f32 %v3890, %v4002
        %v4004 = vmax.f32 %v4003, 0.0
        %4006 = vrot.lane.b32.xlu0 %v4004, 127
        %v4007 = vpop.permute.xlu0 %4006
        %v4009 = vmax.f32 %v4004, %v4007
        %4010 = vrot.lane.b32.xlu0 %v4004, 118
        %v4011 = vpop.permute.xlu0 %4010
        %v4013 = vmax.f32 %v4009, %v4011
        %4014 = vrot.lane.b32.xlu0 %v4004, 117
        %v4015 = vpop.permute.xlu0 %4014
        %v4017 = vmax.f32 %v4013, %v4015
        %s4018 = sld [smem:[#allocation15 + $0x7]]
        %v4019 = vstv %s4018
        %v4020 = vadd.f32 %v3898, %v4019
        %v4021 = vmax.f32 %v4020, 0.0
        %4023 = vrot.lane.b32.xlu0 %v4021, 127
        %v4024 = vpop.permute.xlu0 %4023
        %v4026 = vmax.f32 %v4021, %v4024
        %4027 = vrot.lane.b32.xlu0 %v4021, 118
        %v4028 = vpop.permute.xlu0 %4027
        %v4030 = vmax.f32 %v4026, %v4028
        %4031 = vrot.lane.b32.xlu0 %v4021, 117
        %v4032 = vpop.permute.xlu0 %4031
        %v4034 = vmax.f32 %v4030, %v4032
        %4036 = vrot.lane.b32.xlu0 %v3932, 67
        %v4037 = vpop.permute.xlu0 %4036
        %4040 = vrot.lane.b32.xlu0 %v3949, 6
        %v4041 = vpop.permute.xlu0 %4040
        %4044 = vrot.lane.b32.xlu0 %v3966, 73
        %v4045 = vpop.permute.xlu0 %4044
        %4048 = vrot.lane.b32.xlu0 %v3983, 12
        %v4049 = vpop.permute.xlu0 %4048
        %4052 = vrot.lane.b32.xlu0 %v4000, 79
        %v4053 = vpop.permute.xlu0 %4052
        %4056 = vrot.lane.b32.xlu0 %v4017, 18
        %v4057 = vpop.permute.xlu0 %4056
        %4060 = vrot.lane.b32.xlu0 %v4034, 85
        %v4061 = vpop.permute.xlu0 %4060
        %vm4063 = vcmask 547840
        %v4064 = vsel %vm4063, %v3915, %v4037
        %vm4065 = vcmask 48128
        %v4066 = vsel %vm4065, %v4037, %v4041
        %vm4067 = vcmask 596992
        %v4068 = vsel %vm4067, %v4066, %v4045
        %vm4069 = vcmask 97280
        %v4070 = vsel %vm4069, %v4045, %v4049
        %vm4071 = vcmask 646144
        %v4072 = vsel %vm4071, %v4070, %v4053
        %vm4073 = vcmask 146432
        %v4074 = vsel %vm4073, %v4053, %v4057
        %vm4075 = vcmask 695296
        %v4076 = vsel %vm4075, %v4074, %v4061
        %vm4077 = vcmask 195584
        %v4078 = vsel %vm4077, %v4061, 0.0
        %v4079 = vpack.c.bf16 %v4064, %v4064
        %v4080 = vpack.c.bf16 %v4068, %v4068
        %v4081 = vpack.c.bf16 %v4072, %v4072
        %v4082 = vpack.c.bf16 %v4076, %v4076
        %v4083 = vpack.c.bf16 %v4078, %v4078
        %v4084 = vunpack.c.l.bf16 %v4079
        %v4085 = vunpack.c.l.bf16 %v4080
        %v4086 = vunpack.c.l.bf16 %v4081
        %v4087 = vunpack.c.l.bf16 %v4082
        %v4088 = vunpack.c.l.bf16 %v4083
        %v4089 = vsub.f32 %v4064, %v4084
        %v4090 = vsub.f32 %v4068, %v4085
        %v4091 = vsub.f32 %v4072, %v4086
        %v4092 = vsub.f32 %v4076, %v4087
        %v4093 = vsub.f32 %v4078, %v4088
        %v4094 = vpack.c.bf16 %v4089, %v4064
        %v4095 = vpack.c.bf16 %v4090, %v4068
        %v4096 = vpack.c.bf16 %v4091, %v4072
        %v4097 = vpack.c.bf16 %v4092, %v4076
        %v4098 = vpack.c.bf16 %v4093, %v4078
        %v4099 = vld [vmem:[#allocation12] sm:$0xf]
        %v4100 = vld [vmem:[#allocation12 + $0x4] sm:$0xf]
        %v4101 = vld [vmem:[#allocation12 + $0x8] sm:$0xf]
        %v4102 = vld [vmem:[#allocation12 + $0xc] sm:$0xf]
        %v4103 = vld [vmem:[#allocation12 + $0x10] sm:$0xf]
        %v4104 = vld [vmem:[#allocation12 + $0x14] sm:$0xf]
        %v4105 = vld [vmem:[#allocation12 + $0x18] sm:$0xf]
        %v4106 = vld [vmem:[#allocation12 + $0x1c] sm:$0xf]
        %v4107 = vld [vmem:[#allocation12 + $0x20] sm:$0xf]
        %v4108 = vld [vmem:[#allocation12 + $0x24] sm:$0xf]
        %v4109 = vld [vmem:[#allocation12 + $0x28] sm:$0xf]
        %v4110 = vld [vmem:[#allocation12 + $0x2c] sm:$0xf]
        %v4111 = vld [vmem:[#allocation12 + $0x30] sm:$0xf]
        %v4112 = vld [vmem:[#allocation12 + $0x34] sm:$0xf]
        %v4113 = vld [vmem:[#allocation12 + $0x38] sm:$0xf]
        %v4114 = vld [vmem:[#allocation12 + $0x3c] sm:$0xf]
        %v4115 = vld [vmem:[#allocation12 + $0x40] sm:$0xf]
        %v4116 = vld [vmem:[#allocation12 + $0x44] sm:$0xf]
        %v4117 = vld [vmem:[#allocation12 + $0x48] sm:$0xf]
        %v4118 = vld [vmem:[#allocation12 + $0x4c] sm:$0xf]
        %v4119 = vld [vmem:[#allocation12 + $0x50] sm:$0xf]
        %v4120 = vld [vmem:[#allocation12 + $0x54] sm:$0xf]
        %v4121 = vld [vmem:[#allocation12 + $0x58] sm:$0xf]
        %v4122 = vld [vmem:[#allocation12 + $0x5c] sm:$0xf]
        %v4123 = vld [vmem:[#allocation12 + $0x60] sm:$0xf]
        %v4124 = vld [vmem:[#allocation12 + $0x64] sm:$0xf]
        %v4125 = vld [vmem:[#allocation12 + $0x68] sm:$0xf]
        %v4126 = vld [vmem:[#allocation12 + $0x6c] sm:$0xf]
        %v4127 = vld [vmem:[#allocation12 + $0x70] sm:$0xf]
        %v4128 = vld [vmem:[#allocation12 + $0x74] sm:$0xf]
        %v4129 = vld [vmem:[#allocation12 + $0x78] sm:$0xf]
        %v4130 = vld [vmem:[#allocation12 + $0x7c] sm:$0xf]
        %v4131 = vld [vmem:[#allocation12 + $0x80] sm:$0xf]
        %v4132 = vld [vmem:[#allocation12 + $0x84] sm:$0xf]
        %v4133 = vld [vmem:[#allocation12 + $0x88] sm:$0xf]
        %v4134 = vld [vmem:[#allocation12 + $0x8c] sm:$0xf]
        %v4135 = vld [vmem:[#allocation12 + $0x90] sm:$0xf]
        %v4136 = vld [vmem:[#allocation12 + $0x94] sm:$0xf]
        %v4137 = vld [vmem:[#allocation12 + $0x98] sm:$0xf]
        %v4138 = vld [vmem:[#allocation12 + $0x9c] sm:$0xf]
        %v4139 = vld [vmem:[#allocation12 + $0xa0] sm:$0xf]
        %v4140 = vld [vmem:[#allocation12 + $0xa4] sm:$0xf]
        %v4141 = vld [vmem:[#allocation12 + $0xa8] sm:$0xf]
        %v4142 = vld [vmem:[#allocation12 + $0xac] sm:$0xf]
        %v4143 = vld [vmem:[#allocation12 + $0xb0] sm:$0xf]
        %v4144 = vld [vmem:[#allocation12 + $0xb4] sm:$0xf]
        %v4145 = vld [vmem:[#allocation12 + $0xb8] sm:$0xf]
        %v4146 = vld [vmem:[#allocation12 + $0xbc] sm:$0xf]
        %v4147 = vld [vmem:[#allocation12 + $0xc0] sm:$0xf]
        %v4148 = vld [vmem:[#allocation12 + $0xc4] sm:$0xf]
        %v4149 = vld [vmem:[#allocation12 + $0xc8] sm:$0xf]
        %v4150 = vld [vmem:[#allocation12 + $0xcc] sm:$0xf]
        %v4151 = vld [vmem:[#allocation12 + $0xd0] sm:$0xf]
        %v4152 = vld [vmem:[#allocation12 + $0xd4] sm:$0xf]
        %v4153 = vld [vmem:[#allocation12 + $0xd8] sm:$0xf]
        %v4154 = vld [vmem:[#allocation12 + $0xdc] sm:$0xf]
        %v4155 = vld [vmem:[#allocation12 + $0xe0] sm:$0xf]
        %v4156 = vld [vmem:[#allocation12 + $0xe4] sm:$0xf]
        %v4157 = vld [vmem:[#allocation12 + $0xe8] sm:$0xf]
        %v4158 = vld [vmem:[#allocation12 + $0xec] sm:$0xf]
        %v4159 = vld [vmem:[#allocation12 + $0xf0] sm:$0xf]
        %v4160 = vld [vmem:[#allocation12 + $0xf4] sm:$0xf]
        %v4161 = vld [vmem:[#allocation12 + $0xf8] sm:$0xf]
        %v4162 = vld [vmem:[#allocation12 + $0xfc] sm:$0xf]
        %v4163 = vld [vmem:[#allocation12 + $0x100] sm:$0xf]
        %v4164 = vld [vmem:[#allocation12 + $0x104] sm:$0xf]
        %v4165 = vld [vmem:[#allocation12 + $0x108] sm:$0xf]
        %v4166 = vld [vmem:[#allocation12 + $0x10c] sm:$0xf]
        %v4167 = vld [vmem:[#allocation12 + $0x110] sm:$0xf]
        %v4168 = vld [vmem:[#allocation12 + $0x114] sm:$0xf]
        %v4169 = vld [vmem:[#allocation12 + $0x118] sm:$0xf]
        %v4170 = vld [vmem:[#allocation12 + $0x11c] sm:$0xf]
        %v4171 = vld [vmem:[#allocation12 + $0x120] sm:$0xf]
        %v4172 = vld [vmem:[#allocation12 + $0x124] sm:$0xf]
        %v4173 = vld [vmem:[#allocation12 + $0x128] sm:$0xf]
        %v4174 = vld [vmem:[#allocation12 + $0x12c] sm:$0xf]
        %v4175 = vld [vmem:[#allocation12 + $0x130] sm:$0xf]
        %v4176 = vld [vmem:[#allocation12 + $0x134] sm:$0xf]
        %v4177 = vld [vmem:[#allocation12 + $0x138] sm:$0xf]
        %v4178 = vld [vmem:[#allocation12 + $0x13c] sm:$0xf]
        %v4259 = vunpack.c.l.b16 %v4099
        %v4260 = vunpack.c.l.b16 %v4100
        %v4261 = vunpack.c.l.b16 %v4101
        %v4262 = vunpack.c.l.b16 %v4102
        %v4263 = vunpack.c.l.b16 %v4103
        %v4264 = vunpack.c.l.b16 %v4104
        %v4265 = vunpack.c.l.b16 %v4105
        %v4266 = vunpack.c.l.b16 %v4106
        %v4267 = vunpack.c.l.b16 %v4107
        %v4268 = vunpack.c.l.b16 %v4108
        %v4269 = vunpack.c.l.b16 %v4109
        %v4270 = vunpack.c.l.b16 %v4110
        %v4271 = vunpack.c.l.b16 %v4111
        %v4272 = vunpack.c.l.b16 %v4112
        %v4273 = vunpack.c.l.b16 %v4113
        %v4274 = vunpack.c.l.b16 %v4114
        %v4275 = vunpack.c.l.b16 %v4115
        %v4276 = vunpack.c.l.b16 %v4116
        %v4277 = vunpack.c.l.b16 %v4117
        %v4278 = vunpack.c.l.b16 %v4118
        %v4279 = vunpack.c.l.b16 %v4119
        %v4280 = vunpack.c.l.b16 %v4120
        %v4281 = vunpack.c.l.b16 %v4121
        %v4282 = vunpack.c.l.b16 %v4122
        %v4283 = vunpack.c.l.b16 %v4123
        %v4284 = vunpack.c.l.b16 %v4124
        %v4285 = vunpack.c.l.b16 %v4125
        %v4286 = vunpack.c.l.b16 %v4126
        %v4287 = vunpack.c.l.b16 %v4127
        %v4288 = vunpack.c.l.b16 %v4128
        %v4289 = vunpack.c.l.b16 %v4129
        %v4290 = vunpack.c.l.b16 %v4130
        %v4291 = vunpack.c.l.b16 %v4131
        %v4292 = vunpack.c.l.b16 %v4132
        %v4293 = vunpack.c.l.b16 %v4133
        %v4294 = vunpack.c.l.b16 %v4134
        %v4295 = vunpack.c.l.b16 %v4135
        %v4296 = vunpack.c.l.b16 %v4136
        %v4297 = vunpack.c.l.b16 %v4137
        %v4298 = vunpack.c.l.b16 %v4138
        %v4299 = vunpack.c.l.b16 %v4139
        %v4300 = vunpack.c.l.b16 %v4140
        %v4301 = vunpack.c.l.b16 %v4141
        %v4302 = vunpack.c.l.b16 %v4142
        %v4303 = vunpack.c.l.b16 %v4143
        %v4304 = vunpack.c.l.b16 %v4144
        %v4305 = vunpack.c.l.b16 %v4145
        %v4306 = vunpack.c.l.b16 %v4146
        %v4307 = vunpack.c.l.b16 %v4147
        %v4308 = vunpack.c.l.b16 %v4148
        %v4309 = vunpack.c.l.b16 %v4149
        %v4310 = vunpack.c.l.b16 %v4150
        %v4311 = vunpack.c.l.b16 %v4151
        %v4312 = vunpack.c.l.b16 %v4152
        %v4313 = vunpack.c.l.b16 %v4153
        %v4314 = vunpack.c.l.b16 %v4154
        %v4315 = vunpack.c.l.b16 %v4155
        %v4316 = vunpack.c.l.b16 %v4156
        %v4317 = vunpack.c.l.b16 %v4157
        %v4318 = vunpack.c.l.b16 %v4158
        %v4319 = vunpack.c.l.b16 %v4159
        %v4320 = vunpack.c.l.b16 %v4160
        %v4321 = vunpack.c.l.b16 %v4161
        %v4322 = vunpack.c.l.b16 %v4162
        %v4323 = vunpack.c.l.b16 %v4163
        %v4324 = vunpack.c.l.b16 %v4164
        %v4325 = vunpack.c.l.b16 %v4165
        %v4326 = vunpack.c.l.b16 %v4166
        %v4327 = vunpack.c.l.b16 %v4167
        %v4328 = vunpack.c.l.b16 %v4168
        %v4329 = vunpack.c.l.b16 %v4169
        %v4330 = vunpack.c.l.b16 %v4170
        %v4331 = vunpack.c.l.b16 %v4171
        %v4332 = vunpack.c.l.b16 %v4172
        %v4333 = vunpack.c.l.b16 %v4173
        %v4334 = vunpack.c.l.b16 %v4174
        %v4335 = vunpack.c.l.b16 %v4175
        %v4336 = vunpack.c.l.b16 %v4176
        %v4337 = vunpack.c.l.b16 %v4177
        %v4338 = vunpack.c.l.b16 %v4178
        %v4339 = vpack.c.b16 %v4260, %v4259
        %v4340 = vpack.c.b16 %v4262, %v4261
        %v4341 = vpack.c.b16 %v4264, %v4263
        %v4342 = vpack.c.b16 %v4266, %v4265
        %v4343 = vpack.c.b16 %v4268, %v4267
        %v4344 = vpack.c.b16 %v4270, %v4269
        %v4345 = vpack.c.b16 %v4272, %v4271
        %v4346 = vpack.c.b16 %v4274, %v4273
        %v4347 = vpack.c.b16 %v4276, %v4275
        %v4348 = vpack.c.b16 %v4278, %v4277
        %v4349 = vpack.c.b16 %v4280, %v4279
        %v4350 = vpack.c.b16 %v4282, %v4281
        %v4351 = vpack.c.b16 %v4284, %v4283
        %v4352 = vpack.c.b16 %v4286, %v4285
        %v4353 = vpack.c.b16 %v4288, %v4287
        %v4354 = vpack.c.b16 %v4290, %v4289
        %v4355 = vpack.c.b16 %v4292, %v4291
        %v4356 = vpack.c.b16 %v4294, %v4293
        %v4357 = vpack.c.b16 %v4296, %v4295
        %v4358 = vpack.c.b16 %v4298, %v4297
        %v4359 = vpack.c.b16 %v4300, %v4299
        %v4360 = vpack.c.b16 %v4302, %v4301
        %v4361 = vpack.c.b16 %v4304, %v4303
        %v4362 = vpack.c.b16 %v4306, %v4305
        %v4363 = vpack.c.b16 %v4308, %v4307
        %v4364 = vpack.c.b16 %v4310, %v4309
        %v4365 = vpack.c.b16 %v4312, %v4311
        %v4366 = vpack.c.b16 %v4314, %v4313
        %v4367 = vpack.c.b16 %v4316, %v4315
        %v4368 = vpack.c.b16 %v4318, %v4317
        %v4369 = vpack.c.b16 %v4320, %v4319
        %v4370 = vpack.c.b16 %v4322, %v4321
        %v4371 = vpack.c.b16 %v4324, %v4323
        %v4372 = vpack.c.b16 %v4326, %v4325
        %v4373 = vpack.c.b16 %v4328, %v4327
        %v4374 = vpack.c.b16 %v4330, %v4329
        %v4375 = vpack.c.b16 %v4332, %v4331
        %v4376 = vpack.c.b16 %v4334, %v4333
        %v4377 = vpack.c.b16 %v4336, %v4335
        %v4378 = vpack.c.b16 %v4338, %v4337
        %4419 = vmatprep.subr.bf16.mxu0 0
        %4420 = vmatpush1.bf16.msra.mxu0 %v4339
        %4421 = vmatprep.subr.bf16.mxu0 0
        %4422 = vmatpush1.bf16.msra.mxu0 %v4340
        %4423 = vmatprep.subr.bf16.mxu0 0
        %4424 = vmatpush1.bf16.msra.mxu0 %v4341
        %4425 = vmatprep.subr.bf16.mxu0 0
        %4426 = vmatpush1.bf16.msra.mxu0 %v4342
        %4427 = vmatprep.subr.bf16.mxu0 0
        %4428 = vmatpush1.bf16.msra.mxu0 %v4343
        %4429 = vmatprep.subr.bf16.mxu0 0
        %4430 = vmatpush1.bf16.msra.mxu0 %v4344
        %4431 = vmatprep.subr.bf16.mxu0 0
        %4432 = vmatpush1.bf16.msra.mxu0 %v4345
        %4433 = vmatprep.subr.bf16.mxu0 0
        %4434 = vmatpush1.bf16.msra.mxu0 %v4346
        %4435 = vmatprep.subr.bf16.mxu0 0
        %4436 = vmatpush1.bf16.msra.mxu0 %v4347
        %4437 = vmatprep.subr.bf16.mxu0 0
        %4438 = vmatpush1.bf16.msra.mxu0 %v4348
        %4439 = vmatprep.subr.bf16.mxu0 0
        %4440 = vmatpush1.bf16.msra.mxu0 %v4349
        %4441 = vmatprep.subr.bf16.mxu0 0
        %4442 = vmatpush1.bf16.msra.mxu0 %v4350
        %4443 = vmatprep.subr.bf16.mxu0 0
        %4444 = vmatpush1.bf16.msra.mxu0 %v4351
        %4445 = vmatprep.subr.bf16.mxu0 0
        %4446 = vmatpush1.bf16.msra.mxu0 %v4352
        %4447 = vmatprep.subr.bf16.mxu0 0
        %4448 = vmatpush1.bf16.msra.mxu0 %v4353
        %4449 = vmatprep.subr.bf16.mxu0 0
        %4450 = vmatpush1.bf16.msra.mxu0 %v4354
        %4451 = vmatprep.mubr.bf16.mxu0 %v4095
        %4452 = vmatmul.mubr.bf16.gmra.mrb[0].mxu0 %v4094
        %v4453 = vpop.f32.mrb[0].mxu0
        %v4454 = vadd.f32 0.0, %v4453
        %v4455 = vpop.f32.mrb[0].mxu0
        %v4456 = vpop.f32.mrb[0].mxu0
        %v4457 = vadd.f32 0.0, %v4456
        %v4458 = vpop.f32.mrb[0].mxu0
        %4459 = vdwg.mxu0
        %4460 = vmatprep.subr.bf16.mxu0 0
        %4461 = vmatpush1.bf16.msra.mxu0 %v4355
        %4462 = vmatprep.subr.bf16.mxu0 0
        %4463 = vmatpush1.bf16.msra.mxu0 %v4356
        %4464 = vmatprep.subr.bf16.mxu0 0
        %4465 = vmatpush1.bf16.msra.mxu0 %v4357
        %4466 = vmatprep.subr.bf16.mxu0 0
        %4467 = vmatpush1.bf16.msra.mxu0 %v4358
        %4468 = vmatprep.subr.bf16.mxu0 0
        %4469 = vmatpush1.bf16.msra.mxu0 %v4359
        %4470 = vmatprep.subr.bf16.mxu0 0
        %4471 = vmatpush1.bf16.msra.mxu0 %v4360
        %4472 = vmatprep.subr.bf16.mxu0 0
        %4473 = vmatpush1.bf16.msra.mxu0 %v4361
        %4474 = vmatprep.subr.bf16.mxu0 0
        %4475 = vmatpush1.bf16.msra.mxu0 %v4362
        %4476 = vmatprep.subr.bf16.mxu0 0
        %4477 = vmatpush1.bf16.msra.mxu0 %v4363
        %4478 = vmatprep.subr.bf16.mxu0 0
        %4479 = vmatpush1.bf16.msra.mxu0 %v4364
        %4480 = vmatprep.subr.bf16.mxu0 0
        %4481 = vmatpush1.bf16.msra.mxu0 %v4365
        %4482 = vmatprep.subr.bf16.mxu0 0
        %4483 = vmatpush1.bf16.msra.mxu0 %v4366
        %4484 = vmatprep.subr.bf16.mxu0 0
        %4485 = vmatpush1.bf16.msra.mxu0 %v4367
        %4486 = vmatprep.subr.bf16.mxu0 0
        %4487 = vmatpush1.bf16.msra.mxu0 %v4368
        %4488 = vmatprep.subr.bf16.mxu0 0
        %4489 = vmatpush1.bf16.msra.mxu0 %v4369
        %4490 = vmatprep.subr.bf16.mxu0 0
        %4491 = vmatpush1.bf16.msra.mxu0 %v4370
        %4492 = vmatprep.mubr.bf16.mxu0 %v4097
        %4493 = vmatmul.mubr.bf16.gmra.mrb[0].mxu0 %v4096
        %v4494 = vpop.f32.mrb[0].mxu0
        %v4495 = vadd.f32 %v4454, %v4494
        %v4496 = vpop.f32.mrb[0].mxu0
        %v4497 = vpop.f32.mrb[0].mxu0
        %v4498 = vadd.f32 %v4457, %v4497
        %v4499 = vpop.f32.mrb[0].mxu0
        %4500 = vdwg.mxu0
        %4501 = vmatprep.subr.bf16.mxu0 0
        %4502 = vmatpush1.bf16.msra.mxu0 %v4371
        %4503 = vmatprep.subr.bf16.mxu0 0
        %4504 = vmatpush1.bf16.msra.mxu0 %v4372
        %4505 = vmatprep.subr.bf16.mxu0 0
        %4506 = vmatpush1.bf16.msra.mxu0 %v4373
        %4507 = vmatprep.subr.bf16.mxu0 0
        %4508 = vmatpush1.bf16.msra.mxu0 %v4374
        %4509 = vmatprep.subr.bf16.mxu0 0
        %4510 = vmatpush1.bf16.msra.mxu0 %v4375
        %4511 = vmatprep.subr.bf16.mxu0 0
        %4512 = vmatpush1.bf16.msra.mxu0 %v4376
        %4513 = vmatprep.subr.bf16.mxu0 0
        %4514 = vmatpush1.bf16.msra.mxu0 %v4377
        %4515 = vmatprep.subr.bf16.mxu0 0
        %4516 = vmatpush1.bf16.msra.mxu0 %v4378
        %4517 = vmatprep.subr.bf16.mxu0 0
        %4518 = vmatpush1.bf16.msra.mxu0 0
        %4519 = vmatprep.subr.bf16.mxu0 0
        %4520 = vmatpush1.bf16.msra.mxu0 0
        %4521 = vmatprep.subr.bf16.mxu0 0
        %4522 = vmatpush1.bf16.msra.mxu0 0
        %4523 = vmatprep.subr.bf16.mxu0 0
        %4524 = vmatpush1.bf16.msra.mxu0 0
        %4525 = vmatprep.subr.bf16.mxu0 0
        %4526 = vmatpush1.bf16.msra.mxu0 0
        %4527 = vmatprep.subr.bf16.mxu0 0
        %4528 = vmatpush1.bf16.msra.mxu0 0
        %4529 = vmatprep.subr.bf16.mxu0 0
        %4530 = vmatpush1.bf16.msra.mxu0 0
        %4531 = vmatprep.subr.bf16.mxu0 0
        %4532 = vmatpush1.bf16.msra.mxu0 0
        %4533 = vmatprep.mubr.bf16.mxu0 0
        %4534 = vmatmul.mubr.bf16.gmra.mrb[0].mxu0 %v4098
        %v4535 = vpop.f32.mrb[0].mxu0
        %v4536 = vadd.f32 %v4495, %v4535
        %v4537 = vpop.f32.mrb[0].mxu0
        %v4538 = vpop.f32.mrb[0].mxu0
        %v4539 = vadd.f32 %v4498, %v4538
        %v4540 = vpop.f32.mrb[0].mxu0
        %4541 = vdwg.mxu0
        %v4542 = vadd.f32 %v4536, %v4539
        %v4543 = vmul.f32 %v4542, 11.313708
        %v4544 = vld [vmem:[#allocation6] sm:$0xff]
        %v4545 = vadd.f32 %v4543, %v4544
        %4546 = vst [vmem:[%s415] sm:$0xff] %v4545
        %s4547 = sand.u32 %s211, 1
        %s4548 = scalar_lea.sflag [#allocation4], %s4547
        %s4549 = sand.u32 %s211, 1
        %s4550 = smul.addr %s4549, 8
        %s4551 = scalar_lea.vmem [#allocation17], %s4550
        // Predicated region
        $region85: #{tpu_custom_call.1} parent=51 // pred_check
          %p4552 = pneg %p221
        $region86: #{tpu_custom_call.1} parent=51 // pred_check_branch
          %4554 = sbr.rel (%p4552) target = $region88
        $region87: #{tpu_custom_call.1} parent=51 // pred_region
          %s4556 = ssub.s32 128, 128
          %4557 = vsyncadd %s4548, %s4556
          %s4558 = smul.addr %s30, 128
          %s4559 = scalar_lea.hbm %s8, %s4558
          %s4561 = sshll.u32 %s4551, 4
          %s4562 = int_to_ptr.vmem [resolvable:$true] %s4561
          %4564 = dma.vmem_to_hbm [thread:$0]  %s4562, 128, %s4559, %s4548
        $region88: #{tpu_custom_call.1} parent=51 // pred_fallthru
          _
      $region52: #{tpu_custom_call.1} parent=5 // pred_fallthru
        _
      %p4565 = scmp.le.s32.totalorder 2, %s25
      // Predicated region
      $region89: #{tpu_custom_call.1} parent=5 // pred_check
        %p4566 = pneg %p4565
      $region90: #{tpu_custom_call.1} parent=5 // pred_check_branch
        %4568 = sbr.rel (%p4566) target = $region92
      $region91: #{tpu_custom_call.1} parent=5 // pred_region
        %s4569 = ssub.s32 %s25, 2
        // Predicated region
        $region93: #{tpu_custom_call.1} parent=91 // pred_check
          %p4570 = pneg %p227
        $region94: #{tpu_custom_call.1} parent=91 // pred_check_branch
          %4572 = sbr.rel (%p4570) target = $region96
        $region95: #{tpu_custom_call.1} parent=91 // pred_region
          %s4573 = sand.u32 %s212, 1
          %s4574 = scalar_lea.sflag [#allocation4], %s4573
          %s4575 = sand.u32 %s212, 1
          %s4576 = smul.addr %s4575, 8
          %s4577 = scalar_lea.vmem [#allocation17], %s4576
          %4578 = dma.done %s4574, 128
        $region96: #{tpu_custom_call.1} parent=91 // pred_fallthru
          _
      $region92: #{tpu_custom_call.1} parent=5 // pred_fallthru
        _
    $region6: #{tpu_custom_call.1} parent=1 // loop_footer
      %s29 = sadd.s32 1, %s25
    $region7: #{tpu_custom_call.1} parent=1 // loop_footer_branch
      %24 = sbr.rel target = $region3
    $region8: #{tpu_custom_call.1} parent=1 // loop_exit
      _
    %4579 = vsyncpa [#allocation3], 1
    %s4580 = scalar_lea.sflag [#allocation3], 1
    %4581 = vsyncpa %s4580, 1
    %4582 = vsyncpa [#allocation7], 1
    %4583 = vsyncpa [#allocation13], 1
    %4584 = vsyncpa [#allocation4], 1
    %s4585 = scalar_lea.sflag [#allocation4], 1
    %4586 = vsyncpa %s4585, 1
    %4587 = vsyncpa [#allocation5], 1
    %s4588 = scalar_lea.sflag [#allocation5], 1
    %4589 = vsyncpa %s4588, 1
    %4590 = vsyncpa [#allocation11], 1
    %4591 = vsyncpa [#allocation16], 1

</llo_original>
